<compile_context>
chip_gen: v7x
topology: tpu7x:2x2x1
jax: 0.10.0
libtpu: 0.0.40
codegen_flags: <defaults>
</compile_context>

<pallas_src>
import functools

import jax
import jax.numpy as jnp
from jax.experimental import pallas as pl
from jax.experimental.pallas import tpu as pltpu

LEAKY_SLOPE = 0.1     # ac_type == "leaky"
BN_EPS = 1e-5


# ---------------- fused LayerBlock kernel ----------------

def _build_layer_block_kernel(n_sc, Ho, Wo, Hs):
    """Fused kernel for a LayerBlock with `n_sc` ShortcutBlocks.

    Ref order: xs, (w,s,b) for conv1/conv2/conv3, per shortcut block (w,s,b) for
    its conv1 and conv2, (w,s,b) for conv4, then w5a, w5b, s5, b5, the output
    ref and (if n_sc > 0) the halo scratch.
    """
    M = Ho * Wo

    def bn_act(acc, s_ref, b_ref):
        y = acc * s_ref[...] + b_ref[...]          # f32 epilogue
        return jnp.where(y > 0, y, LEAKY_SLOPE * y)

    def mm(x2d, w_ref, tap=0):
        return jnp.dot(x2d.astype(jnp.bfloat16), w_ref[tap],
                       preferred_element_type=jnp.float32)

    def kernel(*refs):
        xs_ref = refs[0]
        pos = [1]

        def take(k):
            out = refs[pos[0]:pos[0] + k]
            pos[0] += k
            return out

        w1, s1, b1 = take(3)
        w2, s2, b2 = take(3)
        w3, s3, b3 = take(3)
        sc_refs = [take(6) for _ in range(n_sc)]
        w4, s4, b4 = take(3)
        w5a, w5b, s5, b5 = take(4)
        o_ref = take(1)[0]
        pad_ref = take(1)[0] if n_sc > 0 else None

        Cin = xs_ref.shape[-1]

        # ---- conv1: 3x3 / stride 2 / pad 1, implicit GEMM over the
        #      space-to-depth input (9 contiguous-slice matmuls on the MXU).
        acc = jnp.zeros((M, w1.shape[-1]), jnp.float32)
        for di in range(3):
            a, p = divmod(di, 2)
            for dj in range(3):
                b, q = divmod(dj, 2)
                base = (2 * p + q) * Hs + a
                patch = xs_ref[0, base:base + Ho, b:b + Wo, :]
                acc = acc + mm(patch.reshape(M, Cin), w1, di * 3 + dj)
        x = bn_act(acc, s1, b1)                    # (M, C1) f32, stays in VMEM

        x1 = bn_act(mm(x, w2), s2, b2)             # conv2 (kept for the concat)
        x = bn_act(mm(x, w3), s3, b3)              # conv3

        # ---- ShortcutBlocks: 1x1 -> 3x3(pad 1) -> + residual, all in VMEM
        for (wa, sa, ba, wb, sb, bb) in sc_refs:
            shortcut = x
            y = bn_act(mm(x, wa), sa, ba)          # 1x1
            Cm = wa.shape[-1]
            pad_ref[...] = jnp.zeros_like(pad_ref)         # zero halo border
            pad_ref[1:1 + Ho, 1:1 + Wo, :] = y.reshape(Ho, Wo, Cm)
            acc = jnp.zeros((M, wb.shape[-1]), jnp.float32)
            for di in range(3):
                for dj in range(3):
                    tap = pad_ref[di:di + Ho, dj:dj + Wo, :].reshape(M, Cm)
                    acc = acc + mm(tap, wb, di * 3 + dj)
            x = bn_act(acc, sb, bb) + shortcut

        x2 = bn_act(mm(x, w4), s4, b4)             # conv4

        # ---- concat([x2, x1], ch) + conv5 fused as a split-K matmul.
        acc = mm(x2, w5a) + mm(x1, w5b)
        out = bn_act(acc, s5, b5)
        o_ref[0] = out.astype(o_ref.dtype)

    return kernel


# ---------------- wrapper ----------------

def _fold_bn(cba):
    """ConvBnActivation params -> (wmat[kh*kw, Cin, Cout] bf16, scale, bias)."""
    w, gamma, beta, mean, var = cba
    cout, cin, kh, kw = w.shape
    scale = (gamma / jnp.sqrt(var + BN_EPS)).astype(jnp.float32)
    bias = (beta - mean * scale).astype(jnp.float32)
    wmat = jnp.transpose(w, (2, 3, 1, 0)).reshape(kh * kw, cin, cout)
    return wmat.astype(jnp.bfloat16), scale.reshape(1, cout), bias.reshape(1, cout)


def layer_block_forward(x_nchw, params):
    x = jnp.transpose(x_nchw, (0, 2, 3, 1)).astype(jnp.float32)   # NCHW -> NHWC
    N, H, W, Cin = x.shape

    # conv1 geometry (3x3, stride 2, pad 1)
    Ho = (H + 2 - 3) // 2 + 1
    Wo = (W + 2 - 3) // 2 + 1
    Hs, Ws = Ho + 1, Wo + 1

    # pad + space-to-depth (1x data). xs[n, (2p+q)*Hs + a, b, c] = xpad[n, 2a+p, 2b+q, c]
    xp = jnp.pad(x, ((0, 0), (1, 2 * Hs - H - 1), (1, 2 * Ws - W - 1), (0, 0)))
    xs = xp.reshape(N, Hs, 2, Ws, 2, Cin).transpose(0, 2, 4, 1, 3, 5)
    xs = xs.reshape(N, 4 * Hs, Ws, Cin)

    # fold BN into (scale, bias); weights as bf16 GEMM matrices.
    convs = [_fold_bn(params["conv1"]), _fold_bn(params["conv2"]),
             _fold_bn(params["conv3"])]
    for sc in params["shortcut"]:
        convs.append(_fold_bn(sc["conv1"]))
        convs.append(_fold_bn(sc["conv2"]))
    convs.append(_fold_bn(params["conv4"]))
    w5, s5, b5 = _fold_bn(params["conv5"])
    c4 = params["conv4"][0].shape[0]
    w5a, w5b = w5[:, :c4, :], w5[:, c4:, :]       # concat([x2, x1]) fused

    args = [xs]
    in_specs = [pl.BlockSpec((1, 4 * Hs, Ws, Cin), lambda n: (n, 0, 0, 0))]
    for arr in [a for triple in convs for a in triple] + [w5a, w5b, s5, b5]:
        args.append(arr)
        in_specs.append(
            pl.BlockSpec(arr.shape, lambda n, nd=arr.ndim: (0,) * nd))

    n_sc = len(params["shortcut"])
    c5 = w5.shape[-1]
    scratch_shapes = []
    if n_sc > 0:
        c_mid = params["shortcut"][0]["conv1"][0].shape[0]
        scratch_shapes.append(pltpu.VMEM((Ho + 2, Wo + 2, c_mid), jnp.float32))

    out = pl.pallas_call(
        _build_layer_block_kernel(n_sc, Ho, Wo, Hs),
        out_shape=jax.ShapeDtypeStruct((N, Ho * Wo, c5), jnp.float32),
        grid=(N,),
        in_specs=in_specs,
        out_specs=pl.BlockSpec((1, Ho * Wo, c5), lambda n: (n, 0, 0)),
        scratch_shapes=scratch_shapes,
        compiler_params=pltpu.CompilerParams(
            dimension_semantics=("parallel",)),
    )(*args)

    out = out.reshape(N, Ho, Wo, c5)
    return jnp.transpose(out, (0, 3, 1, 2))                       # NHWC -> NCHW


# ---------------- parameter init (deterministic, synthetic) ----------------

def _make_cba(key, cin, cout, k):
    kw_, kg, kb, km, kv = jax.random.split(key, 5)
    w = jax.random.normal(kw_, (cout, cin, k, k), jnp.float32) * 0.05
    gamma = 1.0 + 0.1 * jax.random.normal(kg, (cout,), jnp.float32)
    beta = 0.1 * jax.random.normal(kb, (cout,), jnp.float32)
    mean = 0.1 * jax.random.normal(km, (cout,), jnp.float32)
    var = 0.5 + jax.random.uniform(kv, (cout,), jnp.float32)
    return (w, gamma, beta, mean, var)


def init_layer_block(key, num_layers, index):
    channel = 32 * 2 ** (index - 1)
    n_sc = num_layers[index - 1]
    keys = iter(jax.random.split(key, 5 + 2 * n_sc))
    p = {}
    if index == 1:
        p["conv1"] = _make_cba(next(keys), 32, 64, 3)
        p["conv2"] = _make_cba(next(keys), 64, 64, 1)
        p["conv3"] = _make_cba(next(keys), 64, 64, 1)
        sc1, sc2 = (64, 32), (32, 64)
        p["conv4"] = _make_cba(next(keys), 64, 64, 1)
        p["conv5"] = _make_cba(next(keys), 128, 64, 1)
    else:
        p["conv1"] = _make_cba(next(keys), channel, channel * 2, 3)
        p["conv2"] = _make_cba(next(keys), channel * 2, channel, 1)
        p["conv3"] = _make_cba(next(keys), channel * 2, channel, 1)
        sc1, sc2 = (channel, channel), (channel, channel)
        p["conv4"] = _make_cba(next(keys), channel, channel, 1)
        p["conv5"] = _make_cba(next(keys), channel * 2, channel * 2, 1)
    p["shortcut"] = []
    for _ in range(n_sc):
        p["shortcut"].append({
            "conv1": _make_cba(next(keys), sc1[0], sc1[1], 1),
            "conv2": _make_cba(next(keys), sc2[0], sc2[1], 3),
        })
    return p


# ---------------- pure-JAX reference for verification ----------------

def _ref_cba(x_nhwc, params, stride, pad, residual=None):
    w, gamma, beta, mean, var = params
    out = jax.lax.conv_general_dilated(
        x_nhwc, jnp.transpose(w, (2, 3, 1, 0)),
        window_strides=(stride, stride),
        padding=[(pad, pad), (pad, pad)],
        dimension_numbers=("NHWC", "HWIO", "NHWC"),
        precision=jax.lax.Precision.HIGHEST)
    scale = gamma / jnp.sqrt(var + BN_EPS)
    bias = beta - mean * scale
    y = out * scale + bias
    y = jnp.where(y > 0, y, LEAKY_SLOPE * y)
    if residual is not None:
        y = y + residual
    return y


def layer_block_ref(x_nchw, params):
    x = jnp.transpose(x_nchw, (0, 2, 3, 1))
    x = _ref_cba(x, params["conv1"], 2, 1)
    x1 = _ref_cba(x, params["conv2"], 1, 0)
    x = _ref_cba(x, params["conv3"], 1, 0)
    for sc in params["shortcut"]:
        shortcut = x
        y = _ref_cba(x, sc["conv1"], 1, 0)
        x = _ref_cba(y, sc["conv2"], 1, 1, residual=shortcut)
    x2 = _ref_cba(x, params["conv4"], 1, 0)
    x3 = jnp.concatenate([x2, x1], axis=-1)
    x = _ref_cba(x3, params["conv5"], 1, 0)
    return jnp.transpose(x, (0, 3, 1, 2))


if __name__ == "__main__":
    key = jax.random.PRNGKey(0)
    kx1, kp1, kx2, kp2 = jax.random.split(key, 4)

    num_layers = [1, 2, 8, 8, 4]   # darknet53-style

    # index = 1: Cin=32 -> Cout=64, one ShortcutBlock.
    x = jax.random.normal(kx1, (2, 32, 16, 16), jnp.float32)   # NCHW input
    params = init_layer_block(kp1, num_layers, 1)
    fwd = jax.jit(functools.partial(layer_block_forward, params=params))
    out = fwd(x)
    jax.block_until_ready(out)
    assert out.shape == (2, 64, 8, 8), out.shape
    ref = layer_block_ref(x, params)
    # bf16 MXU inputs (f32 accumulate/epilogue) vs f32 HIGHEST reference.
    assert jnp.allclose(out, ref, atol=5e-2, rtol=5e-2), float(
        jnp.max(jnp.abs(out - ref)))

    # index = 2: Cin=64 -> Cout=128, two ShortcutBlocks (exercises the generic path).
    x2 = jax.random.normal(kx2, (2, 64, 16, 16), jnp.float32)
    params2 = init_layer_block(kp2, num_layers, 2)
    fwd2 = jax.jit(functools.partial(layer_block_forward, params=params2))
    out2 = fwd2(x2)
    jax.block_until_ready(out2)
    assert out2.shape == (2, 128, 8, 8), out2.shape
    ref2 = layer_block_ref(x2, params2)
    assert jnp.allclose(out2, ref2, atol=5e-2, rtol=5e-2), float(
        jnp.max(jnp.abs(out2 - ref2)))

    print("KERNEL_OK")
</pallas_src>

<mosaic_0001>
module attributes {stable_mosaic.version = 11 : i64} {
  func.func @kernel(%arg0: i32, %arg1: memref<1x36x9x32xf32, #tpu.memory_space<vmem>>, %arg2: memref<9x32x64xbf16, #tpu.memory_space<vmem>>, %arg3: memref<1x64xf32, #tpu.memory_space<vmem>>, %arg4: memref<1x64xf32, #tpu.memory_space<vmem>>, %arg5: memref<1x64x64xbf16, #tpu.memory_space<vmem>>, %arg6: memref<1x64xf32, #tpu.memory_space<vmem>>, %arg7: memref<1x64xf32, #tpu.memory_space<vmem>>, %arg8: memref<1x64x64xbf16, #tpu.memory_space<vmem>>, %arg9: memref<1x64xf32, #tpu.memory_space<vmem>>, %arg10: memref<1x64xf32, #tpu.memory_space<vmem>>, %arg11: memref<1x64x32xbf16, #tpu.memory_space<vmem>>, %arg12: memref<1x32xf32, #tpu.memory_space<vmem>>, %arg13: memref<1x32xf32, #tpu.memory_space<vmem>>, %arg14: memref<9x32x64xbf16, #tpu.memory_space<vmem>>, %arg15: memref<1x64xf32, #tpu.memory_space<vmem>>, %arg16: memref<1x64xf32, #tpu.memory_space<vmem>>, %arg17: memref<1x64x64xbf16, #tpu.memory_space<vmem>>, %arg18: memref<1x64xf32, #tpu.memory_space<vmem>>, %arg19: memref<1x64xf32, #tpu.memory_space<vmem>>, %arg20: memref<1x64x64xbf16, #tpu.memory_space<vmem>>, %arg21: memref<1x64x64xbf16, #tpu.memory_space<vmem>>, %arg22: memref<1x64xf32, #tpu.memory_space<vmem>>, %arg23: memref<1x64xf32, #tpu.memory_space<vmem>>, %arg24: memref<1x64x64xf32, #tpu.memory_space<vmem>>, %arg25: memref<10x10x32xf32, #tpu.memory_space<vmem>>) attributes {dimension_semantics = [#tpu.dimension_semantics<parallel>], iteration_bounds = array<i64: 2>, scalar_prefetch = 0 : i64, scratch_operands = 1 : i64, tpu.core_type = #tpu.core_type<tc>, window_params = [{transform_indices = @transform_0, window_bounds = array<i64: 1, 36, 9, 32>}, {pipeline_mode = #tpu.pipeline_mode<synchronous>, transform_indices = @transform_1, window_bounds = array<i64: 9, 32, 64>}, {pipeline_mode = #tpu.pipeline_mode<synchronous>, transform_indices = @transform_2, window_bounds = array<i64: 1, 64>}, {pipeline_mode = #tpu.pipeline_mode<synchronous>, transform_indices = @transform_3, window_bounds = array<i64: 1, 64>}, {pipeline_mode = #tpu.pipeline_mode<synchronous>, transform_indices = @transform_4, window_bounds = array<i64: 1, 64, 64>}, {pipeline_mode = #tpu.pipeline_mode<synchronous>, transform_indices = @transform_5, window_bounds = array<i64: 1, 64>}, {pipeline_mode = #tpu.pipeline_mode<synchronous>, transform_indices = @transform_6, window_bounds = array<i64: 1, 64>}, {pipeline_mode = #tpu.pipeline_mode<synchronous>, transform_indices = @transform_7, window_bounds = array<i64: 1, 64, 64>}, {pipeline_mode = #tpu.pipeline_mode<synchronous>, transform_indices = @transform_8, window_bounds = array<i64: 1, 64>}, {pipeline_mode = #tpu.pipeline_mode<synchronous>, transform_indices = @transform_9, window_bounds = array<i64: 1, 64>}, {pipeline_mode = #tpu.pipeline_mode<synchronous>, transform_indices = @transform_10, window_bounds = array<i64: 1, 64, 32>}, {pipeline_mode = #tpu.pipeline_mode<synchronous>, transform_indices = @transform_11, window_bounds = array<i64: 1, 32>}, {pipeline_mode = #tpu.pipeline_mode<synchronous>, transform_indices = @transform_12, window_bounds = array<i64: 1, 32>}, {pipeline_mode = #tpu.pipeline_mode<synchronous>, transform_indices = @transform_13, window_bounds = array<i64: 9, 32, 64>}, {pipeline_mode = #tpu.pipeline_mode<synchronous>, transform_indices = @transform_14, window_bounds = array<i64: 1, 64>}, {pipeline_mode = #tpu.pipeline_mode<synchronous>, transform_indices = @transform_15, window_bounds = array<i64: 1, 64>}, {pipeline_mode = #tpu.pipeline_mode<synchronous>, transform_indices = @transform_16, window_bounds = array<i64: 1, 64, 64>}, {pipeline_mode = #tpu.pipeline_mode<synchronous>, transform_indices = @transform_17, window_bounds = array<i64: 1, 64>}, {pipeline_mode = #tpu.pipeline_mode<synchronous>, transform_indices = @transform_18, window_bounds = array<i64: 1, 64>}, {pipeline_mode = #tpu.pipeline_mode<synchronous>, transform_indices = @transform_19, window_bounds = array<i64: 1, 64, 64>}, {pipeline_mode = #tpu.pipeline_mode<synchronous>, transform_indices = @transform_20, window_bounds = array<i64: 1, 64, 64>}, {pipeline_mode = #tpu.pipeline_mode<synchronous>, transform_indices = @transform_21, window_bounds = array<i64: 1, 64>}, {pipeline_mode = #tpu.pipeline_mode<synchronous>, transform_indices = @transform_22, window_bounds = array<i64: 1, 64>}, {transform_indices = @transform_23, window_bounds = array<i64: 1, 64, 64>}]} {
    %cst = arith.constant 0.000000e+00 : f32
    %0 = vector.broadcast %cst : f32 to vector<64x64xf32>
    %c0 = arith.constant 0 : index
    %c0_0 = arith.constant 0 : index
    %c0_1 = arith.constant 0 : index
    %c0_2 = arith.constant 0 : index
    %1 = vector.load %arg1[%c0, %c0_0, %c0_1, %c0_2] : memref<1x36x9x32xf32, #tpu.memory_space<vmem>>, vector<1x8x8x32xf32>
    %2 = vector.shape_cast %1 : vector<1x8x8x32xf32> to vector<8x8x32xf32>
    %3 = vector.shape_cast %2 : vector<8x8x32xf32> to vector<64x32xf32>
    %4 = arith.truncf %3 : vector<64x32xf32> to vector<64x32xbf16>
    %c0_3 = arith.constant 0 : index
    %c0_4 = arith.constant 0 : index
    %c0_5 = arith.constant 0 : index
    %5 = vector.load %arg2[%c0_3, %c0_4, %c0_5] : memref<9x32x64xbf16, #tpu.memory_space<vmem>>, vector<1x32x64xbf16>
    %6 = vector.shape_cast %5 : vector<1x32x64xbf16> to vector<32x64xbf16>
    %cst_6 = arith.constant dense<0.000000e+00> : vector<64x64xf32>
    %7 = tpu.matmul %4, %6, %cst_6 {dimension_numbers = #tpu.dot_dimension_numbers<[1], [0], [0], [1], [0, 0, 1, 1], [], []>} : vector<64x32xbf16>, vector<32x64xbf16>, vector<64x64xf32> -> vector<64x64xf32>
    %8 = arith.addf %0, %7 : vector<64x64xf32>
    %c0_7 = arith.constant 0 : index
    %c9 = arith.constant 9 : index
    %c0_8 = arith.constant 0 : index
    %c0_9 = arith.constant 0 : index
    %9 = vector.load %arg1[%c0_7, %c9, %c0_8, %c0_9] : memref<1x36x9x32xf32, #tpu.memory_space<vmem>>, vector<1x8x8x32xf32>
    %10 = vector.shape_cast %9 : vector<1x8x8x32xf32> to vector<8x8x32xf32>
    %11 = vector.shape_cast %10 : vector<8x8x32xf32> to vector<64x32xf32>
    %12 = arith.truncf %11 : vector<64x32xf32> to vector<64x32xbf16>
    %c1 = arith.constant 1 : index
    %c0_10 = arith.constant 0 : index
    %c0_11 = arith.constant 0 : index
    %13 = vector.load %arg2[%c1, %c0_10, %c0_11] : memref<9x32x64xbf16, #tpu.memory_space<vmem>>, vector<1x32x64xbf16>
    %14 = vector.shape_cast %13 : vector<1x32x64xbf16> to vector<32x64xbf16>
    %cst_12 = arith.constant dense<0.000000e+00> : vector<64x64xf32>
    %15 = tpu.matmul %12, %14, %cst_12 {dimension_numbers = #tpu.dot_dimension_numbers<[1], [0], [0], [1], [0, 0, 1, 1], [], []>} : vector<64x32xbf16>, vector<32x64xbf16>, vector<64x64xf32> -> vector<64x64xf32>
    %16 = arith.addf %8, %15 : vector<64x64xf32>
    %c0_13 = arith.constant 0 : index
    %c0_14 = arith.constant 0 : index
    %c1_15 = arith.constant 1 : index
    %c0_16 = arith.constant 0 : index
    %17 = vector.load %arg1[%c0_13, %c0_14, %c1_15, %c0_16] : memref<1x36x9x32xf32, #tpu.memory_space<vmem>>, vector<1x8x8x32xf32>
    %18 = vector.shape_cast %17 : vector<1x8x8x32xf32> to vector<8x8x32xf32>
    %19 = vector.shape_cast %18 : vector<8x8x32xf32> to vector<64x32xf32>
    %20 = arith.truncf %19 : vector<64x32xf32> to vector<64x32xbf16>
    %c2 = arith.constant 2 : index
    %c0_17 = arith.constant 0 : index
    %c0_18 = arith.constant 0 : index
    %21 = vector.load %arg2[%c2, %c0_17, %c0_18] : memref<9x32x64xbf16, #tpu.memory_space<vmem>>, vector<1x32x64xbf16>
    %22 = vector.shape_cast %21 : vector<1x32x64xbf16> to vector<32x64xbf16>
    %cst_19 = arith.constant dense<0.000000e+00> : vector<64x64xf32>
    %23 = tpu.matmul %20, %22, %cst_19 {dimension_numbers = #tpu.dot_dimension_numbers<[1], [0], [0], [1], [0, 0, 1, 1], [], []>} : vector<64x32xbf16>, vector<32x64xbf16>, vector<64x64xf32> -> vector<64x64xf32>
    %24 = arith.addf %16, %23 : vector<64x64xf32>
    %c0_20 = arith.constant 0 : index
    %c18 = arith.constant 18 : index
    %c0_21 = arith.constant 0 : index
    %c0_22 = arith.constant 0 : index
    %25 = vector.load %arg1[%c0_20, %c18, %c0_21, %c0_22] : memref<1x36x9x32xf32, #tpu.memory_space<vmem>>, vector<1x8x8x32xf32>
    %26 = vector.shape_cast %25 : vector<1x8x8x32xf32> to vector<8x8x32xf32>
    %27 = vector.shape_cast %26 : vector<8x8x32xf32> to vector<64x32xf32>
    %28 = arith.truncf %27 : vector<64x32xf32> to vector<64x32xbf16>
    %c3 = arith.constant 3 : index
    %c0_23 = arith.constant 0 : index
    %c0_24 = arith.constant 0 : index
    %29 = vector.load %arg2[%c3, %c0_23, %c0_24] : memref<9x32x64xbf16, #tpu.memory_space<vmem>>, vector<1x32x64xbf16>
    %30 = vector.shape_cast %29 : vector<1x32x64xbf16> to vector<32x64xbf16>
    %cst_25 = arith.constant dense<0.000000e+00> : vector<64x64xf32>
    %31 = tpu.matmul %28, %30, %cst_25 {dimension_numbers = #tpu.dot_dimension_numbers<[1], [0], [0], [1], [0, 0, 1, 1], [], []>} : vector<64x32xbf16>, vector<32x64xbf16>, vector<64x64xf32> -> vector<64x64xf32>
    %32 = arith.addf %24, %31 : vector<64x64xf32>
    %c0_26 = arith.constant 0 : index
    %c27 = arith.constant 27 : index
    %c0_27 = arith.constant 0 : index
    %c0_28 = arith.constant 0 : index
    %33 = vector.load %arg1[%c0_26, %c27, %c0_27, %c0_28] : memref<1x36x9x32xf32, #tpu.memory_space<vmem>>, vector<1x8x8x32xf32>
    %34 = vector.shape_cast %33 : vector<1x8x8x32xf32> to vector<8x8x32xf32>
    %35 = vector.shape_cast %34 : vector<8x8x32xf32> to vector<64x32xf32>
    %36 = arith.truncf %35 : vector<64x32xf32> to vector<64x32xbf16>
    %c4 = arith.constant 4 : index
    %c0_29 = arith.constant 0 : index
    %c0_30 = arith.constant 0 : index
    %37 = vector.load %arg2[%c4, %c0_29, %c0_30] : memref<9x32x64xbf16, #tpu.memory_space<vmem>>, vector<1x32x64xbf16>
    %38 = vector.shape_cast %37 : vector<1x32x64xbf16> to vector<32x64xbf16>
    %cst_31 = arith.constant dense<0.000000e+00> : vector<64x64xf32>
    %39 = tpu.matmul %36, %38, %cst_31 {dimension_numbers = #tpu.dot_dimension_numbers<[1], [0], [0], [1], [0, 0, 1, 1], [], []>} : vector<64x32xbf16>, vector<32x64xbf16>, vector<64x64xf32> -> vector<64x64xf32>
    %40 = arith.addf %32, %39 : vector<64x64xf32>
    %c0_32 = arith.constant 0 : index
    %c18_33 = arith.constant 18 : index
    %c1_34 = arith.constant 1 : index
    %c0_35 = arith.constant 0 : index
    %41 = vector.load %arg1[%c0_32, %c18_33, %c1_34, %c0_35] : memref<1x36x9x32xf32, #tpu.memory_space<vmem>>, vector<1x8x8x32xf32>
    %42 = vector.shape_cast %41 : vector<1x8x8x32xf32> to vector<8x8x32xf32>
    %43 = vector.shape_cast %42 : vector<8x8x32xf32> to vector<64x32xf32>
    %44 = arith.truncf %43 : vector<64x32xf32> to vector<64x32xbf16>
    %c5 = arith.constant 5 : index
    %c0_36 = arith.constant 0 : index
    %c0_37 = arith.constant 0 : index
    %45 = vector.load %arg2[%c5, %c0_36, %c0_37] : memref<9x32x64xbf16, #tpu.memory_space<vmem>>, vector<1x32x64xbf16>
    %46 = vector.shape_cast %45 : vector<1x32x64xbf16> to vector<32x64xbf16>
    %cst_38 = arith.constant dense<0.000000e+00> : vector<64x64xf32>
    %47 = tpu.matmul %44, %46, %cst_38 {dimension_numbers = #tpu.dot_dimension_numbers<[1], [0], [0], [1], [0, 0, 1, 1], [], []>} : vector<64x32xbf16>, vector<32x64xbf16>, vector<64x64xf32> -> vector<64x64xf32>
    %48 = arith.addf %40, %47 : vector<64x64xf32>
    %c0_39 = arith.constant 0 : index
    %c1_40 = arith.constant 1 : index
    %c0_41 = arith.constant 0 : index
    %c0_42 = arith.constant 0 : index
    %49 = vector.load %arg1[%c0_39, %c1_40, %c0_41, %c0_42] : memref<1x36x9x32xf32, #tpu.memory_space<vmem>>, vector<1x8x8x32xf32>
    %50 = vector.shape_cast %49 : vector<1x8x8x32xf32> to vector<8x8x32xf32>
    %51 = vector.shape_cast %50 : vector<8x8x32xf32> to vector<64x32xf32>
    %52 = arith.truncf %51 : vector<64x32xf32> to vector<64x32xbf16>
    %c6 = arith.constant 6 : index
    %c0_43 = arith.constant 0 : index
    %c0_44 = arith.constant 0 : index
    %53 = vector.load %arg2[%c6, %c0_43, %c0_44] : memref<9x32x64xbf16, #tpu.memory_space<vmem>>, vector<1x32x64xbf16>
    %54 = vector.shape_cast %53 : vector<1x32x64xbf16> to vector<32x64xbf16>
    %cst_45 = arith.constant dense<0.000000e+00> : vector<64x64xf32>
    %55 = tpu.matmul %52, %54, %cst_45 {dimension_numbers = #tpu.dot_dimension_numbers<[1], [0], [0], [1], [0, 0, 1, 1], [], []>} : vector<64x32xbf16>, vector<32x64xbf16>, vector<64x64xf32> -> vector<64x64xf32>
    %56 = arith.addf %48, %55 : vector<64x64xf32>
    %c0_46 = arith.constant 0 : index
    %c10 = arith.constant 10 : index
    %c0_47 = arith.constant 0 : index
    %c0_48 = arith.constant 0 : index
    %57 = vector.load %arg1[%c0_46, %c10, %c0_47, %c0_48] : memref<1x36x9x32xf32, #tpu.memory_space<vmem>>, vector<1x8x8x32xf32>
    %58 = vector.shape_cast %57 : vector<1x8x8x32xf32> to vector<8x8x32xf32>
    %59 = vector.shape_cast %58 : vector<8x8x32xf32> to vector<64x32xf32>
    %60 = arith.truncf %59 : vector<64x32xf32> to vector<64x32xbf16>
    %c7 = arith.constant 7 : index
    %c0_49 = arith.constant 0 : index
    %c0_50 = arith.constant 0 : index
    %61 = vector.load %arg2[%c7, %c0_49, %c0_50] : memref<9x32x64xbf16, #tpu.memory_space<vmem>>, vector<1x32x64xbf16>
    %62 = vector.shape_cast %61 : vector<1x32x64xbf16> to vector<32x64xbf16>
    %cst_51 = arith.constant dense<0.000000e+00> : vector<64x64xf32>
    %63 = tpu.matmul %60, %62, %cst_51 {dimension_numbers = #tpu.dot_dimension_numbers<[1], [0], [0], [1], [0, 0, 1, 1], [], []>} : vector<64x32xbf16>, vector<32x64xbf16>, vector<64x64xf32> -> vector<64x64xf32>
    %64 = arith.addf %56, %63 : vector<64x64xf32>
    %c0_52 = arith.constant 0 : index
    %c1_53 = arith.constant 1 : index
    %c1_54 = arith.constant 1 : index
    %c0_55 = arith.constant 0 : index
    %65 = vector.load %arg1[%c0_52, %c1_53, %c1_54, %c0_55] : memref<1x36x9x32xf32, #tpu.memory_space<vmem>>, vector<1x8x8x32xf32>
    %66 = vector.shape_cast %65 : vector<1x8x8x32xf32> to vector<8x8x32xf32>
    %67 = vector.shape_cast %66 : vector<8x8x32xf32> to vector<64x32xf32>
    %68 = arith.truncf %67 : vector<64x32xf32> to vector<64x32xbf16>
    %c8 = arith.constant 8 : index
    %c0_56 = arith.constant 0 : index
    %c0_57 = arith.constant 0 : index
    %69 = vector.load %arg2[%c8, %c0_56, %c0_57] : memref<9x32x64xbf16, #tpu.memory_space<vmem>>, vector<1x32x64xbf16>
    %70 = vector.shape_cast %69 : vector<1x32x64xbf16> to vector<32x64xbf16>
    %cst_58 = arith.constant dense<0.000000e+00> : vector<64x64xf32>
    %71 = tpu.matmul %68, %70, %cst_58 {dimension_numbers = #tpu.dot_dimension_numbers<[1], [0], [0], [1], [0, 0, 1, 1], [], []>} : vector<64x32xbf16>, vector<32x64xbf16>, vector<64x64xf32> -> vector<64x64xf32>
    %72 = arith.addf %64, %71 : vector<64x64xf32>
    %c0_59 = arith.constant 0 : index
    %c0_60 = arith.constant 0 : index
    %73 = vector.load %arg3[%c0_59, %c0_60] : memref<1x64xf32, #tpu.memory_space<vmem>>, vector<1x64xf32>
    %74 = vector.broadcast %73 : vector<1x64xf32> to vector<64x64xf32>
    %75 = arith.mulf %72, %74 : vector<64x64xf32>
    %c0_61 = arith.constant 0 : index
    %c0_62 = arith.constant 0 : index
    %76 = vector.load %arg4[%c0_61, %c0_62] : memref<1x64xf32, #tpu.memory_space<vmem>>, vector<1x64xf32>
    %77 = vector.broadcast %76 : vector<1x64xf32> to vector<64x64xf32>
    %78 = arith.addf %75, %77 : vector<64x64xf32>
    %cst_63 = arith.constant 0.000000e+00 : f32
    %79 = vector.broadcast %cst_63 : f32 to vector<64x64xf32>
    %80 = arith.cmpf ogt, %78, %79 : vector<64x64xf32>
    %cst_64 = arith.constant 1.000000e-01 : f32
    %81 = vector.broadcast %cst_64 : f32 to vector<64x64xf32>
    %82 = arith.mulf %81, %78 : vector<64x64xf32>
    %83 = arith.select %80, %78, %82 : vector<64x64xi1>, vector<64x64xf32>
    %84 = arith.truncf %83 : vector<64x64xf32> to vector<64x64xbf16>
    %c0_65 = arith.constant 0 : index
    %c0_66 = arith.constant 0 : index
    %c0_67 = arith.constant 0 : index
    %85 = vector.load %arg5[%c0_65, %c0_66, %c0_67] : memref<1x64x64xbf16, #tpu.memory_space<vmem>>, vector<1x64x64xbf16>
    %86 = vector.shape_cast %85 : vector<1x64x64xbf16> to vector<64x64xbf16>
    %cst_68 = arith.constant dense<0.000000e+00> : vector<64x64xf32>
    %87 = tpu.matmul %84, %86, %cst_68 {dimension_numbers = #tpu.dot_dimension_numbers<[1], [0], [0], [1], [0, 0, 1, 1], [], []>} : vector<64x64xbf16>, vector<64x64xbf16>, vector<64x64xf32> -> vector<64x64xf32>
    %c0_69 = arith.constant 0 : index
    %c0_70 = arith.constant 0 : index
    %88 = vector.load %arg6[%c0_69, %c0_70] : memref<1x64xf32, #tpu.memory_space<vmem>>, vector<1x64xf32>
    %89 = vector.broadcast %88 : vector<1x64xf32> to vector<64x64xf32>
    %90 = arith.mulf %87, %89 : vector<64x64xf32>
    %c0_71 = arith.constant 0 : index
    %c0_72 = arith.constant 0 : index
    %91 = vector.load %arg7[%c0_71, %c0_72] : memref<1x64xf32, #tpu.memory_space<vmem>>, vector<1x64xf32>
    %92 = vector.broadcast %91 : vector<1x64xf32> to vector<64x64xf32>
    %93 = arith.addf %90, %92 : vector<64x64xf32>
    %cst_73 = arith.constant 0.000000e+00 : f32
    %94 = vector.broadcast %cst_73 : f32 to vector<64x64xf32>
    %95 = arith.cmpf ogt, %93, %94 : vector<64x64xf32>
    %cst_74 = arith.constant 1.000000e-01 : f32
    %96 = vector.broadcast %cst_74 : f32 to vector<64x64xf32>
    %97 = arith.mulf %96, %93 : vector<64x64xf32>
    %98 = arith.select %95, %93, %97 : vector<64x64xi1>, vector<64x64xf32>
    %99 = arith.truncf %83 : vector<64x64xf32> to vector<64x64xbf16>
    %c0_75 = arith.constant 0 : index
    %c0_76 = arith.constant 0 : index
    %c0_77 = arith.constant 0 : index
    %100 = vector.load %arg8[%c0_75, %c0_76, %c0_77] : memref<1x64x64xbf16, #tpu.memory_space<vmem>>, vector<1x64x64xbf16>
    %101 = vector.shape_cast %100 : vector<1x64x64xbf16> to vector<64x64xbf16>
    %cst_78 = arith.constant dense<0.000000e+00> : vector<64x64xf32>
    %102 = tpu.matmul %99, %101, %cst_78 {dimension_numbers = #tpu.dot_dimension_numbers<[1], [0], [0], [1], [0, 0, 1, 1], [], []>} : vector<64x64xbf16>, vector<64x64xbf16>, vector<64x64xf32> -> vector<64x64xf32>
    %c0_79 = arith.constant 0 : index
    %c0_80 = arith.constant 0 : index
    %103 = vector.load %arg9[%c0_79, %c0_80] : memref<1x64xf32, #tpu.memory_space<vmem>>, vector<1x64xf32>
    %104 = vector.broadcast %103 : vector<1x64xf32> to vector<64x64xf32>
    %105 = arith.mulf %102, %104 : vector<64x64xf32>
    %c0_81 = arith.constant 0 : index
    %c0_82 = arith.constant 0 : index
    %106 = vector.load %arg10[%c0_81, %c0_82] : memref<1x64xf32, #tpu.memory_space<vmem>>, vector<1x64xf32>
    %107 = vector.broadcast %106 : vector<1x64xf32> to vector<64x64xf32>
    %108 = arith.addf %105, %107 : vector<64x64xf32>
    %cst_83 = arith.constant 0.000000e+00 : f32
    %109 = vector.broadcast %cst_83 : f32 to vector<64x64xf32>
    %110 = arith.cmpf ogt, %108, %109 : vector<64x64xf32>
    %cst_84 = arith.constant 1.000000e-01 : f32
    %111 = vector.broadcast %cst_84 : f32 to vector<64x64xf32>
    %112 = arith.mulf %111, %108 : vector<64x64xf32>
    %113 = arith.select %110, %108, %112 : vector<64x64xi1>, vector<64x64xf32>
    %114 = arith.truncf %113 : vector<64x64xf32> to vector<64x64xbf16>
    %c0_85 = arith.constant 0 : index
    %c0_86 = arith.constant 0 : index
    %c0_87 = arith.constant 0 : index
    %115 = vector.load %arg11[%c0_85, %c0_86, %c0_87] : memref<1x64x32xbf16, #tpu.memory_space<vmem>>, vector<1x64x32xbf16>
    %116 = vector.shape_cast %115 : vector<1x64x32xbf16> to vector<64x32xbf16>
    %cst_88 = arith.constant dense<0.000000e+00> : vector<64x32xf32>
    %117 = tpu.matmul %114, %116, %cst_88 {dimension_numbers = #tpu.dot_dimension_numbers<[1], [0], [0], [1], [0, 0, 1, 1], [], []>} : vector<64x64xbf16>, vector<64x32xbf16>, vector<64x32xf32> -> vector<64x32xf32>
    %c0_89 = arith.constant 0 : index
    %c0_90 = arith.constant 0 : index
    %118 = vector.load %arg12[%c0_89, %c0_90] : memref<1x32xf32, #tpu.memory_space<vmem>>, vector<1x32xf32>
    %119 = vector.broadcast %118 : vector<1x32xf32> to vector<64x32xf32>
    %120 = arith.mulf %117, %119 : vector<64x32xf32>
    %c0_91 = arith.constant 0 : index
    %c0_92 = arith.constant 0 : index
    %121 = vector.load %arg13[%c0_91, %c0_92] : memref<1x32xf32, #tpu.memory_space<vmem>>, vector<1x32xf32>
    %122 = vector.broadcast %121 : vector<1x32xf32> to vector<64x32xf32>
    %123 = arith.addf %120, %122 : vector<64x32xf32>
    %cst_93 = arith.constant 0.000000e+00 : f32
    %124 = vector.broadcast %cst_93 : f32 to vector<64x32xf32>
    %125 = arith.cmpf ogt, %123, %124 : vector<64x32xf32>
    %cst_94 = arith.constant 1.000000e-01 : f32
    %126 = vector.broadcast %cst_94 : f32 to vector<64x32xf32>
    %127 = arith.mulf %126, %123 : vector<64x32xf32>
    %128 = arith.select %125, %123, %127 : vector<64x32xi1>, vector<64x32xf32>
    %cst_95 = arith.constant 0.000000e+00 : f32
    %129 = vector.broadcast %cst_95 : f32 to vector<10x10x32xf32>
    %c0_96 = arith.constant 0 : index
    %c0_97 = arith.constant 0 : index
    %c0_98 = arith.constant 0 : index
    %130 = vector.load %arg25[%c0_96, %c0_97, %c0_98] : memref<10x10x32xf32, #tpu.memory_space<vmem>>, vector<10x10x32xf32>
    tpu.vector_store %arg25[%c0_96, %c0_97, %c0_98], %129 {strides = array<i32>} : memref<10x10x32xf32, #tpu.memory_space<vmem>>, vector<10x10x32xf32>,
    %131 = vector.shape_cast %128 : vector<64x32xf32> to vector<8x8x32xf32>
    %c1_99 = arith.constant 1 : index
    %c1_100 = arith.constant 1 : index
    %c0_101 = arith.constant 0 : index
    %132 = vector.load %arg25[%c1_99, %c1_100, %c0_101] : memref<10x10x32xf32, #tpu.memory_space<vmem>>, vector<8x8x32xf32>
    tpu.vector_store %arg25[%c1_99, %c1_100, %c0_101], %131 {strides = array<i32>} : memref<10x10x32xf32, #tpu.memory_space<vmem>>, vector<8x8x32xf32>,
    %cst_102 = arith.constant 0.000000e+00 : f32
    %133 = vector.broadcast %cst_102 : f32 to vector<64x64xf32>
    %c0_103 = arith.constant 0 : index
    %c0_104 = arith.constant 0 : index
    %c0_105 = arith.constant 0 : index
    %134 = vector.load %arg25[%c0_103, %c0_104, %c0_105] : memref<10x10x32xf32, #tpu.memory_space<vmem>>, vector<8x8x32xf32>
    %135 = vector.shape_cast %134 : vector<8x8x32xf32> to vector<64x32xf32>
    %136 = arith.truncf %135 : vector<64x32xf32> to vector<64x32xbf16>
    %c0_106 = arith.constant 0 : index
    %c0_107 = arith.constant 0 : index
    %c0_108 = arith.constant 0 : index
    %137 = vector.load %arg14[%c0_106, %c0_107, %c0_108] : memref<9x32x64xbf16, #tpu.memory_space<vmem>>, vector<1x32x64xbf16>
    %138 = vector.shape_cast %137 : vector<1x32x64xbf16> to vector<32x64xbf16>
    %cst_109 = arith.constant dense<0.000000e+00> : vector<64x64xf32>
    %139 = tpu.matmul %136, %138, %cst_109 {dimension_numbers = #tpu.dot_dimension_numbers<[1], [0], [0], [1], [0, 0, 1, 1], [], []>} : vector<64x32xbf16>, vector<32x64xbf16>, vector<64x64xf32> -> vector<64x64xf32>
    %140 = arith.addf %133, %139 : vector<64x64xf32>
    %c0_110 = arith.constant 0 : index
    %c1_111 = arith.constant 1 : index
    %c0_112 = arith.constant 0 : index
    %141 = vector.load %arg25[%c0_110, %c1_111, %c0_112] : memref<10x10x32xf32, #tpu.memory_space<vmem>>, vector<8x8x32xf32>
    %142 = vector.shape_cast %141 : vector<8x8x32xf32> to vector<64x32xf32>
    %143 = arith.truncf %142 : vector<64x32xf32> to vector<64x32xbf16>
    %c1_113 = arith.constant 1 : index
    %c0_114 = arith.constant 0 : index
    %c0_115 = arith.constant 0 : index
    %144 = vector.load %arg14[%c1_113, %c0_114, %c0_115] : memref<9x32x64xbf16, #tpu.memory_space<vmem>>, vector<1x32x64xbf16>
    %145 = vector.shape_cast %144 : vector<1x32x64xbf16> to vector<32x64xbf16>
    %cst_116 = arith.constant dense<0.000000e+00> : vector<64x64xf32>
    %146 = tpu.matmul %143, %145, %cst_116 {dimension_numbers = #tpu.dot_dimension_numbers<[1], [0], [0], [1], [0, 0, 1, 1], [], []>} : vector<64x32xbf16>, vector<32x64xbf16>, vector<64x64xf32> -> vector<64x64xf32>
    %147 = arith.addf %140, %146 : vector<64x64xf32>
    %c0_117 = arith.constant 0 : index
    %c2_118 = arith.constant 2 : index
    %c0_119 = arith.constant 0 : index
    %148 = vector.load %arg25[%c0_117, %c2_118, %c0_119] : memref<10x10x32xf32, #tpu.memory_space<vmem>>, vector<8x8x32xf32>
    %149 = vector.shape_cast %148 : vector<8x8x32xf32> to vector<64x32xf32>
    %150 = arith.truncf %149 : vector<64x32xf32> to vector<64x32xbf16>
    %c2_120 = arith.constant 2 : index
    %c0_121 = arith.constant 0 : index
    %c0_122 = arith.constant 0 : index
    %151 = vector.load %arg14[%c2_120, %c0_121, %c0_122] : memref<9x32x64xbf16, #tpu.memory_space<vmem>>, vector<1x32x64xbf16>
    %152 = vector.shape_cast %151 : vector<1x32x64xbf16> to vector<32x64xbf16>
    %cst_123 = arith.constant dense<0.000000e+00> : vector<64x64xf32>
    %153 = tpu.matmul %150, %152, %cst_123 {dimension_numbers = #tpu.dot_dimension_numbers<[1], [0], [0], [1], [0, 0, 1, 1], [], []>} : vector<64x32xbf16>, vector<32x64xbf16>, vector<64x64xf32> -> vector<64x64xf32>
    %154 = arith.addf %147, %153 : vector<64x64xf32>
    %c1_124 = arith.constant 1 : index
    %c0_125 = arith.constant 0 : index
    %c0_126 = arith.constant 0 : index
    %155 = vector.load %arg25[%c1_124, %c0_125, %c0_126] : memref<10x10x32xf32, #tpu.memory_space<vmem>>, vector<8x8x32xf32>
    %156 = vector.shape_cast %155 : vector<8x8x32xf32> to vector<64x32xf32>
    %157 = arith.truncf %156 : vector<64x32xf32> to vector<64x32xbf16>
    %c3_127 = arith.constant 3 : index
    %c0_128 = arith.constant 0 : index
    %c0_129 = arith.constant 0 : index
    %158 = vector.load %arg14[%c3_127, %c0_128, %c0_129] : memref<9x32x64xbf16, #tpu.memory_space<vmem>>, vector<1x32x64xbf16>
    %159 = vector.shape_cast %158 : vector<1x32x64xbf16> to vector<32x64xbf16>
    %cst_130 = arith.constant dense<0.000000e+00> : vector<64x64xf32>
    %160 = tpu.matmul %157, %159, %cst_130 {dimension_numbers = #tpu.dot_dimension_numbers<[1], [0], [0], [1], [0, 0, 1, 1], [], []>} : vector<64x32xbf16>, vector<32x64xbf16>, vector<64x64xf32> -> vector<64x64xf32>
    %161 = arith.addf %154, %160 : vector<64x64xf32>
    %c1_131 = arith.constant 1 : index
    %c1_132 = arith.constant 1 : index
    %c0_133 = arith.constant 0 : index
    %162 = vector.load %arg25[%c1_131, %c1_132, %c0_133] : memref<10x10x32xf32, #tpu.memory_space<vmem>>, vector<8x8x32xf32>
    %163 = vector.shape_cast %162 : vector<8x8x32xf32> to vector<64x32xf32>
    %164 = arith.truncf %163 : vector<64x32xf32> to vector<64x32xbf16>
    %c4_134 = arith.constant 4 : index
    %c0_135 = arith.constant 0 : index
    %c0_136 = arith.constant 0 : index
    %165 = vector.load %arg14[%c4_134, %c0_135, %c0_136] : memref<9x32x64xbf16, #tpu.memory_space<vmem>>, vector<1x32x64xbf16>
    %166 = vector.shape_cast %165 : vector<1x32x64xbf16> to vector<32x64xbf16>
    %cst_137 = arith.constant dense<0.000000e+00> : vector<64x64xf32>
    %167 = tpu.matmul %164, %166, %cst_137 {dimension_numbers = #tpu.dot_dimension_numbers<[1], [0], [0], [1], [0, 0, 1, 1], [], []>} : vector<64x32xbf16>, vector<32x64xbf16>, vector<64x64xf32> -> vector<64x64xf32>
    %168 = arith.addf %161, %167 : vector<64x64xf32>
    %c1_138 = arith.constant 1 : index
    %c2_139 = arith.constant 2 : index
    %c0_140 = arith.constant 0 : index
    %169 = vector.load %arg25[%c1_138, %c2_139, %c0_140] : memref<10x10x32xf32, #tpu.memory_space<vmem>>, vector<8x8x32xf32>
    %170 = vector.shape_cast %169 : vector<8x8x32xf32> to vector<64x32xf32>
    %171 = arith.truncf %170 : vector<64x32xf32> to vector<64x32xbf16>
    %c5_141 = arith.constant 5 : index
    %c0_142 = arith.constant 0 : index
    %c0_143 = arith.constant 0 : index
    %172 = vector.load %arg14[%c5_141, %c0_142, %c0_143] : memref<9x32x64xbf16, #tpu.memory_space<vmem>>, vector<1x32x64xbf16>
    %173 = vector.shape_cast %172 : vector<1x32x64xbf16> to vector<32x64xbf16>
    %cst_144 = arith.constant dense<0.000000e+00> : vector<64x64xf32>
    %174 = tpu.matmul %171, %173, %cst_144 {dimension_numbers = #tpu.dot_dimension_numbers<[1], [0], [0], [1], [0, 0, 1, 1], [], []>} : vector<64x32xbf16>, vector<32x64xbf16>, vector<64x64xf32> -> vector<64x64xf32>
    %175 = arith.addf %168, %174 : vector<64x64xf32>
    %c2_145 = arith.constant 2 : index
    %c0_146 = arith.constant 0 : index
    %c0_147 = arith.constant 0 : index
    %176 = vector.load %arg25[%c2_145, %c0_146, %c0_147] : memref<10x10x32xf32, #tpu.memory_space<vmem>>, vector<8x8x32xf32>
    %177 = vector.shape_cast %176 : vector<8x8x32xf32> to vector<64x32xf32>
    %178 = arith.truncf %177 : vector<64x32xf32> to vector<64x32xbf16>
    %c6_148 = arith.constant 6 : index
    %c0_149 = arith.constant 0 : index
    %c0_150 = arith.constant 0 : index
    %179 = vector.load %arg14[%c6_148, %c0_149, %c0_150] : memref<9x32x64xbf16, #tpu.memory_space<vmem>>, vector<1x32x64xbf16>
    %180 = vector.shape_cast %179 : vector<1x32x64xbf16> to vector<32x64xbf16>
    %cst_151 = arith.constant dense<0.000000e+00> : vector<64x64xf32>
    %181 = tpu.matmul %178, %180, %cst_151 {dimension_numbers = #tpu.dot_dimension_numbers<[1], [0], [0], [1], [0, 0, 1, 1], [], []>} : vector<64x32xbf16>, vector<32x64xbf16>, vector<64x64xf32> -> vector<64x64xf32>
    %182 = arith.addf %175, %181 : vector<64x64xf32>
    %c2_152 = arith.constant 2 : index
    %c1_153 = arith.constant 1 : index
    %c0_154 = arith.constant 0 : index
    %183 = vector.load %arg25[%c2_152, %c1_153, %c0_154] : memref<10x10x32xf32, #tpu.memory_space<vmem>>, vector<8x8x32xf32>
    %184 = vector.shape_cast %183 : vector<8x8x32xf32> to vector<64x32xf32>
    %185 = arith.truncf %184 : vector<64x32xf32> to vector<64x32xbf16>
    %c7_155 = arith.constant 7 : index
    %c0_156 = arith.constant 0 : index
    %c0_157 = arith.constant 0 : index
    %186 = vector.load %arg14[%c7_155, %c0_156, %c0_157] : memref<9x32x64xbf16, #tpu.memory_space<vmem>>, vector<1x32x64xbf16>
    %187 = vector.shape_cast %186 : vector<1x32x64xbf16> to vector<32x64xbf16>
    %cst_158 = arith.constant dense<0.000000e+00> : vector<64x64xf32>
    %188 = tpu.matmul %185, %187, %cst_158 {dimension_numbers = #tpu.dot_dimension_numbers<[1], [0], [0], [1], [0, 0, 1, 1], [], []>} : vector<64x32xbf16>, vector<32x64xbf16>, vector<64x64xf32> -> vector<64x64xf32>
    %189 = arith.addf %182, %188 : vector<64x64xf32>
    %c2_159 = arith.constant 2 : index
    %c2_160 = arith.constant 2 : index
    %c0_161 = arith.constant 0 : index
    %190 = vector.load %arg25[%c2_159, %c2_160, %c0_161] : memref<10x10x32xf32, #tpu.memory_space<vmem>>, vector<8x8x32xf32>
    %191 = vector.shape_cast %190 : vector<8x8x32xf32> to vector<64x32xf32>
    %192 = arith.truncf %191 : vector<64x32xf32> to vector<64x32xbf16>
    %c8_162 = arith.constant 8 : index
    %c0_163 = arith.constant 0 : index
    %c0_164 = arith.constant 0 : index
    %193 = vector.load %arg14[%c8_162, %c0_163, %c0_164] : memref<9x32x64xbf16, #tpu.memory_space<vmem>>, vector<1x32x64xbf16>
    %194 = vector.shape_cast %193 : vector<1x32x64xbf16> to vector<32x64xbf16>
    %cst_165 = arith.constant dense<0.000000e+00> : vector<64x64xf32>
    %195 = tpu.matmul %192, %194, %cst_165 {dimension_numbers = #tpu.dot_dimension_numbers<[1], [0], [0], [1], [0, 0, 1, 1], [], []>} : vector<64x32xbf16>, vector<32x64xbf16>, vector<64x64xf32> -> vector<64x64xf32>
    %196 = arith.addf %189, %195 : vector<64x64xf32>
    %c0_166 = arith.constant 0 : index
    %c0_167 = arith.constant 0 : index
    %197 = vector.load %arg15[%c0_166, %c0_167] : memref<1x64xf32, #tpu.memory_space<vmem>>, vector<1x64xf32>
    %198 = vector.broadcast %197 : vector<1x64xf32> to vector<64x64xf32>
    %199 = arith.mulf %196, %198 : vector<64x64xf32>
    %c0_168 = arith.constant 0 : index
    %c0_169 = arith.constant 0 : index
    %200 = vector.load %arg16[%c0_168, %c0_169] : memref<1x64xf32, #tpu.memory_space<vmem>>, vector<1x64xf32>
    %201 = vector.broadcast %200 : vector<1x64xf32> to vector<64x64xf32>
    %202 = arith.addf %199, %201 : vector<64x64xf32>
    %cst_170 = arith.constant 0.000000e+00 : f32
    %203 = vector.broadcast %cst_170 : f32 to vector<64x64xf32>
    %204 = arith.cmpf ogt, %202, %203 : vector<64x64xf32>
    %cst_171 = arith.constant 1.000000e-01 : f32
    %205 = vector.broadcast %cst_171 : f32 to vector<64x64xf32>
    %206 = arith.mulf %205, %202 : vector<64x64xf32>
    %207 = arith.select %204, %202, %206 : vector<64x64xi1>, vector<64x64xf32>
    %208 = arith.addf %207, %113 : vector<64x64xf32>
    %209 = arith.truncf %208 : vector<64x64xf32> to vector<64x64xbf16>
    %c0_172 = arith.constant 0 : index
    %c0_173 = arith.constant 0 : index
    %c0_174 = arith.constant 0 : index
    %210 = vector.load %arg17[%c0_172, %c0_173, %c0_174] : memref<1x64x64xbf16, #tpu.memory_space<vmem>>, vector<1x64x64xbf16>
    %211 = vector.shape_cast %210 : vector<1x64x64xbf16> to vector<64x64xbf16>
    %cst_175 = arith.constant dense<0.000000e+00> : vector<64x64xf32>
    %212 = tpu.matmul %209, %211, %cst_175 {dimension_numbers = #tpu.dot_dimension_numbers<[1], [0], [0], [1], [0, 0, 1, 1], [], []>} : vector<64x64xbf16>, vector<64x64xbf16>, vector<64x64xf32> -> vector<64x64xf32>
    %c0_176 = arith.constant 0 : index
    %c0_177 = arith.constant 0 : index
    %213 = vector.load %arg18[%c0_176, %c0_177] : memref<1x64xf32, #tpu.memory_space<vmem>>, vector<1x64xf32>
    %214 = vector.broadcast %213 : vector<1x64xf32> to vector<64x64xf32>
    %215 = arith.mulf %212, %214 : vector<64x64xf32>
    %c0_178 = arith.constant 0 : index
    %c0_179 = arith.constant 0 : index
    %216 = vector.load %arg19[%c0_178, %c0_179] : memref<1x64xf32, #tpu.memory_space<vmem>>, vector<1x64xf32>
    %217 = vector.broadcast %216 : vector<1x64xf32> to vector<64x64xf32>
    %218 = arith.addf %215, %217 : vector<64x64xf32>
    %cst_180 = arith.constant 0.000000e+00 : f32
    %219 = vector.broadcast %cst_180 : f32 to vector<64x64xf32>
    %220 = arith.cmpf ogt, %218, %219 : vector<64x64xf32>
    %cst_181 = arith.constant 1.000000e-01 : f32
    %221 = vector.broadcast %cst_181 : f32 to vector<64x64xf32>
    %222 = arith.mulf %221, %218 : vector<64x64xf32>
    %223 = arith.select %220, %218, %222 : vector<64x64xi1>, vector<64x64xf32>
    %224 = arith.truncf %223 : vector<64x64xf32> to vector<64x64xbf16>
    %c0_182 = arith.constant 0 : index
    %c0_183 = arith.constant 0 : index
    %c0_184 = arith.constant 0 : index
    %225 = vector.load %arg20[%c0_182, %c0_183, %c0_184] : memref<1x64x64xbf16, #tpu.memory_space<vmem>>, vector<1x64x64xbf16>
    %226 = vector.shape_cast %225 : vector<1x64x64xbf16> to vector<64x64xbf16>
    %cst_185 = arith.constant dense<0.000000e+00> : vector<64x64xf32>
    %227 = tpu.matmul %224, %226, %cst_185 {dimension_numbers = #tpu.dot_dimension_numbers<[1], [0], [0], [1], [0, 0, 1, 1], [], []>} : vector<64x64xbf16>, vector<64x64xbf16>, vector<64x64xf32> -> vector<64x64xf32>
    %228 = arith.truncf %98 : vector<64x64xf32> to vector<64x64xbf16>
    %c0_186 = arith.constant 0 : index
    %c0_187 = arith.constant 0 : index
    %c0_188 = arith.constant 0 : index
    %229 = vector.load %arg21[%c0_186, %c0_187, %c0_188] : memref<1x64x64xbf16, #tpu.memory_space<vmem>>, vector<1x64x64xbf16>
    %230 = vector.shape_cast %229 : vector<1x64x64xbf16> to vector<64x64xbf16>
    %cst_189 = arith.constant dense<0.000000e+00> : vector<64x64xf32>
    %231 = tpu.matmul %228, %230, %cst_189 {dimension_numbers = #tpu.dot_dimension_numbers<[1], [0], [0], [1], [0, 0, 1, 1], [], []>} : vector<64x64xbf16>, vector<64x64xbf16>, vector<64x64xf32> -> vector<64x64xf32>
    %232 = arith.addf %227, %231 : vector<64x64xf32>
    %c0_190 = arith.constant 0 : index
    %c0_191 = arith.constant 0 : index
    %233 = vector.load %arg22[%c0_190, %c0_191] : memref<1x64xf32, #tpu.memory_space<vmem>>, vector<1x64xf32>
    %234 = vector.broadcast %233 : vector<1x64xf32> to vector<64x64xf32>
    %235 = arith.mulf %232, %234 : vector<64x64xf32>
    %c0_192 = arith.constant 0 : index
    %c0_193 = arith.constant 0 : index
    %236 = vector.load %arg23[%c0_192, %c0_193] : memref<1x64xf32, #tpu.memory_space<vmem>>, vector<1x64xf32>
    %237 = vector.broadcast %236 : vector<1x64xf32> to vector<64x64xf32>
    %238 = arith.addf %235, %237 : vector<64x64xf32>
    %cst_194 = arith.constant 0.000000e+00 : f32
    %239 = vector.broadcast %cst_194 : f32 to vector<64x64xf32>
    %240 = arith.cmpf ogt, %238, %239 : vector<64x64xf32>
    %cst_195 = arith.constant 1.000000e-01 : f32
    %241 = vector.broadcast %cst_195 : f32 to vector<64x64xf32>
    %242 = arith.mulf %241, %238 : vector<64x64xf32>
    %243 = arith.select %240, %238, %242 : vector<64x64xi1>, vector<64x64xf32>
    %c0_196 = arith.constant 0 : index
    %c0_197 = arith.constant 0 : index
    %c0_198 = arith.constant 0 : index
    %244 = vector.load %arg24[%c0_196, %c0_197, %c0_198] : memref<1x64x64xf32, #tpu.memory_space<vmem>>, vector<1x64x64xf32>
    %245 = vector.shape_cast %244 : vector<1x64x64xf32> to vector<64x64xf32>
    %246 = vector.shape_cast %243 : vector<64x64xf32> to vector<1x64x64xf32>
    tpu.vector_store %arg24[%c0_196, %c0_197, %c0_198], %246 {strides = array<i32>} : memref<1x64x64xf32, #tpu.memory_space<vmem>>, vector<1x64x64xf32>,
    return
  }
  func.func @transform_0(%arg0: i32) -> (i32, i32, i32, i32) {
    %c0_i32 = arith.constant 0 : i32
    %c0_i32_0 = arith.constant 0 : i32
    %c0_i32_1 = arith.constant 0 : i32
    %c0_i32_2 = arith.constant 0 : i32
    return %arg0, %c0_i32, %c0_i32_0, %c0_i32_1 : i32, i32, i32, i32
  }
  func.func @transform_1(%arg0: i32) -> (i32, i32, i32) {
    %c0_i32 = arith.constant 0 : i32
    %c0_i32_0 = arith.constant 0 : i32
    %c0_i32_1 = arith.constant 0 : i32
    %c0_i32_2 = arith.constant 0 : i32
    return %c0_i32, %c0_i32_0, %c0_i32_1 : i32, i32, i32
  }
  func.func @transform_2(%arg0: i32) -> (i32, i32) {
    %c0_i32 = arith.constant 0 : i32
    %c0_i32_0 = arith.constant 0 : i32
    %c0_i32_1 = arith.constant 0 : i32
    return %c0_i32, %c0_i32_0 : i32, i32
  }
  func.func @transform_3(%arg0: i32) -> (i32, i32) {
    %c0_i32 = arith.constant 0 : i32
    %c0_i32_0 = arith.constant 0 : i32
    %c0_i32_1 = arith.constant 0 : i32
    return %c0_i32, %c0_i32_0 : i32, i32
  }
  func.func @transform_4(%arg0: i32) -> (i32, i32, i32) {
    %c0_i32 = arith.constant 0 : i32
    %c0_i32_0 = arith.constant 0 : i32
    %c0_i32_1 = arith.constant 0 : i32
    %c0_i32_2 = arith.constant 0 : i32
    return %c0_i32, %c0_i32_0, %c0_i32_1 : i32, i32, i32
  }
  func.func @transform_5(%arg0: i32) -> (i32, i32) {
    %c0_i32 = arith.constant 0 : i32
    %c0_i32_0 = arith.constant 0 : i32
    %c0_i32_1 = arith.constant 0 : i32
    return %c0_i32, %c0_i32_0 : i32, i32
  }
  func.func @transform_6(%arg0: i32) -> (i32, i32) {
    %c0_i32 = arith.constant 0 : i32
    %c0_i32_0 = arith.constant 0 : i32
    %c0_i32_1 = arith.constant 0 : i32
    return %c0_i32, %c0_i32_0 : i32, i32
  }
  func.func @transform_7(%arg0: i32) -> (i32, i32, i32) {
    %c0_i32 = arith.constant 0 : i32
    %c0_i32_0 = arith.constant 0 : i32
    %c0_i32_1 = arith.constant 0 : i32
    %c0_i32_2 = arith.constant 0 : i32
    return %c0_i32, %c0_i32_0, %c0_i32_1 : i32, i32, i32
  }
  func.func @transform_8(%arg0: i32) -> (i32, i32) {
    %c0_i32 = arith.constant 0 : i32
    %c0_i32_0 = arith.constant 0 : i32
    %c0_i32_1 = arith.constant 0 : i32
    return %c0_i32, %c0_i32_0 : i32, i32
  }
  func.func @transform_9(%arg0: i32) -> (i32, i32) {
    %c0_i32 = arith.constant 0 : i32
    %c0_i32_0 = arith.constant 0 : i32
    %c0_i32_1 = arith.constant 0 : i32
    return %c0_i32, %c0_i32_0 : i32, i32
  }
  func.func @transform_10(%arg0: i32) -> (i32, i32, i32) {
    %c0_i32 = arith.constant 0 : i32
    %c0_i32_0 = arith.constant 0 : i32
    %c0_i32_1 = arith.constant 0 : i32
    %c0_i32_2 = arith.constant 0 : i32
    return %c0_i32, %c0_i32_0, %c0_i32_1 : i32, i32, i32
  }
  func.func @transform_11(%arg0: i32) -> (i32, i32) {
    %c0_i32 = arith.constant 0 : i32
    %c0_i32_0 = arith.constant 0 : i32
    %c0_i32_1 = arith.constant 0 : i32
    return %c0_i32, %c0_i32_0 : i32, i32
  }
  func.func @transform_12(%arg0: i32) -> (i32, i32) {
    %c0_i32 = arith.constant 0 : i32
    %c0_i32_0 = arith.constant 0 : i32
    %c0_i32_1 = arith.constant 0 : i32
    return %c0_i32, %c0_i32_0 : i32, i32
  }
  func.func @transform_13(%arg0: i32) -> (i32, i32, i32) {
    %c0_i32 = arith.constant 0 : i32
    %c0_i32_0 = arith.constant 0 : i32
    %c0_i32_1 = arith.constant 0 : i32
    %c0_i32_2 = arith.constant 0 : i32
    return %c0_i32, %c0_i32_0, %c0_i32_1 : i32, i32, i32
  }
  func.func @transform_14(%arg0: i32) -> (i32, i32) {
    %c0_i32 = arith.constant 0 : i32
    %c0_i32_0 = arith.constant 0 : i32
    %c0_i32_1 = arith.constant 0 : i32
    return %c0_i32, %c0_i32_0 : i32, i32
  }
  func.func @transform_15(%arg0: i32) -> (i32, i32) {
    %c0_i32 = arith.constant 0 : i32
    %c0_i32_0 = arith.constant 0 : i32
    %c0_i32_1 = arith.constant 0 : i32
    return %c0_i32, %c0_i32_0 : i32, i32
  }
  func.func @transform_16(%arg0: i32) -> (i32, i32, i32) {
    %c0_i32 = arith.constant 0 : i32
    %c0_i32_0 = arith.constant 0 : i32
    %c0_i32_1 = arith.constant 0 : i32
    %c0_i32_2 = arith.constant 0 : i32
    return %c0_i32, %c0_i32_0, %c0_i32_1 : i32, i32, i32
  }
  func.func @transform_17(%arg0: i32) -> (i32, i32) {
    %c0_i32 = arith.constant 0 : i32
    %c0_i32_0 = arith.constant 0 : i32
    %c0_i32_1 = arith.constant 0 : i32
    return %c0_i32, %c0_i32_0 : i32, i32
  }
  func.func @transform_18(%arg0: i32) -> (i32, i32) {
    %c0_i32 = arith.constant 0 : i32
    %c0_i32_0 = arith.constant 0 : i32
    %c0_i32_1 = arith.constant 0 : i32
    return %c0_i32, %c0_i32_0 : i32, i32
  }
  func.func @transform_19(%arg0: i32) -> (i32, i32, i32) {
    %c0_i32 = arith.constant 0 : i32
    %c0_i32_0 = arith.constant 0 : i32
    %c0_i32_1 = arith.constant 0 : i32
    %c0_i32_2 = arith.constant 0 : i32
    return %c0_i32, %c0_i32_0, %c0_i32_1 : i32, i32, i32
  }
  func.func @transform_20(%arg0: i32) -> (i32, i32, i32) {
    %c0_i32 = arith.constant 0 : i32
    %c0_i32_0 = arith.constant 0 : i32
    %c0_i32_1 = arith.constant 0 : i32
    %c0_i32_2 = arith.constant 0 : i32
    return %c0_i32, %c0_i32_0, %c0_i32_1 : i32, i32, i32
  }
  func.func @transform_21(%arg0: i32) -> (i32, i32) {
    %c0_i32 = arith.constant 0 : i32
    %c0_i32_0 = arith.constant 0 : i32
    %c0_i32_1 = arith.constant 0 : i32
    return %c0_i32, %c0_i32_0 : i32, i32
  }
  func.func @transform_22(%arg0: i32) -> (i32, i32) {
    %c0_i32 = arith.constant 0 : i32
    %c0_i32_0 = arith.constant 0 : i32
    %c0_i32_1 = arith.constant 0 : i32
    return %c0_i32, %c0_i32_0 : i32, i32
  }
  func.func @transform_23(%arg0: i32) -> (i32, i32, i32) {
    %c0_i32 = arith.constant 0 : i32
    %c0_i32_0 = arith.constant 0 : i32
    %c0_i32_1 = arith.constant 0 : i32
    return %arg0, %c0_i32, %c0_i32_0 : i32, i32, i32
  }
}

</mosaic_0001>

<llo_original>
// kernel: layer_block_forward.1
$region0: #{layer_block_forward.1}
  #allocation0 [shape = 'u32[]', space=smem, size = 0x4, offset = 0x4, fixed_abs, tag = 'smem constant byte address 0x4 - core index']
  #allocation1 [shape = 'u32[144,128]{1,0:T(1,128)}', space=vmem, size = 0x12000, scoped, tag = 'internal scratch']
  #allocation2 [shape = 'f32[10,10,32]{2,1,0:T(8,128)}', space=vmem, size = 0x14000, scoped, tag = 'scratch operand']
  %s0 = inlined_call_operand.vmem [shape: f32[2,36,9,32], index: 0, kind: input, shape index: {}]
  %s1 = inlined_call_operand.vmem [shape: bf16[9,32,64], index: 1, kind: input, shape index: {}]
  %s2 = inlined_call_operand.vmem [shape: f32[1,64], index: 2, kind: input, shape index: {}]
  %s3 = inlined_call_operand.vmem [shape: f32[1,64], index: 3, kind: input, shape index: {}]
  %s4 = inlined_call_operand.vmem [shape: bf16[1,64,64], index: 4, kind: input, shape index: {}]
  %s5 = inlined_call_operand.vmem [shape: f32[1,64], index: 5, kind: input, shape index: {}]
  %s6 = inlined_call_operand.vmem [shape: f32[1,64], index: 6, kind: input, shape index: {}]
  %s7 = inlined_call_operand.vmem [shape: bf16[1,64,64], index: 7, kind: input, shape index: {}]
  %s8 = inlined_call_operand.vmem [shape: f32[1,64], index: 8, kind: input, shape index: {}]
  %s9 = inlined_call_operand.vmem [shape: f32[1,64], index: 9, kind: input, shape index: {}]
  %s10 = inlined_call_operand.vmem [shape: bf16[1,64,32], index: 10, kind: input, shape index: {}]
  %s11 = inlined_call_operand.vmem [shape: f32[1,32], index: 11, kind: input, shape index: {}]
  %s12 = inlined_call_operand.vmem [shape: f32[1,32], index: 12, kind: input, shape index: {}]
  %s13 = inlined_call_operand.vmem [shape: bf16[9,32,64], index: 13, kind: input, shape index: {}]
  %s14 = inlined_call_operand.vmem [shape: f32[1,64], index: 14, kind: input, shape index: {}]
  %s15 = inlined_call_operand.vmem [shape: f32[1,64], index: 15, kind: input, shape index: {}]
  %s16 = inlined_call_operand.vmem [shape: bf16[1,64,64], index: 16, kind: input, shape index: {}]
  %s17 = inlined_call_operand.vmem [shape: f32[1,64], index: 17, kind: input, shape index: {}]
  %s18 = inlined_call_operand.vmem [shape: f32[1,64], index: 18, kind: input, shape index: {}]
  %s19 = inlined_call_operand.vmem [shape: bf16[1,64,64], index: 19, kind: input, shape index: {}]
  %s20 = inlined_call_operand.vmem [shape: bf16[1,64,64], index: 20, kind: input, shape index: {}]
  %s21 = inlined_call_operand.vmem [shape: f32[1,64], index: 21, kind: input, shape index: {}]
  %s22 = inlined_call_operand.vmem [shape: f32[1,64], index: 22, kind: input, shape index: {}]
  %s23 = inlined_call_operand.hbm [shape: f32[2,64,64], index: 23, kind: output, shape index: {}]
  %s24 = sld [smem:[#allocation0]]
  $region125: #{layer_block_forward.1} parent=0
    _
  %s26 = ssub.s32 1, %s24
  %s27 = scalar_select 0, %s26, %s24
  $region1: #{layer_block_forward.1} parent=0
    #allocation3 [shape = 'u8[65536]{0}', space=vmem, size = 0x10000, scoped, tag = 'output window, operand 0']
    #allocation4 [shape = 's32[2]{0}', space=sflag, size = 0x8, scoped, tag = 'scoped memory for layer_block_forward.1']
    %28 = vsyncpa [#allocation4], 0
    %s29 = scalar_lea.sflag [#allocation4], 1
    %30 = vsyncpa %s29, 0
    loop: start=0, step=1, limit=4
    $region2: #{layer_block_forward.1} parent=1 // loop_pre_header
      _
    $region3: #{layer_block_forward.1} parent=1 // loop_header
      %s32 = sphi 0, %s36
      %p33 = scmp.ge.s32.totalorder %s32, 4
      %s42 = sphi 0, %s44
      %s45 = sphi 0, %s42
      %s46 = sphi 0, %s45
      %s62 = sphi 0, %s46
      %s66 = sphi 0, %s66
      %s68 = sphi 0, %s66
      %s69 = sphi 0, %s68
      %s83 = sphi 0, %s69
      %s87 = sphi 0, %s87
      %s89 = sphi 0, %s87
      %s90 = sphi 0, %s89
      %s104 = sphi 0, %s90
      %s108 = sphi 0, %s108
      %s110 = sphi 0, %s108
      %s111 = sphi 0, %s110
      %s125 = sphi 0, %s111
      %s129 = sphi 0, %s129
      %s131 = sphi 0, %s129
      %s132 = sphi 0, %s131
      %s146 = sphi 0, %s132
      %s150 = sphi 0, %s150
      %s152 = sphi 0, %s150
      %s153 = sphi 0, %s152
      %s167 = sphi 0, %s153
      %s171 = sphi 0, %s171
      %s173 = sphi 0, %s171
      %s174 = sphi 0, %s173
      %s188 = sphi 0, %s174
      %s192 = sphi 0, %s192
      %s194 = sphi 0, %s192
      %s195 = sphi 0, %s194
      %s209 = sphi 0, %s195
      %s213 = sphi 0, %s213
      %s215 = sphi 0, %s213
      %s216 = sphi 0, %s215
      %s230 = sphi 0, %s216
      %s234 = sphi 0, %s234
      %s236 = sphi 0, %s234
      %s237 = sphi 0, %s236
      %s251 = sphi 0, %s237
      %s255 = sphi 0, %s255
      %s257 = sphi 0, %s255
      %s258 = sphi 0, %s257
      %s272 = sphi 0, %s258
      %s276 = sphi 0, %s276
      %s278 = sphi 0, %s276
      %s279 = sphi 0, %s278
      %s293 = sphi 0, %s279
      %s297 = sphi 0, %s297
      %s299 = sphi 0, %s297
      %s300 = sphi 0, %s299
      %s314 = sphi 0, %s300
      %s318 = sphi 0, %s318
      %s320 = sphi 0, %s318
      %s321 = sphi 0, %s320
      %s335 = sphi 0, %s321
      %s339 = sphi 0, %s339
      %s341 = sphi 0, %s339
      %s342 = sphi 0, %s341
      %s356 = sphi 0, %s342
      %s360 = sphi 0, %s360
      %s362 = sphi 0, %s360
      %s363 = sphi 0, %s362
      %s377 = sphi 0, %s363
      %s381 = sphi 0, %s381
      %s383 = sphi 0, %s381
      %s384 = sphi 0, %s383
      %s398 = sphi 0, %s384
      %s402 = sphi 0, %s402
      %s404 = sphi 0, %s402
      %s405 = sphi 0, %s404
      %s419 = sphi 0, %s405
      %s423 = sphi 0, %s423
      %s425 = sphi 0, %s423
      %s426 = sphi 0, %s425
      %s440 = sphi 0, %s426
      %s444 = sphi 0, %s444
      %s446 = sphi 0, %s444
      %s447 = sphi 0, %s446
      %s461 = sphi 0, %s447
      %s465 = sphi 0, %s465
      %s467 = sphi 0, %s465
      %s468 = sphi 0, %s467
      %s482 = sphi 0, %s468
      %s486 = sphi 0, %s486
      %s488 = sphi 0, %s486
      %s489 = sphi 0, %s488
      %s503 = sphi 0, %s489
      %s507 = sphi 0, %s507
      %s509 = sphi 0, %s507
      %s510 = sphi 0, %s509
      %s524 = sphi 0, %s510
      %s530 = sphi 0, %s532
      %s533 = sphi 0, %s530
      %s534 = sphi 0, %s533
      %s550 = sphi 0, %s534
    $region4: #{layer_block_forward.1} parent=1 // loop_header_branch
      %35 = sbr.rel (%p33) target = $region8
    $region5: #{layer_block_forward.1} parent=1 // loop_body
      %s37 = ssub.s32 %s32, 1
      %s38 = ssub.s32 %s32, 2
      %s39 = sadd.s32 %s32, 1
      %s40 = ssub.s32 %s32, %s39
      %p41 = scmp.eq.s32.totalorder %s40, 0
      %s43 = sadd.s32 %s42, 1
      %s44 = scalar_select %p41, %s42, %s43
      %p47 = pneg %p41
      %p48 = scmp.eq.s32.totalorder %s32, 1
      %p49 = por %p47, %p48
      %p50 = scmp.ne.s32.totalorder %s42, %s45
      %p51 = scmp.eq.s32.totalorder %s32, 0
      %p52 = por %p50, %p51
      %p53 = scmp.ne.s32.totalorder %s42, %s45
      %p54 = scmp.eq.s32.totalorder %s37, 1
      %p55 = por %p53, %p54
      %p56 = scmp.ne.s32.totalorder %s45, %s46
      %p57 = scmp.eq.s32.totalorder %s37, 0
      %p58 = por %p56, %p57
      %p59 = scmp.ne.s32.totalorder %s45, %s46
      %p60 = scmp.eq.s32.totalorder %s38, 1
      %p61 = por %p59, %p60
      %p63 = scmp.ne.s32.totalorder %s46, %s62
      %p64 = scmp.eq.s32.totalorder %s38, 0
      %p65 = por %p63, %p64
      %s67 = sadd.s32 %s66, 1
      %p70 = scmp.eq.s32.totalorder %s32, 1
      %p71 = scmp.ne.s32.totalorder %s66, %s68
      %p72 = scmp.eq.s32.totalorder %s32, 0
      %p73 = por %p71, %p72
      %p74 = scmp.ne.s32.totalorder %s66, %s68
      %p75 = scmp.eq.s32.totalorder %s37, 1
      %p76 = por %p74, %p75
      %p77 = scmp.ne.s32.totalorder %s68, %s69
      %p78 = scmp.eq.s32.totalorder %s37, 0
      %p79 = por %p77, %p78
      %p80 = scmp.ne.s32.totalorder %s68, %s69
      %p81 = scmp.eq.s32.totalorder %s38, 1
      %p82 = por %p80, %p81
      %p84 = scmp.ne.s32.totalorder %s69, %s83
      %p85 = scmp.eq.s32.totalorder %s38, 0
      %p86 = por %p84, %p85
      %s88 = sadd.s32 %s87, 1
      %p91 = scmp.eq.s32.totalorder %s32, 1
      %p92 = scmp.ne.s32.totalorder %s87, %s89
      %p93 = scmp.eq.s32.totalorder %s32, 0
      %p94 = por %p92, %p93
      %p95 = scmp.ne.s32.totalorder %s87, %s89
      %p96 = scmp.eq.s32.totalorder %s37, 1
      %p97 = por %p95, %p96
      %p98 = scmp.ne.s32.totalorder %s89, %s90
      %p99 = scmp.eq.s32.totalorder %s37, 0
      %p100 = por %p98, %p99
      %p101 = scmp.ne.s32.totalorder %s89, %s90
      %p102 = scmp.eq.s32.totalorder %s38, 1
      %p103 = por %p101, %p102
      %p105 = scmp.ne.s32.totalorder %s90, %s104
      %p106 = scmp.eq.s32.totalorder %s38, 0
      %p107 = por %p105, %p106
      %s109 = sadd.s32 %s108, 1
      %p112 = scmp.eq.s32.totalorder %s32, 1
      %p113 = scmp.ne.s32.totalorder %s108, %s110
      %p114 = scmp.eq.s32.totalorder %s32, 0
      %p115 = por %p113, %p114
      %p116 = scmp.ne.s32.totalorder %s108, %s110
      %p117 = scmp.eq.s32.totalorder %s37, 1
      %p118 = por %p116, %p117
      %p119 = scmp.ne.s32.totalorder %s110, %s111
      %p120 = scmp.eq.s32.totalorder %s37, 0
      %p121 = por %p119, %p120
      %p122 = scmp.ne.s32.totalorder %s110, %s111
      %p123 = scmp.eq.s32.totalorder %s38, 1
      %p124 = por %p122, %p123
      %p126 = scmp.ne.s32.totalorder %s111, %s125
      %p127 = scmp.eq.s32.totalorder %s38, 0
      %p128 = por %p126, %p127
      %s130 = sadd.s32 %s129, 1
      %p133 = scmp.eq.s32.totalorder %s32, 1
      %p134 = scmp.ne.s32.totalorder %s129, %s131
      %p135 = scmp.eq.s32.totalorder %s32, 0
      %p136 = por %p134, %p135
      %p137 = scmp.ne.s32.totalorder %s129, %s131
      %p138 = scmp.eq.s32.totalorder %s37, 1
      %p139 = por %p137, %p138
      %p140 = scmp.ne.s32.totalorder %s131, %s132
      %p141 = scmp.eq.s32.totalorder %s37, 0
      %p142 = por %p140, %p141
      %p143 = scmp.ne.s32.totalorder %s131, %s132
      %p144 = scmp.eq.s32.totalorder %s38, 1
      %p145 = por %p143, %p144
      %p147 = scmp.ne.s32.totalorder %s132, %s146
      %p148 = scmp.eq.s32.totalorder %s38, 0
      %p149 = por %p147, %p148
      %s151 = sadd.s32 %s150, 1
      %p154 = scmp.eq.s32.totalorder %s32, 1
      %p155 = scmp.ne.s32.totalorder %s150, %s152
      %p156 = scmp.eq.s32.totalorder %s32, 0
      %p157 = por %p155, %p156
      %p158 = scmp.ne.s32.totalorder %s150, %s152
      %p159 = scmp.eq.s32.totalorder %s37, 1
      %p160 = por %p158, %p159
      %p161 = scmp.ne.s32.totalorder %s152, %s153
      %p162 = scmp.eq.s32.totalorder %s37, 0
      %p163 = por %p161, %p162
      %p164 = scmp.ne.s32.totalorder %s152, %s153
      %p165 = scmp.eq.s32.totalorder %s38, 1
      %p166 = por %p164, %p165
      %p168 = scmp.ne.s32.totalorder %s153, %s167
      %p169 = scmp.eq.s32.totalorder %s38, 0
      %p170 = por %p168, %p169
      %s172 = sadd.s32 %s171, 1
      %p175 = scmp.eq.s32.totalorder %s32, 1
      %p176 = scmp.ne.s32.totalorder %s171, %s173
      %p177 = scmp.eq.s32.totalorder %s32, 0
      %p178 = por %p176, %p177
      %p179 = scmp.ne.s32.totalorder %s171, %s173
      %p180 = scmp.eq.s32.totalorder %s37, 1
      %p181 = por %p179, %p180
      %p182 = scmp.ne.s32.totalorder %s173, %s174
      %p183 = scmp.eq.s32.totalorder %s37, 0
      %p184 = por %p182, %p183
      %p185 = scmp.ne.s32.totalorder %s173, %s174
      %p186 = scmp.eq.s32.totalorder %s38, 1
      %p187 = por %p185, %p186
      %p189 = scmp.ne.s32.totalorder %s174, %s188
      %p190 = scmp.eq.s32.totalorder %s38, 0
      %p191 = por %p189, %p190
      %s193 = sadd.s32 %s192, 1
      %p196 = scmp.eq.s32.totalorder %s32, 1
      %p197 = scmp.ne.s32.totalorder %s192, %s194
      %p198 = scmp.eq.s32.totalorder %s32, 0
      %p199 = por %p197, %p198
      %p200 = scmp.ne.s32.totalorder %s192, %s194
      %p201 = scmp.eq.s32.totalorder %s37, 1
      %p202 = por %p200, %p201
      %p203 = scmp.ne.s32.totalorder %s194, %s195
      %p204 = scmp.eq.s32.totalorder %s37, 0
      %p205 = por %p203, %p204
      %p206 = scmp.ne.s32.totalorder %s194, %s195
      %p207 = scmp.eq.s32.totalorder %s38, 1
      %p208 = por %p206, %p207
      %p210 = scmp.ne.s32.totalorder %s195, %s209
      %p211 = scmp.eq.s32.totalorder %s38, 0
      %p212 = por %p210, %p211
      %s214 = sadd.s32 %s213, 1
      %p217 = scmp.eq.s32.totalorder %s32, 1
      %p218 = scmp.ne.s32.totalorder %s213, %s215
      %p219 = scmp.eq.s32.totalorder %s32, 0
      %p220 = por %p218, %p219
      %p221 = scmp.ne.s32.totalorder %s213, %s215
      %p222 = scmp.eq.s32.totalorder %s37, 1
      %p223 = por %p221, %p222
      %p224 = scmp.ne.s32.totalorder %s215, %s216
      %p225 = scmp.eq.s32.totalorder %s37, 0
      %p226 = por %p224, %p225
      %p227 = scmp.ne.s32.totalorder %s215, %s216
      %p228 = scmp.eq.s32.totalorder %s38, 1
      %p229 = por %p227, %p228
      %p231 = scmp.ne.s32.totalorder %s216, %s230
      %p232 = scmp.eq.s32.totalorder %s38, 0
      %p233 = por %p231, %p232
      %s235 = sadd.s32 %s234, 1
      %p238 = scmp.eq.s32.totalorder %s32, 1
      %p239 = scmp.ne.s32.totalorder %s234, %s236
      %p240 = scmp.eq.s32.totalorder %s32, 0
      %p241 = por %p239, %p240
      %p242 = scmp.ne.s32.totalorder %s234, %s236
      %p243 = scmp.eq.s32.totalorder %s37, 1
      %p244 = por %p242, %p243
      %p245 = scmp.ne.s32.totalorder %s236, %s237
      %p246 = scmp.eq.s32.totalorder %s37, 0
      %p247 = por %p245, %p246
      %p248 = scmp.ne.s32.totalorder %s236, %s237
      %p249 = scmp.eq.s32.totalorder %s38, 1
      %p250 = por %p248, %p249
      %p252 = scmp.ne.s32.totalorder %s237, %s251
      %p253 = scmp.eq.s32.totalorder %s38, 0
      %p254 = por %p252, %p253
      %s256 = sadd.s32 %s255, 1
      %p259 = scmp.eq.s32.totalorder %s32, 1
      %p260 = scmp.ne.s32.totalorder %s255, %s257
      %p261 = scmp.eq.s32.totalorder %s32, 0
      %p262 = por %p260, %p261
      %p263 = scmp.ne.s32.totalorder %s255, %s257
      %p264 = scmp.eq.s32.totalorder %s37, 1
      %p265 = por %p263, %p264
      %p266 = scmp.ne.s32.totalorder %s257, %s258
      %p267 = scmp.eq.s32.totalorder %s37, 0
      %p268 = por %p266, %p267
      %p269 = scmp.ne.s32.totalorder %s257, %s258
      %p270 = scmp.eq.s32.totalorder %s38, 1
      %p271 = por %p269, %p270
      %p273 = scmp.ne.s32.totalorder %s258, %s272
      %p274 = scmp.eq.s32.totalorder %s38, 0
      %p275 = por %p273, %p274
      %s277 = sadd.s32 %s276, 1
      %p280 = scmp.eq.s32.totalorder %s32, 1
      %p281 = scmp.ne.s32.totalorder %s276, %s278
      %p282 = scmp.eq.s32.totalorder %s32, 0
      %p283 = por %p281, %p282
      %p284 = scmp.ne.s32.totalorder %s276, %s278
      %p285 = scmp.eq.s32.totalorder %s37, 1
      %p286 = por %p284, %p285
      %p287 = scmp.ne.s32.totalorder %s278, %s279
      %p288 = scmp.eq.s32.totalorder %s37, 0
      %p289 = por %p287, %p288
      %p290 = scmp.ne.s32.totalorder %s278, %s279
      %p291 = scmp.eq.s32.totalorder %s38, 1
      %p292 = por %p290, %p291
      %p294 = scmp.ne.s32.totalorder %s279, %s293
      %p295 = scmp.eq.s32.totalorder %s38, 0
      %p296 = por %p294, %p295
      %s298 = sadd.s32 %s297, 1
      %p301 = scmp.eq.s32.totalorder %s32, 1
      %p302 = scmp.ne.s32.totalorder %s297, %s299
      %p303 = scmp.eq.s32.totalorder %s32, 0
      %p304 = por %p302, %p303
      %p305 = scmp.ne.s32.totalorder %s297, %s299
      %p306 = scmp.eq.s32.totalorder %s37, 1
      %p307 = por %p305, %p306
      %p308 = scmp.ne.s32.totalorder %s299, %s300
      %p309 = scmp.eq.s32.totalorder %s37, 0
      %p310 = por %p308, %p309
      %p311 = scmp.ne.s32.totalorder %s299, %s300
      %p312 = scmp.eq.s32.totalorder %s38, 1
      %p313 = por %p311, %p312
      %p315 = scmp.ne.s32.totalorder %s300, %s314
      %p316 = scmp.eq.s32.totalorder %s38, 0
      %p317 = por %p315, %p316
      %s319 = sadd.s32 %s318, 1
      %p322 = scmp.eq.s32.totalorder %s32, 1
      %p323 = scmp.ne.s32.totalorder %s318, %s320
      %p324 = scmp.eq.s32.totalorder %s32, 0
      %p325 = por %p323, %p324
      %p326 = scmp.ne.s32.totalorder %s318, %s320
      %p327 = scmp.eq.s32.totalorder %s37, 1
      %p328 = por %p326, %p327
      %p329 = scmp.ne.s32.totalorder %s320, %s321
      %p330 = scmp.eq.s32.totalorder %s37, 0
      %p331 = por %p329, %p330
      %p332 = scmp.ne.s32.totalorder %s320, %s321
      %p333 = scmp.eq.s32.totalorder %s38, 1
      %p334 = por %p332, %p333
      %p336 = scmp.ne.s32.totalorder %s321, %s335
      %p337 = scmp.eq.s32.totalorder %s38, 0
      %p338 = por %p336, %p337
      %s340 = sadd.s32 %s339, 1
      %p343 = scmp.eq.s32.totalorder %s32, 1
      %p344 = scmp.ne.s32.totalorder %s339, %s341
      %p345 = scmp.eq.s32.totalorder %s32, 0
      %p346 = por %p344, %p345
      %p347 = scmp.ne.s32.totalorder %s339, %s341
      %p348 = scmp.eq.s32.totalorder %s37, 1
      %p349 = por %p347, %p348
      %p350 = scmp.ne.s32.totalorder %s341, %s342
      %p351 = scmp.eq.s32.totalorder %s37, 0
      %p352 = por %p350, %p351
      %p353 = scmp.ne.s32.totalorder %s341, %s342
      %p354 = scmp.eq.s32.totalorder %s38, 1
      %p355 = por %p353, %p354
      %p357 = scmp.ne.s32.totalorder %s342, %s356
      %p358 = scmp.eq.s32.totalorder %s38, 0
      %p359 = por %p357, %p358
      %s361 = sadd.s32 %s360, 1
      %p364 = scmp.eq.s32.totalorder %s32, 1
      %p365 = scmp.ne.s32.totalorder %s360, %s362
      %p366 = scmp.eq.s32.totalorder %s32, 0
      %p367 = por %p365, %p366
      %p368 = scmp.ne.s32.totalorder %s360, %s362
      %p369 = scmp.eq.s32.totalorder %s37, 1
      %p370 = por %p368, %p369
      %p371 = scmp.ne.s32.totalorder %s362, %s363
      %p372 = scmp.eq.s32.totalorder %s37, 0
      %p373 = por %p371, %p372
      %p374 = scmp.ne.s32.totalorder %s362, %s363
      %p375 = scmp.eq.s32.totalorder %s38, 1
      %p376 = por %p374, %p375
      %p378 = scmp.ne.s32.totalorder %s363, %s377
      %p379 = scmp.eq.s32.totalorder %s38, 0
      %p380 = por %p378, %p379
      %s382 = sadd.s32 %s381, 1
      %p385 = scmp.eq.s32.totalorder %s32, 1
      %p386 = scmp.ne.s32.totalorder %s381, %s383
      %p387 = scmp.eq.s32.totalorder %s32, 0
      %p388 = por %p386, %p387
      %p389 = scmp.ne.s32.totalorder %s381, %s383
      %p390 = scmp.eq.s32.totalorder %s37, 1
      %p391 = por %p389, %p390
      %p392 = scmp.ne.s32.totalorder %s383, %s384
      %p393 = scmp.eq.s32.totalorder %s37, 0
      %p394 = por %p392, %p393
      %p395 = scmp.ne.s32.totalorder %s383, %s384
      %p396 = scmp.eq.s32.totalorder %s38, 1
      %p397 = por %p395, %p396
      %p399 = scmp.ne.s32.totalorder %s384, %s398
      %p400 = scmp.eq.s32.totalorder %s38, 0
      %p401 = por %p399, %p400
      %s403 = sadd.s32 %s402, 1
      %p406 = scmp.eq.s32.totalorder %s32, 1
      %p407 = scmp.ne.s32.totalorder %s402, %s404
      %p408 = scmp.eq.s32.totalorder %s32, 0
      %p409 = por %p407, %p408
      %p410 = scmp.ne.s32.totalorder %s402, %s404
      %p411 = scmp.eq.s32.totalorder %s37, 1
      %p412 = por %p410, %p411
      %p413 = scmp.ne.s32.totalorder %s404, %s405
      %p414 = scmp.eq.s32.totalorder %s37, 0
      %p415 = por %p413, %p414
      %p416 = scmp.ne.s32.totalorder %s404, %s405
      %p417 = scmp.eq.s32.totalorder %s38, 1
      %p418 = por %p416, %p417
      %p420 = scmp.ne.s32.totalorder %s405, %s419
      %p421 = scmp.eq.s32.totalorder %s38, 0
      %p422 = por %p420, %p421
      %s424 = sadd.s32 %s423, 1
      %p427 = scmp.eq.s32.totalorder %s32, 1
      %p428 = scmp.ne.s32.totalorder %s423, %s425
      %p429 = scmp.eq.s32.totalorder %s32, 0
      %p430 = por %p428, %p429
      %p431 = scmp.ne.s32.totalorder %s423, %s425
      %p432 = scmp.eq.s32.totalorder %s37, 1
      %p433 = por %p431, %p432
      %p434 = scmp.ne.s32.totalorder %s425, %s426
      %p435 = scmp.eq.s32.totalorder %s37, 0
      %p436 = por %p434, %p435
      %p437 = scmp.ne.s32.totalorder %s425, %s426
      %p438 = scmp.eq.s32.totalorder %s38, 1
      %p439 = por %p437, %p438
      %p441 = scmp.ne.s32.totalorder %s426, %s440
      %p442 = scmp.eq.s32.totalorder %s38, 0
      %p443 = por %p441, %p442
      %s445 = sadd.s32 %s444, 1
      %p448 = scmp.eq.s32.totalorder %s32, 1
      %p449 = scmp.ne.s32.totalorder %s444, %s446
      %p450 = scmp.eq.s32.totalorder %s32, 0
      %p451 = por %p449, %p450
      %p452 = scmp.ne.s32.totalorder %s444, %s446
      %p453 = scmp.eq.s32.totalorder %s37, 1
      %p454 = por %p452, %p453
      %p455 = scmp.ne.s32.totalorder %s446, %s447
      %p456 = scmp.eq.s32.totalorder %s37, 0
      %p457 = por %p455, %p456
      %p458 = scmp.ne.s32.totalorder %s446, %s447
      %p459 = scmp.eq.s32.totalorder %s38, 1
      %p460 = por %p458, %p459
      %p462 = scmp.ne.s32.totalorder %s447, %s461
      %p463 = scmp.eq.s32.totalorder %s38, 0
      %p464 = por %p462, %p463
      %s466 = sadd.s32 %s465, 1
      %p469 = scmp.eq.s32.totalorder %s32, 1
      %p470 = scmp.ne.s32.totalorder %s465, %s467
      %p471 = scmp.eq.s32.totalorder %s32, 0
      %p472 = por %p470, %p471
      %p473 = scmp.ne.s32.totalorder %s465, %s467
      %p474 = scmp.eq.s32.totalorder %s37, 1
      %p475 = por %p473, %p474
      %p476 = scmp.ne.s32.totalorder %s467, %s468
      %p477 = scmp.eq.s32.totalorder %s37, 0
      %p478 = por %p476, %p477
      %p479 = scmp.ne.s32.totalorder %s467, %s468
      %p480 = scmp.eq.s32.totalorder %s38, 1
      %p481 = por %p479, %p480
      %p483 = scmp.ne.s32.totalorder %s468, %s482
      %p484 = scmp.eq.s32.totalorder %s38, 0
      %p485 = por %p483, %p484
      %s487 = sadd.s32 %s486, 1
      %p490 = scmp.eq.s32.totalorder %s32, 1
      %p491 = scmp.ne.s32.totalorder %s486, %s488
      %p492 = scmp.eq.s32.totalorder %s32, 0
      %p493 = por %p491, %p492
      %p494 = scmp.ne.s32.totalorder %s486, %s488
      %p495 = scmp.eq.s32.totalorder %s37, 1
      %p496 = por %p494, %p495
      %p497 = scmp.ne.s32.totalorder %s488, %s489
      %p498 = scmp.eq.s32.totalorder %s37, 0
      %p499 = por %p497, %p498
      %p500 = scmp.ne.s32.totalorder %s488, %s489
      %p501 = scmp.eq.s32.totalorder %s38, 1
      %p502 = por %p500, %p501
      %p504 = scmp.ne.s32.totalorder %s489, %s503
      %p505 = scmp.eq.s32.totalorder %s38, 0
      %p506 = por %p504, %p505
      %s508 = sadd.s32 %s507, 1
      %p511 = scmp.eq.s32.totalorder %s32, 1
      %p512 = scmp.ne.s32.totalorder %s507, %s509
      %p513 = scmp.eq.s32.totalorder %s32, 0
      %p514 = por %p512, %p513
      %p515 = scmp.ne.s32.totalorder %s507, %s509
      %p516 = scmp.eq.s32.totalorder %s37, 1
      %p517 = por %p515, %p516
      %p518 = scmp.ne.s32.totalorder %s509, %s510
      %p519 = scmp.eq.s32.totalorder %s37, 0
      %p520 = por %p518, %p519
      %p521 = scmp.ne.s32.totalorder %s509, %s510
      %p522 = scmp.eq.s32.totalorder %s38, 1
      %p523 = por %p521, %p522
      %p525 = scmp.ne.s32.totalorder %s510, %s524
      %p526 = scmp.eq.s32.totalorder %s38, 0
      %p527 = por %p525, %p526
      %s528 = ssub.s32 %s32, %s39
      %p529 = scmp.eq.s32.totalorder %s528, 0
      %s531 = sadd.s32 %s530, 1
      %s532 = scalar_select %p529, %s530, %s531
      %p535 = pneg %p529
      %p536 = scmp.eq.s32.totalorder %s32, 1
      %p537 = por %p535, %p536
      %p538 = scmp.ne.s32.totalorder %s530, %s533
      %p539 = scmp.eq.s32.totalorder %s32, 0
      %p540 = por %p538, %p539
      %p541 = scmp.ne.s32.totalorder %s530, %s533
      %p542 = scmp.eq.s32.totalorder %s37, 1
      %p543 = por %p541, %p542
      %p544 = scmp.ne.s32.totalorder %s533, %s534
      %p545 = scmp.eq.s32.totalorder %s37, 0
      %p546 = por %p544, %p545
      %p547 = scmp.ne.s32.totalorder %s533, %s534
      %p548 = scmp.eq.s32.totalorder %s38, 1
      %p549 = por %p547, %p548
      %p551 = scmp.ne.s32.totalorder %s534, %s550
      %p552 = scmp.eq.s32.totalorder %s38, 0
      %p553 = por %p551, %p552
      %p554 = scmp.le.s32.totalorder 1, %s32
      %p555 = scmp.lt.s32.totalorder %s32, 3
      %p556 = pnand %p554, %p555
      %p557 = pneg %p556
      // Predicated region
      $region9: #{layer_block_forward.1} parent=5 // pred_check
        _
      $region10: #{layer_block_forward.1} parent=5 // pred_check_branch
        %559 = sbr.rel (%p556) target = $region12
      $region11: #{layer_block_forward.1} parent=5 // pred_region
        %s560 = ssub.s32 %s32, 1
        // Predicated region
        $region13: #{layer_block_forward.1} parent=11 // pred_check
          %p561 = pneg %p79
        $region14: #{layer_block_forward.1} parent=11 // pred_check_branch
          %563 = sbr.rel (%p561) target = $region16
        $region15: #{layer_block_forward.1} parent=11 // pred_region
          _
        $region16: #{layer_block_forward.1} parent=11 // pred_fallthru
          _
        // Predicated region
        $region17: #{layer_block_forward.1} parent=11 // pred_check
          %p564 = pneg %p100
        $region18: #{layer_block_forward.1} parent=11 // pred_check_branch
          %566 = sbr.rel (%p564) target = $region20
        $region19: #{layer_block_forward.1} parent=11 // pred_region
          _
        $region20: #{layer_block_forward.1} parent=11 // pred_fallthru
          _
        // Predicated region
        $region21: #{layer_block_forward.1} parent=11 // pred_check
          %p567 = pneg %p121
        $region22: #{layer_block_forward.1} parent=11 // pred_check_branch
          %569 = sbr.rel (%p567) target = $region24
        $region23: #{layer_block_forward.1} parent=11 // pred_region
          _
        $region24: #{layer_block_forward.1} parent=11 // pred_fallthru
          _
        // Predicated region
        $region25: #{layer_block_forward.1} parent=11 // pred_check
          %p570 = pneg %p142
        $region26: #{layer_block_forward.1} parent=11 // pred_check_branch
          %572 = sbr.rel (%p570) target = $region28
        $region27: #{layer_block_forward.1} parent=11 // pred_region
          _
        $region28: #{layer_block_forward.1} parent=11 // pred_fallthru
          _
        // Predicated region
        $region29: #{layer_block_forward.1} parent=11 // pred_check
          %p573 = pneg %p163
        $region30: #{layer_block_forward.1} parent=11 // pred_check_branch
          %575 = sbr.rel (%p573) target = $region32
        $region31: #{layer_block_forward.1} parent=11 // pred_region
          _
        $region32: #{layer_block_forward.1} parent=11 // pred_fallthru
          _
        // Predicated region
        $region33: #{layer_block_forward.1} parent=11 // pred_check
          %p576 = pneg %p184
        $region34: #{layer_block_forward.1} parent=11 // pred_check_branch
          %578 = sbr.rel (%p576) target = $region36
        $region35: #{layer_block_forward.1} parent=11 // pred_region
          _
        $region36: #{layer_block_forward.1} parent=11 // pred_fallthru
          _
        // Predicated region
        $region37: #{layer_block_forward.1} parent=11 // pred_check
          %p579 = pneg %p205
        $region38: #{layer_block_forward.1} parent=11 // pred_check_branch
          %581 = sbr.rel (%p579) target = $region40
        $region39: #{layer_block_forward.1} parent=11 // pred_region
          _
        $region40: #{layer_block_forward.1} parent=11 // pred_fallthru
          _
        // Predicated region
        $region41: #{layer_block_forward.1} parent=11 // pred_check
          %p582 = pneg %p226
        $region42: #{layer_block_forward.1} parent=11 // pred_check_branch
          %584 = sbr.rel (%p582) target = $region44
        $region43: #{layer_block_forward.1} parent=11 // pred_region
          _
        $region44: #{layer_block_forward.1} parent=11 // pred_fallthru
          _
        // Predicated region
        $region45: #{layer_block_forward.1} parent=11 // pred_check
          %p585 = pneg %p247
        $region46: #{layer_block_forward.1} parent=11 // pred_check_branch
          %587 = sbr.rel (%p585) target = $region48
        $region47: #{layer_block_forward.1} parent=11 // pred_region
          _
        $region48: #{layer_block_forward.1} parent=11 // pred_fallthru
          _
        // Predicated region
        $region49: #{layer_block_forward.1} parent=11 // pred_check
          %p588 = pneg %p268
        $region50: #{layer_block_forward.1} parent=11 // pred_check_branch
          %590 = sbr.rel (%p588) target = $region52
        $region51: #{layer_block_forward.1} parent=11 // pred_region
          _
        $region52: #{layer_block_forward.1} parent=11 // pred_fallthru
          _
        // Predicated region
        $region53: #{layer_block_forward.1} parent=11 // pred_check
          %p591 = pneg %p289
        $region54: #{layer_block_forward.1} parent=11 // pred_check_branch
          %593 = sbr.rel (%p591) target = $region56
        $region55: #{layer_block_forward.1} parent=11 // pred_region
          _
        $region56: #{layer_block_forward.1} parent=11 // pred_fallthru
          _
        // Predicated region
        $region57: #{layer_block_forward.1} parent=11 // pred_check
          %p594 = pneg %p310
        $region58: #{layer_block_forward.1} parent=11 // pred_check_branch
          %596 = sbr.rel (%p594) target = $region60
        $region59: #{layer_block_forward.1} parent=11 // pred_region
          _
        $region60: #{layer_block_forward.1} parent=11 // pred_fallthru
          _
        // Predicated region
        $region61: #{layer_block_forward.1} parent=11 // pred_check
          %p597 = pneg %p331
        $region62: #{layer_block_forward.1} parent=11 // pred_check_branch
          %599 = sbr.rel (%p597) target = $region64
        $region63: #{layer_block_forward.1} parent=11 // pred_region
          _
        $region64: #{layer_block_forward.1} parent=11 // pred_fallthru
          _
        // Predicated region
        $region65: #{layer_block_forward.1} parent=11 // pred_check
          %p600 = pneg %p352
        $region66: #{layer_block_forward.1} parent=11 // pred_check_branch
          %602 = sbr.rel (%p600) target = $region68
        $region67: #{layer_block_forward.1} parent=11 // pred_region
          _
        $region68: #{layer_block_forward.1} parent=11 // pred_fallthru
          _
        // Predicated region
        $region69: #{layer_block_forward.1} parent=11 // pred_check
          %p603 = pneg %p373
        $region70: #{layer_block_forward.1} parent=11 // pred_check_branch
          %605 = sbr.rel (%p603) target = $region72
        $region71: #{layer_block_forward.1} parent=11 // pred_region
          _
        $region72: #{layer_block_forward.1} parent=11 // pred_fallthru
          _
        // Predicated region
        $region73: #{layer_block_forward.1} parent=11 // pred_check
          %p606 = pneg %p394
        $region74: #{layer_block_forward.1} parent=11 // pred_check_branch
          %608 = sbr.rel (%p606) target = $region76
        $region75: #{layer_block_forward.1} parent=11 // pred_region
          _
        $region76: #{layer_block_forward.1} parent=11 // pred_fallthru
          _
        // Predicated region
        $region77: #{layer_block_forward.1} parent=11 // pred_check
          %p609 = pneg %p415
        $region78: #{layer_block_forward.1} parent=11 // pred_check_branch
          %611 = sbr.rel (%p609) target = $region80
        $region79: #{layer_block_forward.1} parent=11 // pred_region
          _
        $region80: #{layer_block_forward.1} parent=11 // pred_fallthru
          _
        // Predicated region
        $region81: #{layer_block_forward.1} parent=11 // pred_check
          %p612 = pneg %p436
        $region82: #{layer_block_forward.1} parent=11 // pred_check_branch
          %614 = sbr.rel (%p612) target = $region84
        $region83: #{layer_block_forward.1} parent=11 // pred_region
          _
        $region84: #{layer_block_forward.1} parent=11 // pred_fallthru
          _
        // Predicated region
        $region85: #{layer_block_forward.1} parent=11 // pred_check
          %p615 = pneg %p457
        $region86: #{layer_block_forward.1} parent=11 // pred_check_branch
          %617 = sbr.rel (%p615) target = $region88
        $region87: #{layer_block_forward.1} parent=11 // pred_region
          _
        $region88: #{layer_block_forward.1} parent=11 // pred_fallthru
          _
        // Predicated region
        $region89: #{layer_block_forward.1} parent=11 // pred_check
          %p618 = pneg %p478
        $region90: #{layer_block_forward.1} parent=11 // pred_check_branch
          %620 = sbr.rel (%p618) target = $region92
        $region91: #{layer_block_forward.1} parent=11 // pred_region
          _
        $region92: #{layer_block_forward.1} parent=11 // pred_fallthru
          _
        // Predicated region
        $region93: #{layer_block_forward.1} parent=11 // pred_check
          %p621 = pneg %p499
        $region94: #{layer_block_forward.1} parent=11 // pred_check_branch
          %623 = sbr.rel (%p621) target = $region96
        $region95: #{layer_block_forward.1} parent=11 // pred_region
          _
        $region96: #{layer_block_forward.1} parent=11 // pred_fallthru
          _
        // Predicated region
        $region97: #{layer_block_forward.1} parent=11 // pred_check
          %p624 = pneg %p520
        $region98: #{layer_block_forward.1} parent=11 // pred_check_branch
          %626 = sbr.rel (%p624) target = $region100
        $region99: #{layer_block_forward.1} parent=11 // pred_region
          _
        $region100: #{layer_block_forward.1} parent=11 // pred_fallthru
          _
      $region12: #{layer_block_forward.1} parent=5 // pred_fallthru
        _
      %p627 = scmp.lt.s32.totalorder %s32, 2
      // Predicated region
      $region101: #{layer_block_forward.1} parent=5 // pred_check
        %p628 = pneg %p627
      $region102: #{layer_block_forward.1} parent=5 // pred_check_branch
        %630 = sbr.rel (%p628) target = $region104
      $region103: #{layer_block_forward.1} parent=5 // pred_region
        // Predicated region
        $region105: #{layer_block_forward.1} parent=103 // pred_check
          %p631 = pneg %p52
        $region106: #{layer_block_forward.1} parent=103 // pred_check_branch
          %633 = sbr.rel (%p631) target = $region108
        $region107: #{layer_block_forward.1} parent=103 // pred_region
          %p634 = scmp.lt.s32.totalorder %s32, 1
          %s635 = scalar_select %p634, %s32, 1
          %s636 = smul.addr %s635, 72
          %s637 = smul.addr %s636, 8
          %s638 = scalar_lea.vmem %s0, %s637
        $region108: #{layer_block_forward.1} parent=103 // pred_fallthru
          _
      $region104: #{layer_block_forward.1} parent=5 // pred_fallthru
        _
      %p639 = scmp.le.s32.totalorder 1, %s32
      %p640 = scmp.lt.s32.totalorder %s32, 3
      %p641 = pnand %p639, %p640
      %p642 = pneg %p641
      // Predicated region
      $region109: #{layer_block_forward.1} parent=5 // pred_check
        _
      $region110: #{layer_block_forward.1} parent=5 // pred_check_branch
        %644 = sbr.rel (%p641) target = $region112
      $region111: #{layer_block_forward.1} parent=5 // pred_region
        %s645 = ssub.s32 %s32, 1
        %p646 = scmp.lt.s32.totalorder %s37, 1
        %s647 = scalar_select %p646, %s37, 1
        %s648 = smul.addr %s647, 72
        %s649 = smul.addr %s648, 8
        %s650 = scalar_lea.vmem %s0, %s649
        %p651 = pneg %p58
        %p652 = pneg %p55
        %p653 = pneg %p79
        %p654 = pneg %p76
        %p655 = pneg %p100
        %p656 = pneg %p97
        %p657 = pneg %p121
        %p658 = pneg %p118
        %p659 = pneg %p142
        %p660 = pneg %p139
        %p661 = pneg %p163
        %p662 = pneg %p160
        %p663 = pneg %p184
        %p664 = pneg %p181
        %p665 = pneg %p205
        %p666 = pneg %p202
        %p667 = pneg %p226
        %p668 = pneg %p223
        %p669 = pneg %p247
        %p670 = pneg %p244
        %p671 = pneg %p268
        %p672 = pneg %p265
        %p673 = pneg %p289
        %p674 = pneg %p286
        %p675 = pneg %p310
        %p676 = pneg %p307
        %p677 = pneg %p331
        %p678 = pneg %p328
        %p679 = pneg %p352
        %p680 = pneg %p349
        %p681 = pneg %p373
        %p682 = pneg %p370
        %p683 = pneg %p394
        %p684 = pneg %p391
        %p685 = pneg %p415
        %p686 = pneg %p412
        %p687 = pneg %p436
        %p688 = pneg %p433
        %p689 = pneg %p457
        %p690 = pneg %p454
        %p691 = pneg %p478
        %p692 = pneg %p475
        %p693 = pneg %p499
        %p694 = pneg %p496
        %p695 = pneg %p520
        %p696 = pneg %p517
        %p697 = pneg %p546
        %p698 = pneg %p543
        %s699 = sand.u32 %s533, 1
        %s700 = scalar_lea.sflag [#allocation4], %s699
        %s701 = sand.u32 %s533, 1
        %s702 = smul.addr %s701, 64
        %s703 = scalar_lea.vmem [#allocation3], %s702
        %p704 = scmp.lt.s32.totalorder %s37, 1
        %s705 = scalar_select %p704, %s37, 1
        %s706 = smul.addr %s705, 72
        %s707 = smul.addr %s706, 8
        %s708 = scalar_lea.vmem %s0, %s707
        %v710 = vld [vmem:[%s708] sm:$0xff]
        %v711 = vld [vmem:[%s708 + $0x10] sm:$0xff]
        %v712 = vld [vmem:[%s708 + $0x20] sm:$0xff]
        %v713 = vld [vmem:[%s708 + $0x30] sm:$0xff]
        %v714 = vld [vmem:[%s708 + $0x40] sm:$0xff]
        %v715 = vld [vmem:[%s708 + $0x50] sm:$0xff]
        %v716 = vld [vmem:[%s708 + $0x60] sm:$0xff]
        %v717 = vld [vmem:[%s708 + $0x70] sm:$0xff]
        %v718 = vpack.c.bf16 %v711, %v710
        %v719 = vpack.c.bf16 %v713, %v712
        %v720 = vpack.c.bf16 %v715, %v714
        %v721 = vpack.c.bf16 %v717, %v716
        %v722 = vld [vmem:[%s1] sm:$0xf]
        %v723 = vld [vmem:[%s1 + $0x4] sm:$0xf]
        %v724 = vld [vmem:[%s1 + $0x8] sm:$0xf]
        %v725 = vld [vmem:[%s1 + $0xc] sm:$0xf]
        %s726 = scalar_lea.vmem %s708, 144
        %v727 = vld [vmem:[%s726] sm:$0xff]
        %v728 = vld [vmem:[%s726 + $0x10] sm:$0xff]
        %v729 = vld [vmem:[%s726 + $0x20] sm:$0xff]
        %v730 = vld [vmem:[%s726 + $0x30] sm:$0xff]
        %v731 = vld [vmem:[%s726 + $0x40] sm:$0xff]
        %v732 = vld [vmem:[%s726 + $0x50] sm:$0xff]
        %v733 = vld [vmem:[%s726 + $0x60] sm:$0xff]
        %v734 = vld [vmem:[%s726 + $0x70] sm:$0xff]
        %v735 = vpack.c.bf16 %v728, %v727
        %v736 = vpack.c.bf16 %v730, %v729
        %v737 = vpack.c.bf16 %v732, %v731
        %v738 = vpack.c.bf16 %v734, %v733
        %s739 = scalar_lea.vmem %s1, 16
        %v740 = vld [vmem:[%s739] sm:$0xf]
        %v741 = vld [vmem:[%s739 + $0x4] sm:$0xf]
        %v742 = vld [vmem:[%s739 + $0x8] sm:$0xf]
        %v743 = vld [vmem:[%s739 + $0xc] sm:$0xf]
        %v748 = vunpack.c.l.b16 %v740
        %v749 = vunpack.c.l.b16 %v741
        %v750 = vunpack.c.l.b16 %v742
        %v751 = vunpack.c.l.b16 %v743
        %v752 = vpack.c.b16 %v749, %v748
        %v753 = vpack.c.b16 %v751, %v750
        %vm756 = vcmask 261120
        %v758 = vsel %vm756, %v735, 0
        %v761 = vsel %vm756, %v736, 0
        %v764 = vsel %vm756, %v737, 0
        %v767 = vsel %vm756, %v738, 0
        %769 = vmatprep.subr.bf16.mxu0 0
        %770 = vmatpush1.bf16.msra.mxu0 %v752
        %771 = vmatprep.subr.bf16.mxu0 0
        %772 = vmatpush1.bf16.msra.mxu0 %v753
        %773 = vmatprep.subr.bf16.mxu0 0
        %774 = vmatpush1.bf16.msra.mxu0 0
        %775 = vmatprep.subr.bf16.mxu0 0
        %776 = vmatpush1.bf16.msra.mxu0 0
        %777 = vmatprep.subr.bf16.mxu0 0
        %778 = vmatpush1.bf16.msra.mxu0 0
        %779 = vmatprep.subr.bf16.mxu0 0
        %780 = vmatpush1.bf16.msra.mxu0 0
        %781 = vmatprep.subr.bf16.mxu0 0
        %782 = vmatpush1.bf16.msra.mxu0 0
        %783 = vmatprep.subr.bf16.mxu0 0
        %784 = vmatpush1.bf16.msra.mxu0 0
        %785 = vmatprep.subr.bf16.mxu0 0
        %786 = vmatpush1.bf16.msra.mxu0 0
        %787 = vmatprep.subr.bf16.mxu0 0
        %788 = vmatpush1.bf16.msra.mxu0 0
        %789 = vmatprep.subr.bf16.mxu0 0
        %790 = vmatpush1.bf16.msra.mxu0 0
        %791 = vmatprep.subr.bf16.mxu0 0
        %792 = vmatpush1.bf16.msra.mxu0 0
        %793 = vmatprep.subr.bf16.mxu0 0
        %794 = vmatpush1.bf16.msra.mxu0 0
        %795 = vmatprep.subr.bf16.mxu0 0
        %796 = vmatpush1.bf16.msra.mxu0 0
        %797 = vmatprep.subr.bf16.mxu0 0
        %798 = vmatpush1.bf16.msra.mxu0 0
        %799 = vmatprep.subr.bf16.mxu0 0
        %800 = vmatpush1.bf16.msra.mxu0 0
        %801 = vmatprep.mubr.bf16.mxu0 0
        %802 = vmatmul.mubr.bf16.gmra.mrb[0].mxu0 %v758
        %v803 = vpop.f32.mrb[0].mxu0
        %v804 = vadd.f32 0.0, %v803
        %v805 = vpop.f32.mrb[0].mxu0
        %v806 = vpop.f32.mrb[0].mxu0
        %v807 = vadd.f32 0.0, %v806
        %v808 = vpop.f32.mrb[0].mxu0
        %809 = vmatprep.mubr.bf16.mxu0 0
        %810 = vmatmul.mubr.bf16.gmra.mrb[0].mxu0 %v761
        %v811 = vpop.f32.mrb[0].mxu0
        %v812 = vadd.f32 0.0, %v811
        %v813 = vpop.f32.mrb[0].mxu0
        %v814 = vpop.f32.mrb[0].mxu0
        %v815 = vadd.f32 0.0, %v814
        %v816 = vpop.f32.mrb[0].mxu0
        %817 = vmatprep.mubr.bf16.mxu0 0
        %818 = vmatmul.mubr.bf16.gmra.mrb[0].mxu0 %v764
        %v819 = vpop.f32.mrb[0].mxu0
        %v820 = vadd.f32 0.0, %v819
        %v821 = vpop.f32.mrb[0].mxu0
        %v822 = vpop.f32.mrb[0].mxu0
        %v823 = vadd.f32 0.0, %v822
        %v824 = vpop.f32.mrb[0].mxu0
        %825 = vmatprep.mubr.bf16.mxu0 0
        %826 = vmatmul.mubr.bf16.gmra.mrb[0].mxu0 %v767
        %v827 = vpop.f32.mrb[0].mxu0
        %v828 = vadd.f32 0.0, %v827
        %v829 = vpop.f32.mrb[0].mxu0
        %v830 = vpop.f32.mrb[0].mxu0
        %v831 = vadd.f32 0.0, %v830
        %v832 = vpop.f32.mrb[0].mxu0
        %833 = vdwg.mxu0
        %v838 = vunpack.c.l.b16 %v722
        %v839 = vunpack.c.l.b16 %v723
        %v840 = vunpack.c.l.b16 %v724
        %v841 = vunpack.c.l.b16 %v725
        %v842 = vpack.c.b16 %v839, %v838
        %v843 = vpack.c.b16 %v841, %v840
        %v847 = vsel %vm756, %v718, 0
        %v850 = vsel %vm756, %v719, 0
        %v853 = vsel %vm756, %v720, 0
        %v856 = vsel %vm756, %v721, 0
        %858 = vmatprep.subr.bf16.mxu0 0
        %859 = vmatpush1.bf16.msra.mxu0 %v842
        %860 = vmatprep.subr.bf16.mxu0 0
        %861 = vmatpush1.bf16.msra.mxu0 %v843
        %862 = vmatprep.subr.bf16.mxu0 0
        %863 = vmatpush1.bf16.msra.mxu0 0
        %864 = vmatprep.subr.bf16.mxu0 0
        %865 = vmatpush1.bf16.msra.mxu0 0
        %866 = vmatprep.subr.bf16.mxu0 0
        %867 = vmatpush1.bf16.msra.mxu0 0
        %868 = vmatprep.subr.bf16.mxu0 0
        %869 = vmatpush1.bf16.msra.mxu0 0
        %870 = vmatprep.subr.bf16.mxu0 0
        %871 = vmatpush1.bf16.msra.mxu0 0
        %872 = vmatprep.subr.bf16.mxu0 0
        %873 = vmatpush1.bf16.msra.mxu0 0
        %874 = vmatprep.subr.bf16.mxu0 0
        %875 = vmatpush1.bf16.msra.mxu0 0
        %876 = vmatprep.subr.bf16.mxu0 0
        %877 = vmatpush1.bf16.msra.mxu0 0
        %878 = vmatprep.subr.bf16.mxu0 0
        %879 = vmatpush1.bf16.msra.mxu0 0
        %880 = vmatprep.subr.bf16.mxu0 0
        %881 = vmatpush1.bf16.msra.mxu0 0
        %882 = vmatprep.subr.bf16.mxu0 0
        %883 = vmatpush1.bf16.msra.mxu0 0
        %884 = vmatprep.subr.bf16.mxu0 0
        %885 = vmatpush1.bf16.msra.mxu0 0
        %886 = vmatprep.subr.bf16.mxu0 0
        %887 = vmatpush1.bf16.msra.mxu0 0
        %888 = vmatprep.subr.bf16.mxu0 0
        %889 = vmatpush1.bf16.msra.mxu0 0
        %890 = vmatprep.mubr.bf16.mxu0 0
        %891 = vmatmul.mubr.bf16.gmra.mrb[0].mxu0 %v847
        %v892 = vpop.f32.mrb[0].mxu0
        %v893 = vadd.f32 %v804, %v892
        %v894 = vpop.f32.mrb[0].mxu0
        %v895 = vpop.f32.mrb[0].mxu0
        %v896 = vadd.f32 %v807, %v895
        %v897 = vpop.f32.mrb[0].mxu0
        %898 = vmatprep.mubr.bf16.mxu0 0
        %899 = vmatmul.mubr.bf16.gmra.mrb[0].mxu0 %v850
        %v900 = vpop.f32.mrb[0].mxu0
        %v901 = vadd.f32 %v812, %v900
        %v902 = vpop.f32.mrb[0].mxu0
        %v903 = vpop.f32.mrb[0].mxu0
        %v904 = vadd.f32 %v815, %v903
        %v905 = vpop.f32.mrb[0].mxu0
        %906 = vmatprep.mubr.bf16.mxu0 0
        %907 = vmatmul.mubr.bf16.gmra.mrb[0].mxu0 %v853
        %v908 = vpop.f32.mrb[0].mxu0
        %v909 = vadd.f32 %v820, %v908
        %v910 = vpop.f32.mrb[0].mxu0
        %v911 = vpop.f32.mrb[0].mxu0
        %v912 = vadd.f32 %v823, %v911
        %v913 = vpop.f32.mrb[0].mxu0
        %914 = vmatprep.mubr.bf16.mxu0 0
        %915 = vmatmul.mubr.bf16.gmra.mrb[0].mxu0 %v856
        %v916 = vpop.f32.mrb[0].mxu0
        %v917 = vadd.f32 %v828, %v916
        %v918 = vpop.f32.mrb[0].mxu0
        %v919 = vpop.f32.mrb[0].mxu0
        %v920 = vadd.f32 %v831, %v919
        %v921 = vpop.f32.mrb[0].mxu0
        %922 = vdwg.mxu0
        %v923 = vld [vmem:[%s708 + $0x1] sm:$0xff]
        %v924 = vld [vmem:[%s708 + $0x11] sm:$0xff]
        %v925 = vld [vmem:[%s708 + $0x21] sm:$0xff]
        %v926 = vld [vmem:[%s708 + $0x31] sm:$0xff]
        %v927 = vld [vmem:[%s708 + $0x41] sm:$0xff]
        %v928 = vld [vmem:[%s708 + $0x51] sm:$0xff]
        %v929 = vld [vmem:[%s708 + $0x61] sm:$0xff]
        %v930 = vld [vmem:[%s708 + $0x71] sm:$0xff]
        %v931 = vpack.c.bf16 %v924, %v923
        %v932 = vpack.c.bf16 %v926, %v925
        %v933 = vpack.c.bf16 %v928, %v927
        %v934 = vpack.c.bf16 %v930, %v929
        %s935 = scalar_lea.vmem %s1, 32
        %v936 = vld [vmem:[%s935] sm:$0xf]
        %v937 = vld [vmem:[%s935 + $0x4] sm:$0xf]
        %v938 = vld [vmem:[%s935 + $0x8] sm:$0xf]
        %v939 = vld [vmem:[%s935 + $0xc] sm:$0xf]
        %v944 = vunpack.c.l.b16 %v936
        %v945 = vunpack.c.l.b16 %v937
        %v946 = vunpack.c.l.b16 %v938
        %v947 = vunpack.c.l.b16 %v939
        %v948 = vpack.c.b16 %v945, %v944
        %v949 = vpack.c.b16 %v947, %v946
        %v953 = vsel %vm756, %v931, 0
        %v956 = vsel %vm756, %v932, 0
        %v959 = vsel %vm756, %v933, 0
        %v962 = vsel %vm756, %v934, 0
        %964 = vmatprep.subr.bf16.mxu0 0
        %965 = vmatpush1.bf16.msra.mxu0 %v948
        %966 = vmatprep.subr.bf16.mxu0 0
        %967 = vmatpush1.bf16.msra.mxu0 %v949
        %968 = vmatprep.subr.bf16.mxu0 0
        %969 = vmatpush1.bf16.msra.mxu0 0
        %970 = vmatprep.subr.bf16.mxu0 0
        %971 = vmatpush1.bf16.msra.mxu0 0
        %972 = vmatprep.subr.bf16.mxu0 0
        %973 = vmatpush1.bf16.msra.mxu0 0
        %974 = vmatprep.subr.bf16.mxu0 0
        %975 = vmatpush1.bf16.msra.mxu0 0
        %976 = vmatprep.subr.bf16.mxu0 0
        %977 = vmatpush1.bf16.msra.mxu0 0
        %978 = vmatprep.subr.bf16.mxu0 0
        %979 = vmatpush1.bf16.msra.mxu0 0
        %980 = vmatprep.subr.bf16.mxu0 0
        %981 = vmatpush1.bf16.msra.mxu0 0
        %982 = vmatprep.subr.bf16.mxu0 0
        %983 = vmatpush1.bf16.msra.mxu0 0
        %984 = vmatprep.subr.bf16.mxu0 0
        %985 = vmatpush1.bf16.msra.mxu0 0
        %986 = vmatprep.subr.bf16.mxu0 0
        %987 = vmatpush1.bf16.msra.mxu0 0
        %988 = vmatprep.subr.bf16.mxu0 0
        %989 = vmatpush1.bf16.msra.mxu0 0
        %990 = vmatprep.subr.bf16.mxu0 0
        %991 = vmatpush1.bf16.msra.mxu0 0
        %992 = vmatprep.subr.bf16.mxu0 0
        %993 = vmatpush1.bf16.msra.mxu0 0
        %994 = vmatprep.subr.bf16.mxu0 0
        %995 = vmatpush1.bf16.msra.mxu0 0
        %996 = vmatprep.mubr.bf16.mxu0 0
        %997 = vmatmul.mubr.bf16.gmra.mrb[0].mxu0 %v953
        %v998 = vpop.f32.mrb[0].mxu0
        %v999 = vadd.f32 0.0, %v998
        %v1000 = vpop.f32.mrb[0].mxu0
        %v1001 = vpop.f32.mrb[0].mxu0
        %v1002 = vadd.f32 0.0, %v1001
        %v1003 = vpop.f32.mrb[0].mxu0
        %1004 = vmatprep.mubr.bf16.mxu0 0
        %1005 = vmatmul.mubr.bf16.gmra.mrb[0].mxu0 %v956
        %v1006 = vpop.f32.mrb[0].mxu0
        %v1007 = vadd.f32 0.0, %v1006
        %v1008 = vpop.f32.mrb[0].mxu0
        %v1009 = vpop.f32.mrb[0].mxu0
        %v1010 = vadd.f32 0.0, %v1009
        %v1011 = vpop.f32.mrb[0].mxu0
        %1012 = vmatprep.mubr.bf16.mxu0 0
        %1013 = vmatmul.mubr.bf16.gmra.mrb[0].mxu0 %v959
        %v1014 = vpop.f32.mrb[0].mxu0
        %v1015 = vadd.f32 0.0, %v1014
        %v1016 = vpop.f32.mrb[0].mxu0
        %v1017 = vpop.f32.mrb[0].mxu0
        %v1018 = vadd.f32 0.0, %v1017
        %v1019 = vpop.f32.mrb[0].mxu0
        %1020 = vmatprep.mubr.bf16.mxu0 0
        %1021 = vmatmul.mubr.bf16.gmra.mrb[0].mxu0 %v962
        %v1022 = vpop.f32.mrb[0].mxu0
        %v1023 = vadd.f32 0.0, %v1022
        %v1024 = vpop.f32.mrb[0].mxu0
        %v1025 = vpop.f32.mrb[0].mxu0
        %v1026 = vadd.f32 0.0, %v1025
        %v1027 = vpop.f32.mrb[0].mxu0
        %1028 = vdwg.mxu0
        %v1029 = vadd.f32 %v893, %v999
        %v1030 = vadd.f32 %v896, %v1002
        %v1031 = vadd.f32 %v901, %v1007
        %v1032 = vadd.f32 %v904, %v1010
        %v1033 = vadd.f32 %v909, %v1015
        %v1034 = vadd.f32 %v912, %v1018
        %v1035 = vadd.f32 %v917, %v1023
        %v1036 = vadd.f32 %v920, %v1026
        %s1037 = scalar_lea.vmem %s708, 288
        %v1038 = vld [vmem:[%s1037] sm:$0xff]
        %v1039 = vld [vmem:[%s1037 + $0x10] sm:$0xff]
        %v1040 = vld [vmem:[%s1037 + $0x20] sm:$0xff]
        %v1041 = vld [vmem:[%s1037 + $0x30] sm:$0xff]
        %v1042 = vld [vmem:[%s1037 + $0x40] sm:$0xff]
        %v1043 = vld [vmem:[%s1037 + $0x50] sm:$0xff]
        %v1044 = vld [vmem:[%s1037 + $0x60] sm:$0xff]
        %v1045 = vld [vmem:[%s1037 + $0x70] sm:$0xff]
        %v1046 = vpack.c.bf16 %v1039, %v1038
        %v1047 = vpack.c.bf16 %v1041, %v1040
        %v1048 = vpack.c.bf16 %v1043, %v1042
        %v1049 = vpack.c.bf16 %v1045, %v1044
        %s1050 = scalar_lea.vmem %s1, 48
        %v1051 = vld [vmem:[%s1050] sm:$0xf]
        %v1052 = vld [vmem:[%s1050 + $0x4] sm:$0xf]
        %v1053 = vld [vmem:[%s1050 + $0x8] sm:$0xf]
        %v1054 = vld [vmem:[%s1050 + $0xc] sm:$0xf]
        %v1059 = vunpack.c.l.b16 %v1051
        %v1060 = vunpack.c.l.b16 %v1052
        %v1061 = vunpack.c.l.b16 %v1053
        %v1062 = vunpack.c.l.b16 %v1054
        %v1063 = vpack.c.b16 %v1060, %v1059
        %v1064 = vpack.c.b16 %v1062, %v1061
        %v1068 = vsel %vm756, %v1046, 0
        %v1071 = vsel %vm756, %v1047, 0
        %v1074 = vsel %vm756, %v1048, 0
        %v1077 = vsel %vm756, %v1049, 0
        %1079 = vmatprep.subr.bf16.mxu0 0
        %1080 = vmatpush1.bf16.msra.mxu0 %v1063
        %1081 = vmatprep.subr.bf16.mxu0 0
        %1082 = vmatpush1.bf16.msra.mxu0 %v1064
        %1083 = vmatprep.subr.bf16.mxu0 0
        %1084 = vmatpush1.bf16.msra.mxu0 0
        %1085 = vmatprep.subr.bf16.mxu0 0
        %1086 = vmatpush1.bf16.msra.mxu0 0
        %1087 = vmatprep.subr.bf16.mxu0 0
        %1088 = vmatpush1.bf16.msra.mxu0 0
        %1089 = vmatprep.subr.bf16.mxu0 0
        %1090 = vmatpush1.bf16.msra.mxu0 0
        %1091 = vmatprep.subr.bf16.mxu0 0
        %1092 = vmatpush1.bf16.msra.mxu0 0
        %1093 = vmatprep.subr.bf16.mxu0 0
        %1094 = vmatpush1.bf16.msra.mxu0 0
        %1095 = vmatprep.subr.bf16.mxu0 0
        %1096 = vmatpush1.bf16.msra.mxu0 0
        %1097 = vmatprep.subr.bf16.mxu0 0
        %1098 = vmatpush1.bf16.msra.mxu0 0
        %1099 = vmatprep.subr.bf16.mxu0 0
        %1100 = vmatpush1.bf16.msra.mxu0 0
        %1101 = vmatprep.subr.bf16.mxu0 0
        %1102 = vmatpush1.bf16.msra.mxu0 0
        %1103 = vmatprep.subr.bf16.mxu0 0
        %1104 = vmatpush1.bf16.msra.mxu0 0
        %1105 = vmatprep.subr.bf16.mxu0 0
        %1106 = vmatpush1.bf16.msra.mxu0 0
        %1107 = vmatprep.subr.bf16.mxu0 0
        %1108 = vmatpush1.bf16.msra.mxu0 0
        %1109 = vmatprep.subr.bf16.mxu0 0
        %1110 = vmatpush1.bf16.msra.mxu0 0
        %1111 = vmatprep.mubr.bf16.mxu0 0
        %1112 = vmatmul.mubr.bf16.gmra.mrb[0].mxu0 %v1068
        %v1113 = vpop.f32.mrb[0].mxu0
        %v1114 = vadd.f32 0.0, %v1113
        %v1115 = vpop.f32.mrb[0].mxu0
        %v1116 = vpop.f32.mrb[0].mxu0
        %v1117 = vadd.f32 0.0, %v1116
        %v1118 = vpop.f32.mrb[0].mxu0
        %1119 = vmatprep.mubr.bf16.mxu0 0
        %1120 = vmatmul.mubr.bf16.gmra.mrb[0].mxu0 %v1071
        %v1121 = vpop.f32.mrb[0].mxu0
        %v1122 = vadd.f32 0.0, %v1121
        %v1123 = vpop.f32.mrb[0].mxu0
        %v1124 = vpop.f32.mrb[0].mxu0
        %v1125 = vadd.f32 0.0, %v1124
        %v1126 = vpop.f32.mrb[0].mxu0
        %1127 = vmatprep.mubr.bf16.mxu0 0
        %1128 = vmatmul.mubr.bf16.gmra.mrb[0].mxu0 %v1074
        %v1129 = vpop.f32.mrb[0].mxu0
        %v1130 = vadd.f32 0.0, %v1129
        %v1131 = vpop.f32.mrb[0].mxu0
        %v1132 = vpop.f32.mrb[0].mxu0
        %v1133 = vadd.f32 0.0, %v1132
        %v1134 = vpop.f32.mrb[0].mxu0
        %1135 = vmatprep.mubr.bf16.mxu0 0
        %1136 = vmatmul.mubr.bf16.gmra.mrb[0].mxu0 %v1077
        %v1137 = vpop.f32.mrb[0].mxu0
        %v1138 = vadd.f32 0.0, %v1137
        %v1139 = vpop.f32.mrb[0].mxu0
        %v1140 = vpop.f32.mrb[0].mxu0
        %v1141 = vadd.f32 0.0, %v1140
        %v1142 = vpop.f32.mrb[0].mxu0
        %1143 = vdwg.mxu0
        %v1144 = vadd.f32 %v1029, %v1114
        %v1145 = vadd.f32 %v1030, %v1117
        %v1146 = vadd.f32 %v1031, %v1122
        %v1147 = vadd.f32 %v1032, %v1125
        %v1148 = vadd.f32 %v1033, %v1130
        %v1149 = vadd.f32 %v1034, %v1133
        %v1150 = vadd.f32 %v1035, %v1138
        %v1151 = vadd.f32 %v1036, %v1141
        %s1152 = scalar_lea.vmem %s708, 432
        %v1153 = vld [vmem:[%s1152] sm:$0xff]
        %v1154 = vld [vmem:[%s1152 + $0x10] sm:$0xff]
        %v1155 = vld [vmem:[%s1152 + $0x20] sm:$0xff]
        %v1156 = vld [vmem:[%s1152 + $0x30] sm:$0xff]
        %v1157 = vld [vmem:[%s1152 + $0x40] sm:$0xff]
        %v1158 = vld [vmem:[%s1152 + $0x50] sm:$0xff]
        %v1159 = vld [vmem:[%s1152 + $0x60] sm:$0xff]
        %v1160 = vld [vmem:[%s1152 + $0x70] sm:$0xff]
        %v1161 = vpack.c.bf16 %v1154, %v1153
        %v1162 = vpack.c.bf16 %v1156, %v1155
        %v1163 = vpack.c.bf16 %v1158, %v1157
        %v1164 = vpack.c.bf16 %v1160, %v1159
        %s1165 = scalar_lea.vmem %s1, 64
        %v1166 = vld [vmem:[%s1165] sm:$0xf]
        %v1167 = vld [vmem:[%s1165 + $0x4] sm:$0xf]
        %v1168 = vld [vmem:[%s1165 + $0x8] sm:$0xf]
        %v1169 = vld [vmem:[%s1165 + $0xc] sm:$0xf]
        %v1174 = vunpack.c.l.b16 %v1166
        %v1175 = vunpack.c.l.b16 %v1167
        %v1176 = vunpack.c.l.b16 %v1168
        %v1177 = vunpack.c.l.b16 %v1169
        %v1178 = vpack.c.b16 %v1175, %v1174
        %v1179 = vpack.c.b16 %v1177, %v1176
        %v1183 = vsel %vm756, %v1161, 0
        %v1186 = vsel %vm756, %v1162, 0
        %v1189 = vsel %vm756, %v1163, 0
        %v1192 = vsel %vm756, %v1164, 0
        %1194 = vmatprep.subr.bf16.mxu0 0
        %1195 = vmatpush1.bf16.msra.mxu0 %v1178
        %1196 = vmatprep.subr.bf16.mxu0 0
        %1197 = vmatpush1.bf16.msra.mxu0 %v1179
        %1198 = vmatprep.subr.bf16.mxu0 0
        %1199 = vmatpush1.bf16.msra.mxu0 0
        %1200 = vmatprep.subr.bf16.mxu0 0
        %1201 = vmatpush1.bf16.msra.mxu0 0
        %1202 = vmatprep.subr.bf16.mxu0 0
        %1203 = vmatpush1.bf16.msra.mxu0 0
        %1204 = vmatprep.subr.bf16.mxu0 0
        %1205 = vmatpush1.bf16.msra.mxu0 0
        %1206 = vmatprep.subr.bf16.mxu0 0
        %1207 = vmatpush1.bf16.msra.mxu0 0
        %1208 = vmatprep.subr.bf16.mxu0 0
        %1209 = vmatpush1.bf16.msra.mxu0 0
        %1210 = vmatprep.subr.bf16.mxu0 0
        %1211 = vmatpush1.bf16.msra.mxu0 0
        %1212 = vmatprep.subr.bf16.mxu0 0
        %1213 = vmatpush1.bf16.msra.mxu0 0
        %1214 = vmatprep.subr.bf16.mxu0 0
        %1215 = vmatpush1.bf16.msra.mxu0 0
        %1216 = vmatprep.subr.bf16.mxu0 0
        %1217 = vmatpush1.bf16.msra.mxu0 0
        %1218 = vmatprep.subr.bf16.mxu0 0
        %1219 = vmatpush1.bf16.msra.mxu0 0
        %1220 = vmatprep.subr.bf16.mxu0 0
        %1221 = vmatpush1.bf16.msra.mxu0 0
        %1222 = vmatprep.subr.bf16.mxu0 0
        %1223 = vmatpush1.bf16.msra.mxu0 0
        %1224 = vmatprep.subr.bf16.mxu0 0
        %1225 = vmatpush1.bf16.msra.mxu0 0
        %1226 = vmatprep.mubr.bf16.mxu0 0
        %1227 = vmatmul.mubr.bf16.gmra.mrb[0].mxu0 %v1183
        %v1228 = vpop.f32.mrb[0].mxu0
        %v1229 = vadd.f32 0.0, %v1228
        %v1230 = vpop.f32.mrb[0].mxu0
        %v1231 = vpop.f32.mrb[0].mxu0
        %v1232 = vadd.f32 0.0, %v1231
        %v1233 = vpop.f32.mrb[0].mxu0
        %1234 = vmatprep.mubr.bf16.mxu0 0
        %1235 = vmatmul.mubr.bf16.gmra.mrb[0].mxu0 %v1186
        %v1236 = vpop.f32.mrb[0].mxu0
        %v1237 = vadd.f32 0.0, %v1236
        %v1238 = vpop.f32.mrb[0].mxu0
        %v1239 = vpop.f32.mrb[0].mxu0
        %v1240 = vadd.f32 0.0, %v1239
        %v1241 = vpop.f32.mrb[0].mxu0
        %1242 = vmatprep.mubr.bf16.mxu0 0
        %1243 = vmatmul.mubr.bf16.gmra.mrb[0].mxu0 %v1189
        %v1244 = vpop.f32.mrb[0].mxu0
        %v1245 = vadd.f32 0.0, %v1244
        %v1246 = vpop.f32.mrb[0].mxu0
        %v1247 = vpop.f32.mrb[0].mxu0
        %v1248 = vadd.f32 0.0, %v1247
        %v1249 = vpop.f32.mrb[0].mxu0
        %1250 = vmatprep.mubr.bf16.mxu0 0
        %1251 = vmatmul.mubr.bf16.gmra.mrb[0].mxu0 %v1192
        %v1252 = vpop.f32.mrb[0].mxu0
        %v1253 = vadd.f32 0.0, %v1252
        %v1254 = vpop.f32.mrb[0].mxu0
        %v1255 = vpop.f32.mrb[0].mxu0
        %v1256 = vadd.f32 0.0, %v1255
        %v1257 = vpop.f32.mrb[0].mxu0
        %1258 = vdwg.mxu0
        %v1259 = vadd.f32 %v1144, %v1229
        %v1260 = vadd.f32 %v1145, %v1232
        %v1261 = vadd.f32 %v1146, %v1237
        %v1262 = vadd.f32 %v1147, %v1240
        %v1263 = vadd.f32 %v1148, %v1245
        %v1264 = vadd.f32 %v1149, %v1248
        %v1265 = vadd.f32 %v1150, %v1253
        %v1266 = vadd.f32 %v1151, %v1256
        %v1267 = vld [vmem:[%s1037 + $0x1] sm:$0xff]
        %v1268 = vld [vmem:[%s1037 + $0x11] sm:$0xff]
        %v1269 = vld [vmem:[%s1037 + $0x21] sm:$0xff]
        %v1270 = vld [vmem:[%s1037 + $0x31] sm:$0xff]
        %v1271 = vld [vmem:[%s1037 + $0x41] sm:$0xff]
        %v1272 = vld [vmem:[%s1037 + $0x51] sm:$0xff]
        %v1273 = vld [vmem:[%s1037 + $0x61] sm:$0xff]
        %v1274 = vld [vmem:[%s1037 + $0x71] sm:$0xff]
        %v1275 = vpack.c.bf16 %v1268, %v1267
        %v1276 = vpack.c.bf16 %v1270, %v1269
        %v1277 = vpack.c.bf16 %v1272, %v1271
        %v1278 = vpack.c.bf16 %v1274, %v1273
        %s1279 = scalar_lea.vmem %s1, 80
        %v1280 = vld [vmem:[%s1279] sm:$0xf]
        %v1281 = vld [vmem:[%s1279 + $0x4] sm:$0xf]
        %v1282 = vld [vmem:[%s1279 + $0x8] sm:$0xf]
        %v1283 = vld [vmem:[%s1279 + $0xc] sm:$0xf]
        %v1288 = vunpack.c.l.b16 %v1280
        %v1289 = vunpack.c.l.b16 %v1281
        %v1290 = vunpack.c.l.b16 %v1282
        %v1291 = vunpack.c.l.b16 %v1283
        %v1292 = vpack.c.b16 %v1289, %v1288
        %v1293 = vpack.c.b16 %v1291, %v1290
        %v1297 = vsel %vm756, %v1275, 0
        %v1300 = vsel %vm756, %v1276, 0
        %v1303 = vsel %vm756, %v1277, 0
        %v1306 = vsel %vm756, %v1278, 0
        %1308 = vmatprep.subr.bf16.mxu0 0
        %1309 = vmatpush1.bf16.msra.mxu0 %v1292
        %1310 = vmatprep.subr.bf16.mxu0 0
        %1311 = vmatpush1.bf16.msra.mxu0 %v1293
        %1312 = vmatprep.subr.bf16.mxu0 0
        %1313 = vmatpush1.bf16.msra.mxu0 0
        %1314 = vmatprep.subr.bf16.mxu0 0
        %1315 = vmatpush1.bf16.msra.mxu0 0
        %1316 = vmatprep.subr.bf16.mxu0 0
        %1317 = vmatpush1.bf16.msra.mxu0 0
        %1318 = vmatprep.subr.bf16.mxu0 0
        %1319 = vmatpush1.bf16.msra.mxu0 0
        %1320 = vmatprep.subr.bf16.mxu0 0
        %1321 = vmatpush1.bf16.msra.mxu0 0
        %1322 = vmatprep.subr.bf16.mxu0 0
        %1323 = vmatpush1.bf16.msra.mxu0 0
        %1324 = vmatprep.subr.bf16.mxu0 0
        %1325 = vmatpush1.bf16.msra.mxu0 0
        %1326 = vmatprep.subr.bf16.mxu0 0
        %1327 = vmatpush1.bf16.msra.mxu0 0
        %1328 = vmatprep.subr.bf16.mxu0 0
        %1329 = vmatpush1.bf16.msra.mxu0 0
        %1330 = vmatprep.subr.bf16.mxu0 0
        %1331 = vmatpush1.bf16.msra.mxu0 0
        %1332 = vmatprep.subr.bf16.mxu0 0
        %1333 = vmatpush1.bf16.msra.mxu0 0
        %1334 = vmatprep.subr.bf16.mxu0 0
        %1335 = vmatpush1.bf16.msra.mxu0 0
        %1336 = vmatprep.subr.bf16.mxu0 0
        %1337 = vmatpush1.bf16.msra.mxu0 0
        %1338 = vmatprep.subr.bf16.mxu0 0
        %1339 = vmatpush1.bf16.msra.mxu0 0
        %1340 = vmatprep.mubr.bf16.mxu0 0
        %1341 = vmatmul.mubr.bf16.gmra.mrb[0].mxu0 %v1297
        %v1342 = vpop.f32.mrb[0].mxu0
        %v1343 = vadd.f32 0.0, %v1342
        %v1344 = vpop.f32.mrb[0].mxu0
        %v1345 = vpop.f32.mrb[0].mxu0
        %v1346 = vadd.f32 0.0, %v1345
        %v1347 = vpop.f32.mrb[0].mxu0
        %1348 = vmatprep.mubr.bf16.mxu0 0
        %1349 = vmatmul.mubr.bf16.gmra.mrb[0].mxu0 %v1300
        %v1350 = vpop.f32.mrb[0].mxu0
        %v1351 = vadd.f32 0.0, %v1350
        %v1352 = vpop.f32.mrb[0].mxu0
        %v1353 = vpop.f32.mrb[0].mxu0
        %v1354 = vadd.f32 0.0, %v1353
        %v1355 = vpop.f32.mrb[0].mxu0
        %1356 = vmatprep.mubr.bf16.mxu0 0
        %1357 = vmatmul.mubr.bf16.gmra.mrb[0].mxu0 %v1303
        %v1358 = vpop.f32.mrb[0].mxu0
        %v1359 = vadd.f32 0.0, %v1358
        %v1360 = vpop.f32.mrb[0].mxu0
        %v1361 = vpop.f32.mrb[0].mxu0
        %v1362 = vadd.f32 0.0, %v1361
        %v1363 = vpop.f32.mrb[0].mxu0
        %1364 = vmatprep.mubr.bf16.mxu0 0
        %1365 = vmatmul.mubr.bf16.gmra.mrb[0].mxu0 %v1306
        %v1366 = vpop.f32.mrb[0].mxu0
        %v1367 = vadd.f32 0.0, %v1366
        %v1368 = vpop.f32.mrb[0].mxu0
        %v1369 = vpop.f32.mrb[0].mxu0
        %v1370 = vadd.f32 0.0, %v1369
        %v1371 = vpop.f32.mrb[0].mxu0
        %1372 = vdwg.mxu0
        %v1373 = vadd.f32 %v1259, %v1343
        %v1374 = vadd.f32 %v1260, %v1346
        %v1375 = vadd.f32 %v1261, %v1351
        %v1376 = vadd.f32 %v1262, %v1354
        %v1377 = vadd.f32 %v1263, %v1359
        %v1378 = vadd.f32 %v1264, %v1362
        %v1379 = vadd.f32 %v1265, %v1367
        %v1380 = vadd.f32 %v1266, %v1370
        %s1381 = scalar_lea.vmem %s708, 16
        %v1382 = vld [vmem:[%s1381] sm:$0xff]
        %v1383 = vld [vmem:[%s1381 + $0x10] sm:$0xff]
        %v1384 = vld [vmem:[%s1381 + $0x20] sm:$0xff]
        %v1385 = vld [vmem:[%s1381 + $0x30] sm:$0xff]
        %v1386 = vld [vmem:[%s1381 + $0x40] sm:$0xff]
        %v1387 = vld [vmem:[%s1381 + $0x50] sm:$0xff]
        %v1388 = vld [vmem:[%s1381 + $0x60] sm:$0xff]
        %v1389 = vld [vmem:[%s1381 + $0x70] sm:$0xff]
        %v1390 = vpack.c.bf16 %v1383, %v1382
        %v1391 = vpack.c.bf16 %v1385, %v1384
        %v1392 = vpack.c.bf16 %v1387, %v1386
        %v1393 = vpack.c.bf16 %v1389, %v1388
        %s1394 = scalar_lea.vmem %s1, 96
        %v1395 = vld [vmem:[%s1394] sm:$0xf]
        %v1396 = vld [vmem:[%s1394 + $0x4] sm:$0xf]
        %v1397 = vld [vmem:[%s1394 + $0x8] sm:$0xf]
        %v1398 = vld [vmem:[%s1394 + $0xc] sm:$0xf]
        %v1403 = vunpack.c.l.b16 %v1395
        %v1404 = vunpack.c.l.b16 %v1396
        %v1405 = vunpack.c.l.b16 %v1397
        %v1406 = vunpack.c.l.b16 %v1398
        %v1407 = vpack.c.b16 %v1404, %v1403
        %v1408 = vpack.c.b16 %v1406, %v1405
        %v1412 = vsel %vm756, %v1390, 0
        %v1415 = vsel %vm756, %v1391, 0
        %v1418 = vsel %vm756, %v1392, 0
        %v1421 = vsel %vm756, %v1393, 0
        %1423 = vmatprep.subr.bf16.mxu0 0
        %1424 = vmatpush1.bf16.msra.mxu0 %v1407
        %1425 = vmatprep.subr.bf16.mxu0 0
        %1426 = vmatpush1.bf16.msra.mxu0 %v1408
        %1427 = vmatprep.subr.bf16.mxu0 0
        %1428 = vmatpush1.bf16.msra.mxu0 0
        %1429 = vmatprep.subr.bf16.mxu0 0
        %1430 = vmatpush1.bf16.msra.mxu0 0
        %1431 = vmatprep.subr.bf16.mxu0 0
        %1432 = vmatpush1.bf16.msra.mxu0 0
        %1433 = vmatprep.subr.bf16.mxu0 0
        %1434 = vmatpush1.bf16.msra.mxu0 0
        %1435 = vmatprep.subr.bf16.mxu0 0
        %1436 = vmatpush1.bf16.msra.mxu0 0
        %1437 = vmatprep.subr.bf16.mxu0 0
        %1438 = vmatpush1.bf16.msra.mxu0 0
        %1439 = vmatprep.subr.bf16.mxu0 0
        %1440 = vmatpush1.bf16.msra.mxu0 0
        %1441 = vmatprep.subr.bf16.mxu0 0
        %1442 = vmatpush1.bf16.msra.mxu0 0
        %1443 = vmatprep.subr.bf16.mxu0 0
        %1444 = vmatpush1.bf16.msra.mxu0 0
        %1445 = vmatprep.subr.bf16.mxu0 0
        %1446 = vmatpush1.bf16.msra.mxu0 0
        %1447 = vmatprep.subr.bf16.mxu0 0
        %1448 = vmatpush1.bf16.msra.mxu0 0
        %1449 = vmatprep.subr.bf16.mxu0 0
        %1450 = vmatpush1.bf16.msra.mxu0 0
        %1451 = vmatprep.subr.bf16.mxu0 0
        %1452 = vmatpush1.bf16.msra.mxu0 0
        %1453 = vmatprep.subr.bf16.mxu0 0
        %1454 = vmatpush1.bf16.msra.mxu0 0
        %1455 = vmatprep.mubr.bf16.mxu0 0
        %1456 = vmatmul.mubr.bf16.gmra.mrb[0].mxu0 %v1412
        %v1457 = vpop.f32.mrb[0].mxu0
        %v1458 = vadd.f32 0.0, %v1457
        %v1459 = vpop.f32.mrb[0].mxu0
        %v1460 = vpop.f32.mrb[0].mxu0
        %v1461 = vadd.f32 0.0, %v1460
        %v1462 = vpop.f32.mrb[0].mxu0
        %1463 = vmatprep.mubr.bf16.mxu0 0
        %1464 = vmatmul.mubr.bf16.gmra.mrb[0].mxu0 %v1415
        %v1465 = vpop.f32.mrb[0].mxu0
        %v1466 = vadd.f32 0.0, %v1465
        %v1467 = vpop.f32.mrb[0].mxu0
        %v1468 = vpop.f32.mrb[0].mxu0
        %v1469 = vadd.f32 0.0, %v1468
        %v1470 = vpop.f32.mrb[0].mxu0
        %1471 = vmatprep.mubr.bf16.mxu0 0
        %1472 = vmatmul.mubr.bf16.gmra.mrb[0].mxu0 %v1418
        %v1473 = vpop.f32.mrb[0].mxu0
        %v1474 = vadd.f32 0.0, %v1473
        %v1475 = vpop.f32.mrb[0].mxu0
        %v1476 = vpop.f32.mrb[0].mxu0
        %v1477 = vadd.f32 0.0, %v1476
        %v1478 = vpop.f32.mrb[0].mxu0
        %1479 = vmatprep.mubr.bf16.mxu0 0
        %1480 = vmatmul.mubr.bf16.gmra.mrb[0].mxu0 %v1421
        %v1481 = vpop.f32.mrb[0].mxu0
        %v1482 = vadd.f32 0.0, %v1481
        %v1483 = vpop.f32.mrb[0].mxu0
        %v1484 = vpop.f32.mrb[0].mxu0
        %v1485 = vadd.f32 0.0, %v1484
        %v1486 = vpop.f32.mrb[0].mxu0
        %1487 = vdwg.mxu0
        %v1488 = vadd.f32 %v1373, %v1458
        %v1489 = vadd.f32 %v1374, %v1461
        %v1490 = vadd.f32 %v1375, %v1466
        %v1491 = vadd.f32 %v1376, %v1469
        %v1492 = vadd.f32 %v1377, %v1474
        %v1493 = vadd.f32 %v1378, %v1477
        %v1494 = vadd.f32 %v1379, %v1482
        %v1495 = vadd.f32 %v1380, %v1485
        %s1496 = scalar_lea.vmem %s708, 160
        %v1497 = vld [vmem:[%s1496] sm:$0xff]
        %v1498 = vld [vmem:[%s1496 + $0x10] sm:$0xff]
        %v1499 = vld [vmem:[%s1496 + $0x20] sm:$0xff]
        %v1500 = vld [vmem:[%s1496 + $0x30] sm:$0xff]
        %v1501 = vld [vmem:[%s1496 + $0x40] sm:$0xff]
        %v1502 = vld [vmem:[%s1496 + $0x50] sm:$0xff]
        %v1503 = vld [vmem:[%s1496 + $0x60] sm:$0xff]
        %v1504 = vld [vmem:[%s1496 + $0x70] sm:$0xff]
        %v1505 = vpack.c.bf16 %v1498, %v1497
        %v1506 = vpack.c.bf16 %v1500, %v1499
        %v1507 = vpack.c.bf16 %v1502, %v1501
        %v1508 = vpack.c.bf16 %v1504, %v1503
        %s1509 = scalar_lea.vmem %s1, 112
        %v1510 = vld [vmem:[%s1509] sm:$0xf]
        %v1511 = vld [vmem:[%s1509 + $0x4] sm:$0xf]
        %v1512 = vld [vmem:[%s1509 + $0x8] sm:$0xf]
        %v1513 = vld [vmem:[%s1509 + $0xc] sm:$0xf]
        %v1518 = vunpack.c.l.b16 %v1510
        %v1519 = vunpack.c.l.b16 %v1511
        %v1520 = vunpack.c.l.b16 %v1512
        %v1521 = vunpack.c.l.b16 %v1513
        %v1522 = vpack.c.b16 %v1519, %v1518
        %v1523 = vpack.c.b16 %v1521, %v1520
        %v1527 = vsel %vm756, %v1505, 0
        %v1530 = vsel %vm756, %v1506, 0
        %v1533 = vsel %vm756, %v1507, 0
        %v1536 = vsel %vm756, %v1508, 0
        %1538 = vmatprep.subr.bf16.mxu0 0
        %1539 = vmatpush1.bf16.msra.mxu0 %v1522
        %1540 = vmatprep.subr.bf16.mxu0 0
        %1541 = vmatpush1.bf16.msra.mxu0 %v1523
        %1542 = vmatprep.subr.bf16.mxu0 0
        %1543 = vmatpush1.bf16.msra.mxu0 0
        %1544 = vmatprep.subr.bf16.mxu0 0
        %1545 = vmatpush1.bf16.msra.mxu0 0
        %1546 = vmatprep.subr.bf16.mxu0 0
        %1547 = vmatpush1.bf16.msra.mxu0 0
        %1548 = vmatprep.subr.bf16.mxu0 0
        %1549 = vmatpush1.bf16.msra.mxu0 0
        %1550 = vmatprep.subr.bf16.mxu0 0
        %1551 = vmatpush1.bf16.msra.mxu0 0
        %1552 = vmatprep.subr.bf16.mxu0 0
        %1553 = vmatpush1.bf16.msra.mxu0 0
        %1554 = vmatprep.subr.bf16.mxu0 0
        %1555 = vmatpush1.bf16.msra.mxu0 0
        %1556 = vmatprep.subr.bf16.mxu0 0
        %1557 = vmatpush1.bf16.msra.mxu0 0
        %1558 = vmatprep.subr.bf16.mxu0 0
        %1559 = vmatpush1.bf16.msra.mxu0 0
        %1560 = vmatprep.subr.bf16.mxu0 0
        %1561 = vmatpush1.bf16.msra.mxu0 0
        %1562 = vmatprep.subr.bf16.mxu0 0
        %1563 = vmatpush1.bf16.msra.mxu0 0
        %1564 = vmatprep.subr.bf16.mxu0 0
        %1565 = vmatpush1.bf16.msra.mxu0 0
        %1566 = vmatprep.subr.bf16.mxu0 0
        %1567 = vmatpush1.bf16.msra.mxu0 0
        %1568 = vmatprep.subr.bf16.mxu0 0
        %1569 = vmatpush1.bf16.msra.mxu0 0
        %1570 = vmatprep.mubr.bf16.mxu0 0
        %1571 = vmatmul.mubr.bf16.gmra.mrb[0].mxu0 %v1527
        %v1572 = vpop.f32.mrb[0].mxu0
        %v1573 = vadd.f32 0.0, %v1572
        %v1574 = vpop.f32.mrb[0].mxu0
        %v1575 = vpop.f32.mrb[0].mxu0
        %v1576 = vadd.f32 0.0, %v1575
        %v1577 = vpop.f32.mrb[0].mxu0
        %1578 = vmatprep.mubr.bf16.mxu0 0
        %1579 = vmatmul.mubr.bf16.gmra.mrb[0].mxu0 %v1530
        %v1580 = vpop.f32.mrb[0].mxu0
        %v1581 = vadd.f32 0.0, %v1580
        %v1582 = vpop.f32.mrb[0].mxu0
        %v1583 = vpop.f32.mrb[0].mxu0
        %v1584 = vadd.f32 0.0, %v1583
        %v1585 = vpop.f32.mrb[0].mxu0
        %1586 = vmatprep.mubr.bf16.mxu0 0
        %1587 = vmatmul.mubr.bf16.gmra.mrb[0].mxu0 %v1533
        %v1588 = vpop.f32.mrb[0].mxu0
        %v1589 = vadd.f32 0.0, %v1588
        %v1590 = vpop.f32.mrb[0].mxu0
        %v1591 = vpop.f32.mrb[0].mxu0
        %v1592 = vadd.f32 0.0, %v1591
        %v1593 = vpop.f32.mrb[0].mxu0
        %1594 = vmatprep.mubr.bf16.mxu0 0
        %1595 = vmatmul.mubr.bf16.gmra.mrb[0].mxu0 %v1536
        %v1596 = vpop.f32.mrb[0].mxu0
        %v1597 = vadd.f32 0.0, %v1596
        %v1598 = vpop.f32.mrb[0].mxu0
        %v1599 = vpop.f32.mrb[0].mxu0
        %v1600 = vadd.f32 0.0, %v1599
        %v1601 = vpop.f32.mrb[0].mxu0
        %1602 = vdwg.mxu0
        %v1603 = vadd.f32 %v1488, %v1573
        %v1604 = vadd.f32 %v1489, %v1576
        %v1605 = vadd.f32 %v1490, %v1581
        %v1606 = vadd.f32 %v1491, %v1584
        %v1607 = vadd.f32 %v1492, %v1589
        %v1608 = vadd.f32 %v1493, %v1592
        %v1609 = vadd.f32 %v1494, %v1597
        %v1610 = vadd.f32 %v1495, %v1600
        %v1611 = vld [vmem:[%s1381 + $0x1] sm:$0xff]
        %v1612 = vld [vmem:[%s1381 + $0x11] sm:$0xff]
        %v1613 = vld [vmem:[%s1381 + $0x21] sm:$0xff]
        %v1614 = vld [vmem:[%s1381 + $0x31] sm:$0xff]
        %v1615 = vld [vmem:[%s1381 + $0x41] sm:$0xff]
        %v1616 = vld [vmem:[%s1381 + $0x51] sm:$0xff]
        %v1617 = vld [vmem:[%s1381 + $0x61] sm:$0xff]
        %v1618 = vld [vmem:[%s1381 + $0x71] sm:$0xff]
        %v1619 = vpack.c.bf16 %v1612, %v1611
        %v1620 = vpack.c.bf16 %v1614, %v1613
        %v1621 = vpack.c.bf16 %v1616, %v1615
        %v1622 = vpack.c.bf16 %v1618, %v1617
        %s1623 = scalar_lea.vmem %s1, 128
        %v1624 = vld [vmem:[%s1623] sm:$0xf]
        %v1625 = vld [vmem:[%s1623 + $0x4] sm:$0xf]
        %v1626 = vld [vmem:[%s1623 + $0x8] sm:$0xf]
        %v1627 = vld [vmem:[%s1623 + $0xc] sm:$0xf]
        %v1632 = vunpack.c.l.b16 %v1624
        %v1633 = vunpack.c.l.b16 %v1625
        %v1634 = vunpack.c.l.b16 %v1626
        %v1635 = vunpack.c.l.b16 %v1627
        %v1636 = vpack.c.b16 %v1633, %v1632
        %v1637 = vpack.c.b16 %v1635, %v1634
        %v1641 = vsel %vm756, %v1619, 0
        %v1644 = vsel %vm756, %v1620, 0
        %v1647 = vsel %vm756, %v1621, 0
        %v1650 = vsel %vm756, %v1622, 0
        %1652 = vmatprep.subr.bf16.mxu0 0
        %1653 = vmatpush1.bf16.msra.mxu0 %v1636
        %1654 = vmatprep.subr.bf16.mxu0 0
        %1655 = vmatpush1.bf16.msra.mxu0 %v1637
        %1656 = vmatprep.subr.bf16.mxu0 0
        %1657 = vmatpush1.bf16.msra.mxu0 0
        %1658 = vmatprep.subr.bf16.mxu0 0
        %1659 = vmatpush1.bf16.msra.mxu0 0
        %1660 = vmatprep.subr.bf16.mxu0 0
        %1661 = vmatpush1.bf16.msra.mxu0 0
        %1662 = vmatprep.subr.bf16.mxu0 0
        %1663 = vmatpush1.bf16.msra.mxu0 0
        %1664 = vmatprep.subr.bf16.mxu0 0
        %1665 = vmatpush1.bf16.msra.mxu0 0
        %1666 = vmatprep.subr.bf16.mxu0 0
        %1667 = vmatpush1.bf16.msra.mxu0 0
        %1668 = vmatprep.subr.bf16.mxu0 0
        %1669 = vmatpush1.bf16.msra.mxu0 0
        %1670 = vmatprep.subr.bf16.mxu0 0
        %1671 = vmatpush1.bf16.msra.mxu0 0
        %1672 = vmatprep.subr.bf16.mxu0 0
        %1673 = vmatpush1.bf16.msra.mxu0 0
        %1674 = vmatprep.subr.bf16.mxu0 0
        %1675 = vmatpush1.bf16.msra.mxu0 0
        %1676 = vmatprep.subr.bf16.mxu0 0
        %1677 = vmatpush1.bf16.msra.mxu0 0
        %1678 = vmatprep.subr.bf16.mxu0 0
        %1679 = vmatpush1.bf16.msra.mxu0 0
        %1680 = vmatprep.subr.bf16.mxu0 0
        %1681 = vmatpush1.bf16.msra.mxu0 0
        %1682 = vmatprep.subr.bf16.mxu0 0
        %1683 = vmatpush1.bf16.msra.mxu0 0
        %1684 = vmatprep.mubr.bf16.mxu0 0
        %1685 = vmatmul.mubr.bf16.gmra.mrb[0].mxu0 %v1641
        %v1686 = vpop.f32.mrb[0].mxu0
        %v1687 = vadd.f32 0.0, %v1686
        %v1688 = vpop.f32.mrb[0].mxu0
        %v1689 = vpop.f32.mrb[0].mxu0
        %v1690 = vadd.f32 0.0, %v1689
        %v1691 = vpop.f32.mrb[0].mxu0
        %1692 = vmatprep.mubr.bf16.mxu0 0
        %1693 = vmatmul.mubr.bf16.gmra.mrb[0].mxu0 %v1644
        %v1694 = vpop.f32.mrb[0].mxu0
        %v1695 = vadd.f32 0.0, %v1694
        %v1696 = vpop.f32.mrb[0].mxu0
        %v1697 = vpop.f32.mrb[0].mxu0
        %v1698 = vadd.f32 0.0, %v1697
        %v1699 = vpop.f32.mrb[0].mxu0
        %1700 = vmatprep.mubr.bf16.mxu0 0
        %1701 = vmatmul.mubr.bf16.gmra.mrb[0].mxu0 %v1647
        %v1702 = vpop.f32.mrb[0].mxu0
        %v1703 = vadd.f32 0.0, %v1702
        %v1704 = vpop.f32.mrb[0].mxu0
        %v1705 = vpop.f32.mrb[0].mxu0
        %v1706 = vadd.f32 0.0, %v1705
        %v1707 = vpop.f32.mrb[0].mxu0
        %1708 = vmatprep.mubr.bf16.mxu0 0
        %1709 = vmatmul.mubr.bf16.gmra.mrb[0].mxu0 %v1650
        %v1710 = vpop.f32.mrb[0].mxu0
        %v1711 = vadd.f32 0.0, %v1710
        %v1712 = vpop.f32.mrb[0].mxu0
        %v1713 = vpop.f32.mrb[0].mxu0
        %v1714 = vadd.f32 0.0, %v1713
        %v1715 = vpop.f32.mrb[0].mxu0
        %1716 = vdwg.mxu0
        %v1717 = vadd.f32 %v1603, %v1687
        %v1718 = vadd.f32 %v1604, %v1690
        %v1719 = vadd.f32 %v1605, %v1695
        %v1720 = vadd.f32 %v1606, %v1698
        %v1721 = vadd.f32 %v1607, %v1703
        %v1722 = vadd.f32 %v1608, %v1706
        %v1723 = vadd.f32 %v1609, %v1711
        %v1724 = vadd.f32 %v1610, %v1714
        %v1725 = vld [vmem:[%s2] sm:$0x1]
        %v1727 = vlaneseq
        %v1728 = vshrl.u32 %v1727, 7
        %v1729 = vsub.s32 0, %v1728
        %v1730 = vrot.slane %v1725, %v1729
        %v1732 = vmul.f32 %v1717, %v1730
        %v1733 = vmul.f32 %v1718, %v1730
        %v1734 = vmul.f32 %v1719, %v1730
        %v1735 = vmul.f32 %v1720, %v1730
        %v1736 = vmul.f32 %v1721, %v1730
        %v1737 = vmul.f32 %v1722, %v1730
        %v1738 = vmul.f32 %v1723, %v1730
        %v1739 = vmul.f32 %v1724, %v1730
        %v1740 = vld [vmem:[%s3] sm:$0x1]
        %v1742 = vlaneseq
        %v1743 = vshrl.u32 %v1742, 7
        %v1744 = vsub.s32 0, %v1743
        %v1745 = vrot.slane %v1740, %v1744
        %v1747 = vadd.f32 %v1732, %v1745
        %v1748 = vadd.f32 %v1733, %v1745
        %v1749 = vadd.f32 %v1734, %v1745
        %v1750 = vadd.f32 %v1735, %v1745
        %v1751 = vadd.f32 %v1736, %v1745
        %v1752 = vadd.f32 %v1737, %v1745
        %v1753 = vadd.f32 %v1738, %v1745
        %v1754 = vadd.f32 %v1739, %v1745
        %vm1755 = vcmp.gt.f32.partialorder %v1747, 0.0
        %vm1756 = vcmp.gt.f32.partialorder %v1748, 0.0
        %vm1757 = vcmp.gt.f32.partialorder %v1749, 0.0
        %vm1758 = vcmp.gt.f32.partialorder %v1750, 0.0
        %vm1759 = vcmp.gt.f32.partialorder %v1751, 0.0
        %vm1760 = vcmp.gt.f32.partialorder %v1752, 0.0
        %vm1761 = vcmp.gt.f32.partialorder %v1753, 0.0
        %vm1762 = vcmp.gt.f32.partialorder %v1754, 0.0
        %v1763 = vmul.f32 %v1747, 0.1
        %v1764 = vmul.f32 %v1748, 0.1
        %v1765 = vmul.f32 %v1749, 0.1
        %v1766 = vmul.f32 %v1750, 0.1
        %v1767 = vmul.f32 %v1751, 0.1
        %v1768 = vmul.f32 %v1752, 0.1
        %v1769 = vmul.f32 %v1753, 0.1
        %v1770 = vmul.f32 %v1754, 0.1
        %v1771 = vsel %vm1755, %v1747, %v1763
        %v1772 = vsel %vm1756, %v1748, %v1764
        %v1773 = vsel %vm1757, %v1749, %v1765
        %v1774 = vsel %vm1758, %v1750, %v1766
        %v1775 = vsel %vm1759, %v1751, %v1767
        %v1776 = vsel %vm1760, %v1752, %v1768
        %v1777 = vsel %vm1761, %v1753, %v1769
        %v1778 = vsel %vm1762, %v1754, %v1770
        %v1779 = vpack.c.bf16 %v1772, %v1771
        %v1780 = vpack.c.bf16 %v1774, %v1773
        %v1781 = vpack.c.bf16 %v1776, %v1775
        %v1782 = vpack.c.bf16 %v1778, %v1777
        %v1783 = vld [vmem:[%s4] sm:$0xf]
        %v1784 = vld [vmem:[%s4 + $0x4] sm:$0xf]
        %v1785 = vld [vmem:[%s4 + $0x8] sm:$0xf]
        %v1786 = vld [vmem:[%s4 + $0xc] sm:$0xf]
        %v1787 = vld [vmem:[%s4 + $0x10] sm:$0xf]
        %v1788 = vld [vmem:[%s4 + $0x14] sm:$0xf]
        %v1789 = vld [vmem:[%s4 + $0x18] sm:$0xf]
        %v1790 = vld [vmem:[%s4 + $0x1c] sm:$0xf]
        %v1799 = vunpack.c.l.b16 %v1783
        %v1800 = vunpack.c.l.b16 %v1784
        %v1801 = vunpack.c.l.b16 %v1785
        %v1802 = vunpack.c.l.b16 %v1786
        %v1803 = vunpack.c.l.b16 %v1787
        %v1804 = vunpack.c.l.b16 %v1788
        %v1805 = vunpack.c.l.b16 %v1789
        %v1806 = vunpack.c.l.b16 %v1790
        %v1807 = vpack.c.b16 %v1800, %v1799
        %v1808 = vpack.c.b16 %v1802, %v1801
        %v1809 = vpack.c.b16 %v1804, %v1803
        %v1810 = vpack.c.b16 %v1806, %v1805
        %vm1815 = vcmask 523264
        %v1817 = vsel %vm1815, %v1779, 0
        %v1820 = vsel %vm1815, %v1780, 0
        %v1823 = vsel %vm1815, %v1781, 0
        %v1826 = vsel %vm1815, %v1782, 0
        %1828 = vmatprep.subr.bf16.mxu0 0
        %1829 = vmatpush1.bf16.msra.mxu0 %v1807
        %1830 = vmatprep.subr.bf16.mxu0 0
        %1831 = vmatpush1.bf16.msra.mxu0 %v1808
        %1832 = vmatprep.subr.bf16.mxu0 0
        %1833 = vmatpush1.bf16.msra.mxu0 %v1809
        %1834 = vmatprep.subr.bf16.mxu0 0
        %1835 = vmatpush1.bf16.msra.mxu0 %v1810
        %1836 = vmatprep.subr.bf16.mxu0 0
        %1837 = vmatpush1.bf16.msra.mxu0 0
        %1838 = vmatprep.subr.bf16.mxu0 0
        %1839 = vmatpush1.bf16.msra.mxu0 0
        %1840 = vmatprep.subr.bf16.mxu0 0
        %1841 = vmatpush1.bf16.msra.mxu0 0
        %1842 = vmatprep.subr.bf16.mxu0 0
        %1843 = vmatpush1.bf16.msra.mxu0 0
        %1844 = vmatprep.subr.bf16.mxu0 0
        %1845 = vmatpush1.bf16.msra.mxu0 0
        %1846 = vmatprep.subr.bf16.mxu0 0
        %1847 = vmatpush1.bf16.msra.mxu0 0
        %1848 = vmatprep.subr.bf16.mxu0 0
        %1849 = vmatpush1.bf16.msra.mxu0 0
        %1850 = vmatprep.subr.bf16.mxu0 0
        %1851 = vmatpush1.bf16.msra.mxu0 0
        %1852 = vmatprep.subr.bf16.mxu0 0
        %1853 = vmatpush1.bf16.msra.mxu0 0
        %1854 = vmatprep.subr.bf16.mxu0 0
        %1855 = vmatpush1.bf16.msra.mxu0 0
        %1856 = vmatprep.subr.bf16.mxu0 0
        %1857 = vmatpush1.bf16.msra.mxu0 0
        %1858 = vmatprep.subr.bf16.mxu0 0
        %1859 = vmatpush1.bf16.msra.mxu0 0
        %1860 = vmatprep.mubr.bf16.mxu0 0
        %1861 = vmatmul.mubr.bf16.gmra.mrb[0].mxu0 %v1817
        %v1862 = vpop.f32.mrb[0].mxu0
        %v1863 = vadd.f32 0.0, %v1862
        %v1864 = vpop.f32.mrb[0].mxu0
        %v1865 = vpop.f32.mrb[0].mxu0
        %v1866 = vadd.f32 0.0, %v1865
        %v1867 = vpop.f32.mrb[0].mxu0
        %1868 = vmatprep.mubr.bf16.mxu0 0
        %1869 = vmatmul.mubr.bf16.gmra.mrb[0].mxu0 %v1820
        %v1870 = vpop.f32.mrb[0].mxu0
        %v1871 = vadd.f32 0.0, %v1870
        %v1872 = vpop.f32.mrb[0].mxu0
        %v1873 = vpop.f32.mrb[0].mxu0
        %v1874 = vadd.f32 0.0, %v1873
        %v1875 = vpop.f32.mrb[0].mxu0
        %1876 = vmatprep.mubr.bf16.mxu0 0
        %1877 = vmatmul.mubr.bf16.gmra.mrb[0].mxu0 %v1823
        %v1878 = vpop.f32.mrb[0].mxu0
        %v1879 = vadd.f32 0.0, %v1878
        %v1880 = vpop.f32.mrb[0].mxu0
        %v1881 = vpop.f32.mrb[0].mxu0
        %v1882 = vadd.f32 0.0, %v1881
        %v1883 = vpop.f32.mrb[0].mxu0
        %1884 = vmatprep.mubr.bf16.mxu0 0
        %1885 = vmatmul.mubr.bf16.gmra.mrb[0].mxu0 %v1826
        %v1886 = vpop.f32.mrb[0].mxu0
        %v1887 = vadd.f32 0.0, %v1886
        %v1888 = vpop.f32.mrb[0].mxu0
        %v1889 = vpop.f32.mrb[0].mxu0
        %v1890 = vadd.f32 0.0, %v1889
        %v1891 = vpop.f32.mrb[0].mxu0
        %1892 = vdwg.mxu0
        %v1893 = vld [vmem:[%s5] sm:$0x1]
        %v1895 = vlaneseq
        %v1896 = vshrl.u32 %v1895, 7
        %v1897 = vsub.s32 0, %v1896
        %v1898 = vrot.slane %v1893, %v1897
        %v1900 = vmul.f32 %v1863, %v1898
        %v1901 = vmul.f32 %v1866, %v1898
        %v1902 = vmul.f32 %v1871, %v1898
        %v1903 = vmul.f32 %v1874, %v1898
        %v1904 = vmul.f32 %v1879, %v1898
        %v1905 = vmul.f32 %v1882, %v1898
        %v1906 = vmul.f32 %v1887, %v1898
        %v1907 = vmul.f32 %v1890, %v1898
        %v1908 = vld [vmem:[%s6] sm:$0x1]
        %v1910 = vlaneseq
        %v1911 = vshrl.u32 %v1910, 7
        %v1912 = vsub.s32 0, %v1911
        %v1913 = vrot.slane %v1908, %v1912
        %v1915 = vadd.f32 %v1900, %v1913
        %v1916 = vadd.f32 %v1901, %v1913
        %v1917 = vadd.f32 %v1902, %v1913
        %v1918 = vadd.f32 %v1903, %v1913
        %v1919 = vadd.f32 %v1904, %v1913
        %v1920 = vadd.f32 %v1905, %v1913
        %v1921 = vadd.f32 %v1906, %v1913
        %v1922 = vadd.f32 %v1907, %v1913
        %vm1923 = vcmp.gt.f32.partialorder %v1915, 0.0
        %vm1924 = vcmp.gt.f32.partialorder %v1916, 0.0
        %vm1925 = vcmp.gt.f32.partialorder %v1917, 0.0
        %vm1926 = vcmp.gt.f32.partialorder %v1918, 0.0
        %vm1927 = vcmp.gt.f32.partialorder %v1919, 0.0
        %vm1928 = vcmp.gt.f32.partialorder %v1920, 0.0
        %vm1929 = vcmp.gt.f32.partialorder %v1921, 0.0
        %vm1930 = vcmp.gt.f32.partialorder %v1922, 0.0
        %v1931 = vmul.f32 %v1915, 0.1
        %v1932 = vmul.f32 %v1916, 0.1
        %v1933 = vmul.f32 %v1917, 0.1
        %v1934 = vmul.f32 %v1918, 0.1
        %v1935 = vmul.f32 %v1919, 0.1
        %v1936 = vmul.f32 %v1920, 0.1
        %v1937 = vmul.f32 %v1921, 0.1
        %v1938 = vmul.f32 %v1922, 0.1
        %v1939 = vsel %vm1923, %v1915, %v1931
        %v1940 = vsel %vm1924, %v1916, %v1932
        %v1941 = vsel %vm1925, %v1917, %v1933
        %v1942 = vsel %vm1926, %v1918, %v1934
        %v1943 = vsel %vm1927, %v1919, %v1935
        %v1944 = vsel %vm1928, %v1920, %v1936
        %v1945 = vsel %vm1929, %v1921, %v1937
        %v1946 = vsel %vm1930, %v1922, %v1938
        %v1947 = vld [vmem:[%s7] sm:$0xf]
        %v1948 = vld [vmem:[%s7 + $0x4] sm:$0xf]
        %v1949 = vld [vmem:[%s7 + $0x8] sm:$0xf]
        %v1950 = vld [vmem:[%s7 + $0xc] sm:$0xf]
        %v1951 = vld [vmem:[%s7 + $0x10] sm:$0xf]
        %v1952 = vld [vmem:[%s7 + $0x14] sm:$0xf]
        %v1953 = vld [vmem:[%s7 + $0x18] sm:$0xf]
        %v1954 = vld [vmem:[%s7 + $0x1c] sm:$0xf]
        %v1963 = vunpack.c.l.b16 %v1947
        %v1964 = vunpack.c.l.b16 %v1948
        %v1965 = vunpack.c.l.b16 %v1949
        %v1966 = vunpack.c.l.b16 %v1950
        %v1967 = vunpack.c.l.b16 %v1951
        %v1968 = vunpack.c.l.b16 %v1952
        %v1969 = vunpack.c.l.b16 %v1953
        %v1970 = vunpack.c.l.b16 %v1954
        %v1971 = vpack.c.b16 %v1964, %v1963
        %v1972 = vpack.c.b16 %v1966, %v1965
        %v1973 = vpack.c.b16 %v1968, %v1967
        %v1974 = vpack.c.b16 %v1970, %v1969
        %1979 = vmatprep.subr.bf16.mxu0 0
        %1980 = vmatpush1.bf16.msra.mxu0 %v1971
        %1981 = vmatprep.subr.bf16.mxu0 0
        %1982 = vmatpush1.bf16.msra.mxu0 %v1972
        %1983 = vmatprep.subr.bf16.mxu0 0
        %1984 = vmatpush1.bf16.msra.mxu0 %v1973
        %1985 = vmatprep.subr.bf16.mxu0 0
        %1986 = vmatpush1.bf16.msra.mxu0 %v1974
        %1987 = vmatprep.subr.bf16.mxu0 0
        %1988 = vmatpush1.bf16.msra.mxu0 0
        %1989 = vmatprep.subr.bf16.mxu0 0
        %1990 = vmatpush1.bf16.msra.mxu0 0
        %1991 = vmatprep.subr.bf16.mxu0 0
        %1992 = vmatpush1.bf16.msra.mxu0 0
        %1993 = vmatprep.subr.bf16.mxu0 0
        %1994 = vmatpush1.bf16.msra.mxu0 0
        %1995 = vmatprep.subr.bf16.mxu0 0
        %1996 = vmatpush1.bf16.msra.mxu0 0
        %1997 = vmatprep.subr.bf16.mxu0 0
        %1998 = vmatpush1.bf16.msra.mxu0 0
        %1999 = vmatprep.subr.bf16.mxu0 0
        %2000 = vmatpush1.bf16.msra.mxu0 0
        %2001 = vmatprep.subr.bf16.mxu0 0
        %2002 = vmatpush1.bf16.msra.mxu0 0
        %2003 = vmatprep.subr.bf16.mxu0 0
        %2004 = vmatpush1.bf16.msra.mxu0 0
        %2005 = vmatprep.subr.bf16.mxu0 0
        %2006 = vmatpush1.bf16.msra.mxu0 0
        %2007 = vmatprep.subr.bf16.mxu0 0
        %2008 = vmatpush1.bf16.msra.mxu0 0
        %2009 = vmatprep.subr.bf16.mxu0 0
        %2010 = vmatpush1.bf16.msra.mxu0 0
        %2011 = vmatprep.mubr.bf16.mxu0 0
        %2012 = vmatmul.mubr.bf16.gmra.mrb[0].mxu0 %v1817
        %v2013 = vpop.f32.mrb[0].mxu0
        %v2014 = vadd.f32 0.0, %v2013
        %v2015 = vpop.f32.mrb[0].mxu0
        %v2016 = vpop.f32.mrb[0].mxu0
        %v2017 = vadd.f32 0.0, %v2016
        %v2018 = vpop.f32.mrb[0].mxu0
        %2019 = vmatprep.mubr.bf16.mxu0 0
        %2020 = vmatmul.mubr.bf16.gmra.mrb[0].mxu0 %v1820
        %v2021 = vpop.f32.mrb[0].mxu0
        %v2022 = vadd.f32 0.0, %v2021
        %v2023 = vpop.f32.mrb[0].mxu0
        %v2024 = vpop.f32.mrb[0].mxu0
        %v2025 = vadd.f32 0.0, %v2024
        %v2026 = vpop.f32.mrb[0].mxu0
        %2027 = vmatprep.mubr.bf16.mxu0 0
        %2028 = vmatmul.mubr.bf16.gmra.mrb[0].mxu0 %v1823
        %v2029 = vpop.f32.mrb[0].mxu0
        %v2030 = vadd.f32 0.0, %v2029
        %v2031 = vpop.f32.mrb[0].mxu0
        %v2032 = vpop.f32.mrb[0].mxu0
        %v2033 = vadd.f32 0.0, %v2032
        %v2034 = vpop.f32.mrb[0].mxu0
        %2035 = vmatprep.mubr.bf16.mxu0 0
        %2036 = vmatmul.mubr.bf16.gmra.mrb[0].mxu0 %v1826
        %v2037 = vpop.f32.mrb[0].mxu0
        %v2038 = vadd.f32 0.0, %v2037
        %v2039 = vpop.f32.mrb[0].mxu0
        %v2040 = vpop.f32.mrb[0].mxu0
        %v2041 = vadd.f32 0.0, %v2040
        %v2042 = vpop.f32.mrb[0].mxu0
        %2043 = vdwg.mxu0
        %v2044 = vld [vmem:[%s8] sm:$0x1]
        %v2046 = vlaneseq
        %v2047 = vshrl.u32 %v2046, 7
        %v2048 = vsub.s32 0, %v2047
        %v2049 = vrot.slane %v2044, %v2048
        %v2051 = vmul.f32 %v2014, %v2049
        %v2052 = vmul.f32 %v2017, %v2049
        %v2053 = vmul.f32 %v2022, %v2049
        %v2054 = vmul.f32 %v2025, %v2049
        %v2055 = vmul.f32 %v2030, %v2049
        %v2056 = vmul.f32 %v2033, %v2049
        %v2057 = vmul.f32 %v2038, %v2049
        %v2058 = vmul.f32 %v2041, %v2049
        %v2059 = vld [vmem:[%s9] sm:$0x1]
        %v2061 = vlaneseq
        %v2062 = vshrl.u32 %v2061, 7
        %v2063 = vsub.s32 0, %v2062
        %v2064 = vrot.slane %v2059, %v2063
        %v2066 = vadd.f32 %v2051, %v2064
        %v2067 = vadd.f32 %v2052, %v2064
        %v2068 = vadd.f32 %v2053, %v2064
        %v2069 = vadd.f32 %v2054, %v2064
        %v2070 = vadd.f32 %v2055, %v2064
        %v2071 = vadd.f32 %v2056, %v2064
        %v2072 = vadd.f32 %v2057, %v2064
        %v2073 = vadd.f32 %v2058, %v2064
        %vm2074 = vcmp.gt.f32.partialorder %v2066, 0.0
        %vm2075 = vcmp.gt.f32.partialorder %v2067, 0.0
        %vm2076 = vcmp.gt.f32.partialorder %v2068, 0.0
        %vm2077 = vcmp.gt.f32.partialorder %v2069, 0.0
        %vm2078 = vcmp.gt.f32.partialorder %v2070, 0.0
        %vm2079 = vcmp.gt.f32.partialorder %v2071, 0.0
        %vm2080 = vcmp.gt.f32.partialorder %v2072, 0.0
        %vm2081 = vcmp.gt.f32.partialorder %v2073, 0.0
        %v2082 = vmul.f32 %v2066, 0.1
        %v2083 = vmul.f32 %v2067, 0.1
        %v2084 = vmul.f32 %v2068, 0.1
        %v2085 = vmul.f32 %v2069, 0.1
        %v2086 = vmul.f32 %v2070, 0.1
        %v2087 = vmul.f32 %v2071, 0.1
        %v2088 = vmul.f32 %v2072, 0.1
        %v2089 = vmul.f32 %v2073, 0.1
        %v2090 = vsel %vm2074, %v2066, %v2082
        %v2091 = vsel %vm2075, %v2067, %v2083
        %v2092 = vsel %vm2076, %v2068, %v2084
        %v2093 = vsel %vm2077, %v2069, %v2085
        %v2094 = vsel %vm2078, %v2070, %v2086
        %v2095 = vsel %vm2079, %v2071, %v2087
        %v2096 = vsel %vm2080, %v2072, %v2088
        %v2097 = vsel %vm2081, %v2073, %v2089
        %v2098 = vpack.c.bf16 %v2091, %v2090
        %v2099 = vpack.c.bf16 %v2093, %v2092
        %v2100 = vpack.c.bf16 %v2095, %v2094
        %v2101 = vpack.c.bf16 %v2097, %v2096
        %v2102 = vld [vmem:[%s10] sm:$0xf]
        %v2103 = vld [vmem:[%s10 + $0x4] sm:$0xf]
        %v2104 = vld [vmem:[%s10 + $0x8] sm:$0xf]
        %v2105 = vld [vmem:[%s10 + $0xc] sm:$0xf]
        %v2106 = vld [vmem:[%s10 + $0x10] sm:$0xf]
        %v2107 = vld [vmem:[%s10 + $0x14] sm:$0xf]
        %v2108 = vld [vmem:[%s10 + $0x18] sm:$0xf]
        %v2109 = vld [vmem:[%s10 + $0x1c] sm:$0xf]
        %v2118 = vunpack.c.l.b16 %v2102
        %v2119 = vunpack.c.l.b16 %v2103
        %v2120 = vunpack.c.l.b16 %v2104
        %v2121 = vunpack.c.l.b16 %v2105
        %v2122 = vunpack.c.l.b16 %v2106
        %v2123 = vunpack.c.l.b16 %v2107
        %v2124 = vunpack.c.l.b16 %v2108
        %v2125 = vunpack.c.l.b16 %v2109
        %v2126 = vpack.c.b16 %v2119, %v2118
        %v2127 = vpack.c.b16 %v2121, %v2120
        %v2128 = vpack.c.b16 %v2123, %v2122
        %v2129 = vpack.c.b16 %v2125, %v2124
        %v2135 = vsel %vm1815, %v2098, 0
        %v2138 = vsel %vm1815, %v2099, 0
        %v2141 = vsel %vm1815, %v2100, 0
        %v2144 = vsel %vm1815, %v2101, 0
        %2146 = vmatprep.subr.bf16.mxu0 0
        %2147 = vmatpush1.bf16.msra.mxu0 %v2126
        %2148 = vmatprep.subr.bf16.mxu0 0
        %2149 = vmatpush1.bf16.msra.mxu0 %v2127
        %2150 = vmatprep.subr.bf16.mxu0 0
        %2151 = vmatpush1.bf16.msra.mxu0 %v2128
        %2152 = vmatprep.subr.bf16.mxu0 0
        %2153 = vmatpush1.bf16.msra.mxu0 %v2129
        %2154 = vmatprep.subr.bf16.mxu0 0
        %2155 = vmatpush1.bf16.msra.mxu0 0
        %2156 = vmatprep.subr.bf16.mxu0 0
        %2157 = vmatpush1.bf16.msra.mxu0 0
        %2158 = vmatprep.subr.bf16.mxu0 0
        %2159 = vmatpush1.bf16.msra.mxu0 0
        %2160 = vmatprep.subr.bf16.mxu0 0
        %2161 = vmatpush1.bf16.msra.mxu0 0
        %2162 = vmatprep.subr.bf16.mxu0 0
        %2163 = vmatpush1.bf16.msra.mxu0 0
        %2164 = vmatprep.subr.bf16.mxu0 0
        %2165 = vmatpush1.bf16.msra.mxu0 0
        %2166 = vmatprep.subr.bf16.mxu0 0
        %2167 = vmatpush1.bf16.msra.mxu0 0
        %2168 = vmatprep.subr.bf16.mxu0 0
        %2169 = vmatpush1.bf16.msra.mxu0 0
        %2170 = vmatprep.subr.bf16.mxu0 0
        %2171 = vmatpush1.bf16.msra.mxu0 0
        %2172 = vmatprep.subr.bf16.mxu0 0
        %2173 = vmatpush1.bf16.msra.mxu0 0
        %2174 = vmatprep.subr.bf16.mxu0 0
        %2175 = vmatpush1.bf16.msra.mxu0 0
        %2176 = vmatprep.subr.bf16.mxu0 0
        %2177 = vmatpush1.bf16.msra.mxu0 0
        %2178 = vmatprep.mubr.bf16.mxu0 0
        %2179 = vmatmul.mubr.bf16.gmra.mrb[0].mxu0 %v2135
        %v2180 = vpop.f32.mrb[0].mxu0
        %v2181 = vadd.f32 0.0, %v2180
        %v2182 = vpop.f32.mrb[0].mxu0
        %v2183 = vpop.f32.mrb[0].mxu0
        %v2184 = vadd.f32 0.0, %v2183
        %v2185 = vpop.f32.mrb[0].mxu0
        %2186 = vmatprep.mubr.bf16.mxu0 0
        %2187 = vmatmul.mubr.bf16.gmra.mrb[0].mxu0 %v2138
        %v2188 = vpop.f32.mrb[0].mxu0
        %v2189 = vadd.f32 0.0, %v2188
        %v2190 = vpop.f32.mrb[0].mxu0
        %v2191 = vpop.f32.mrb[0].mxu0
        %v2192 = vadd.f32 0.0, %v2191
        %v2193 = vpop.f32.mrb[0].mxu0
        %2194 = vmatprep.mubr.bf16.mxu0 0
        %2195 = vmatmul.mubr.bf16.gmra.mrb[0].mxu0 %v2141
        %v2196 = vpop.f32.mrb[0].mxu0
        %v2197 = vadd.f32 0.0, %v2196
        %v2198 = vpop.f32.mrb[0].mxu0
        %v2199 = vpop.f32.mrb[0].mxu0
        %v2200 = vadd.f32 0.0, %v2199
        %v2201 = vpop.f32.mrb[0].mxu0
        %2202 = vmatprep.mubr.bf16.mxu0 0
        %2203 = vmatmul.mubr.bf16.gmra.mrb[0].mxu0 %v2144
        %v2204 = vpop.f32.mrb[0].mxu0
        %v2205 = vadd.f32 0.0, %v2204
        %v2206 = vpop.f32.mrb[0].mxu0
        %v2207 = vpop.f32.mrb[0].mxu0
        %v2208 = vadd.f32 0.0, %v2207
        %v2209 = vpop.f32.mrb[0].mxu0
        %2210 = vdwg.mxu0
        %v2211 = vld [vmem:[%s11] sm:$0x1]
        %v2213 = vlaneseq
        %v2214 = vshrl.u32 %v2213, 7
        %v2215 = vsub.s32 0, %v2214
        %v2216 = vrot.slane %v2211, %v2215
        %v2218 = vmul.f32 %v2181, %v2216
        %v2219 = vmul.f32 %v2184, %v2216
        %v2220 = vmul.f32 %v2189, %v2216
        %v2221 = vmul.f32 %v2192, %v2216
        %v2222 = vmul.f32 %v2197, %v2216
        %v2223 = vmul.f32 %v2200, %v2216
        %v2224 = vmul.f32 %v2205, %v2216
        %v2225 = vmul.f32 %v2208, %v2216
        %v2226 = vld [vmem:[%s12] sm:$0x1]
        %v2228 = vlaneseq
        %v2229 = vshrl.u32 %v2228, 7
        %v2230 = vsub.s32 0, %v2229
        %v2231 = vrot.slane %v2226, %v2230
        %v2233 = vadd.f32 %v2218, %v2231
        %v2234 = vadd.f32 %v2219, %v2231
        %v2235 = vadd.f32 %v2220, %v2231
        %v2236 = vadd.f32 %v2221, %v2231
        %v2237 = vadd.f32 %v2222, %v2231
        %v2238 = vadd.f32 %v2223, %v2231
        %v2239 = vadd.f32 %v2224, %v2231
        %v2240 = vadd.f32 %v2225, %v2231
        %vm2241 = vcmp.gt.f32.partialorder %v2233, 0.0
        %vm2242 = vcmp.gt.f32.partialorder %v2234, 0.0
        %vm2243 = vcmp.gt.f32.partialorder %v2235, 0.0
        %vm2244 = vcmp.gt.f32.partialorder %v2236, 0.0
        %vm2245 = vcmp.gt.f32.partialorder %v2237, 0.0
        %vm2246 = vcmp.gt.f32.partialorder %v2238, 0.0
        %vm2247 = vcmp.gt.f32.partialorder %v2239, 0.0
        %vm2248 = vcmp.gt.f32.partialorder %v2240, 0.0
        %v2249 = vmul.f32 %v2233, 0.1
        %v2250 = vmul.f32 %v2234, 0.1
        %v2251 = vmul.f32 %v2235, 0.1
        %v2252 = vmul.f32 %v2236, 0.1
        %v2253 = vmul.f32 %v2237, 0.1
        %v2254 = vmul.f32 %v2238, 0.1
        %v2255 = vmul.f32 %v2239, 0.1
        %v2256 = vmul.f32 %v2240, 0.1
        %v2257 = vsel %vm2241, %v2233, %v2249
        %v2258 = vsel %vm2242, %v2234, %v2250
        %v2259 = vsel %vm2243, %v2235, %v2251
        %v2260 = vsel %vm2244, %v2236, %v2252
        %v2261 = vsel %vm2245, %v2237, %v2253
        %v2262 = vsel %vm2246, %v2238, %v2254
        %v2263 = vsel %vm2247, %v2239, %v2255
        %v2264 = vsel %vm2248, %v2240, %v2256
        %2265 = vst.msk [vmem:[#allocation2] sm:$0xff] %vm756, 0.0
        %vm2266 = vcmask 254976
        %2267 = vst.msk [vmem:[#allocation2 + $0x8] sm:$0x3] %vm2266, 0.0
        %2268 = vst.msk [vmem:[#allocation2 + $0x10] sm:$0xff] %vm756, 0.0
        %2269 = vst.msk [vmem:[#allocation2 + $0x18] sm:$0x3] %vm2266, 0.0
        %2270 = vst.msk [vmem:[#allocation2 + $0x20] sm:$0xff] %vm756, 0.0
        %2271 = vst.msk [vmem:[#allocation2 + $0x28] sm:$0x3] %vm2266, 0.0
        %2272 = vst.msk [vmem:[#allocation2 + $0x30] sm:$0xff] %vm756, 0.0
        %2273 = vst.msk [vmem:[#allocation2 + $0x38] sm:$0x3] %vm2266, 0.0
        %2274 = vst.msk [vmem:[#allocation2 + $0x40] sm:$0xff] %vm756, 0.0
        %2275 = vst.msk [vmem:[#allocation2 + $0x48] sm:$0x3] %vm2266, 0.0
        %2276 = vst.msk [vmem:[#allocation2 + $0x50] sm:$0xff] %vm756, 0.0
        %2277 = vst.msk [vmem:[#allocation2 + $0x58] sm:$0x3] %vm2266, 0.0
        %2278 = vst.msk [vmem:[#allocation2 + $0x60] sm:$0xff] %vm756, 0.0
        %2279 = vst.msk [vmem:[#allocation2 + $0x68] sm:$0x3] %vm2266, 0.0
        %2280 = vst.msk [vmem:[#allocation2 + $0x70] sm:$0xff] %vm756, 0.0
        %2281 = vst.msk [vmem:[#allocation2 + $0x78] sm:$0x3] %vm2266, 0.0
        %2282 = vst.msk [vmem:[#allocation2 + $0x80] sm:$0xff] %vm756, 0.0
        %2283 = vst.msk [vmem:[#allocation2 + $0x88] sm:$0x3] %vm2266, 0.0
        %2284 = vst.msk [vmem:[#allocation2 + $0x90] sm:$0xff] %vm756, 0.0
        %2285 = vst.msk [vmem:[#allocation2 + $0x98] sm:$0x3] %vm2266, 0.0
        %s2286 = scalar_lea.vmem [#allocation2], 16
        %2287 = vst.msk [vmem:[%s2286 + $0x1] sm:$0xff] %vm756, %v2257
        %2288 = vst.msk [vmem:[%s2286 + $0x11] sm:$0xff] %vm756, %v2258
        %2289 = vst.msk [vmem:[%s2286 + $0x21] sm:$0xff] %vm756, %v2259
        %2290 = vst.msk [vmem:[%s2286 + $0x31] sm:$0xff] %vm756, %v2260
        %2291 = vst.msk [vmem:[%s2286 + $0x41] sm:$0xff] %vm756, %v2261
        %2292 = vst.msk [vmem:[%s2286 + $0x51] sm:$0xff] %vm756, %v2262
        %2293 = vst.msk [vmem:[%s2286 + $0x61] sm:$0xff] %vm756, %v2263
        %2294 = vst.msk [vmem:[%s2286 + $0x71] sm:$0xff] %vm756, %v2264
        %v2295 = vld [vmem:[#allocation2] sm:$0xff]
        %v2296 = vld [vmem:[#allocation2 + $0x10] sm:$0xff]
        %v2297 = vld [vmem:[#allocation2 + $0x20] sm:$0xff]
        %v2298 = vld [vmem:[#allocation2 + $0x30] sm:$0xff]
        %v2299 = vld [vmem:[#allocation2 + $0x40] sm:$0xff]
        %v2300 = vld [vmem:[#allocation2 + $0x50] sm:$0xff]
        %v2301 = vld [vmem:[#allocation2 + $0x60] sm:$0xff]
        %v2302 = vld [vmem:[#allocation2 + $0x70] sm:$0xff]
        %v2303 = vpack.c.bf16 %v2296, %v2295
        %v2304 = vpack.c.bf16 %v2298, %v2297
        %v2305 = vpack.c.bf16 %v2300, %v2299
        %v2306 = vpack.c.bf16 %v2302, %v2301
        %v2307 = vld [vmem:[%s13] sm:$0xf]
        %v2308 = vld [vmem:[%s13 + $0x4] sm:$0xf]
        %v2309 = vld [vmem:[%s13 + $0x8] sm:$0xf]
        %v2310 = vld [vmem:[%s13 + $0xc] sm:$0xf]
        %v2311 = vld [vmem:[#allocation2 + $0x1] sm:$0xff]
        %v2312 = vld [vmem:[#allocation2 + $0x11] sm:$0xff]
        %v2313 = vld [vmem:[#allocation2 + $0x21] sm:$0xff]
        %v2314 = vld [vmem:[#allocation2 + $0x31] sm:$0xff]
        %v2315 = vld [vmem:[#allocation2 + $0x41] sm:$0xff]
        %v2316 = vld [vmem:[#allocation2 + $0x51] sm:$0xff]
        %v2317 = vld [vmem:[#allocation2 + $0x61] sm:$0xff]
        %v2318 = vld [vmem:[#allocation2 + $0x71] sm:$0xff]
        %v2319 = vpack.c.bf16 %v2312, %v2311
        %v2320 = vpack.c.bf16 %v2314, %v2313
        %v2321 = vpack.c.bf16 %v2316, %v2315
        %v2322 = vpack.c.bf16 %v2318, %v2317
        %s2323 = scalar_lea.vmem %s13, 16
        %v2324 = vld [vmem:[%s2323] sm:$0xf]
        %v2325 = vld [vmem:[%s2323 + $0x4] sm:$0xf]
        %v2326 = vld [vmem:[%s2323 + $0x8] sm:$0xf]
        %v2327 = vld [vmem:[%s2323 + $0xc] sm:$0xf]
        %v2332 = vunpack.c.l.b16 %v2324
        %v2333 = vunpack.c.l.b16 %v2325
        %v2334 = vunpack.c.l.b16 %v2326
        %v2335 = vunpack.c.l.b16 %v2327
        %v2336 = vpack.c.b16 %v2333, %v2332
        %v2337 = vpack.c.b16 %v2335, %v2334
        %v2341 = vsel %vm756, %v2319, 0
        %v2344 = vsel %vm756, %v2320, 0
        %v2347 = vsel %vm756, %v2321, 0
        %v2350 = vsel %vm756, %v2322, 0
        %2352 = vmatprep.subr.bf16.mxu0 0
        %2353 = vmatpush1.bf16.msra.mxu0 %v2336
        %2354 = vmatprep.subr.bf16.mxu0 0
        %2355 = vmatpush1.bf16.msra.mxu0 %v2337
        %2356 = vmatprep.subr.bf16.mxu0 0
        %2357 = vmatpush1.bf16.msra.mxu0 0
        %2358 = vmatprep.subr.bf16.mxu0 0
        %2359 = vmatpush1.bf16.msra.mxu0 0
        %2360 = vmatprep.subr.bf16.mxu0 0
        %2361 = vmatpush1.bf16.msra.mxu0 0
        %2362 = vmatprep.subr.bf16.mxu0 0
        %2363 = vmatpush1.bf16.msra.mxu0 0
        %2364 = vmatprep.subr.bf16.mxu0 0
        %2365 = vmatpush1.bf16.msra.mxu0 0
        %2366 = vmatprep.subr.bf16.mxu0 0
        %2367 = vmatpush1.bf16.msra.mxu0 0
        %2368 = vmatprep.subr.bf16.mxu0 0
        %2369 = vmatpush1.bf16.msra.mxu0 0
        %2370 = vmatprep.subr.bf16.mxu0 0
        %2371 = vmatpush1.bf16.msra.mxu0 0
        %2372 = vmatprep.subr.bf16.mxu0 0
        %2373 = vmatpush1.bf16.msra.mxu0 0
        %2374 = vmatprep.subr.bf16.mxu0 0
        %2375 = vmatpush1.bf16.msra.mxu0 0
        %2376 = vmatprep.subr.bf16.mxu0 0
        %2377 = vmatpush1.bf16.msra.mxu0 0
        %2378 = vmatprep.subr.bf16.mxu0 0
        %2379 = vmatpush1.bf16.msra.mxu0 0
        %2380 = vmatprep.subr.bf16.mxu0 0
        %2381 = vmatpush1.bf16.msra.mxu0 0
        %2382 = vmatprep.subr.bf16.mxu0 0
        %2383 = vmatpush1.bf16.msra.mxu0 0
        %2384 = vmatprep.mubr.bf16.mxu0 0
        %2385 = vmatmul.mubr.bf16.gmra.mrb[0].mxu0 %v2341
        %v2386 = vpop.f32.mrb[0].mxu0
        %v2387 = vadd.f32 0.0, %v2386
        %v2388 = vpop.f32.mrb[0].mxu0
        %v2389 = vpop.f32.mrb[0].mxu0
        %v2390 = vadd.f32 0.0, %v2389
        %v2391 = vpop.f32.mrb[0].mxu0
        %2392 = vmatprep.mubr.bf16.mxu0 0
        %2393 = vmatmul.mubr.bf16.gmra.mrb[0].mxu0 %v2344
        %v2394 = vpop.f32.mrb[0].mxu0
        %v2395 = vadd.f32 0.0, %v2394
        %v2396 = vpop.f32.mrb[0].mxu0
        %v2397 = vpop.f32.mrb[0].mxu0
        %v2398 = vadd.f32 0.0, %v2397
        %v2399 = vpop.f32.mrb[0].mxu0
        %2400 = vmatprep.mubr.bf16.mxu0 0
        %2401 = vmatmul.mubr.bf16.gmra.mrb[0].mxu0 %v2347
        %v2402 = vpop.f32.mrb[0].mxu0
        %v2403 = vadd.f32 0.0, %v2402
        %v2404 = vpop.f32.mrb[0].mxu0
        %v2405 = vpop.f32.mrb[0].mxu0
        %v2406 = vadd.f32 0.0, %v2405
        %v2407 = vpop.f32.mrb[0].mxu0
        %2408 = vmatprep.mubr.bf16.mxu0 0
        %2409 = vmatmul.mubr.bf16.gmra.mrb[0].mxu0 %v2350
        %v2410 = vpop.f32.mrb[0].mxu0
        %v2411 = vadd.f32 0.0, %v2410
        %v2412 = vpop.f32.mrb[0].mxu0
        %v2413 = vpop.f32.mrb[0].mxu0
        %v2414 = vadd.f32 0.0, %v2413
        %v2415 = vpop.f32.mrb[0].mxu0
        %2416 = vdwg.mxu0
        %v2421 = vunpack.c.l.b16 %v2307
        %v2422 = vunpack.c.l.b16 %v2308
        %v2423 = vunpack.c.l.b16 %v2309
        %v2424 = vunpack.c.l.b16 %v2310
        %v2425 = vpack.c.b16 %v2422, %v2421
        %v2426 = vpack.c.b16 %v2424, %v2423
        %v2430 = vsel %vm756, %v2303, 0
        %v2433 = vsel %vm756, %v2304, 0
        %v2436 = vsel %vm756, %v2305, 0
        %v2439 = vsel %vm756, %v2306, 0
        %2441 = vmatprep.subr.bf16.mxu0 0
        %2442 = vmatpush1.bf16.msra.mxu0 %v2425
        %2443 = vmatprep.subr.bf16.mxu0 0
        %2444 = vmatpush1.bf16.msra.mxu0 %v2426
        %2445 = vmatprep.subr.bf16.mxu0 0
        %2446 = vmatpush1.bf16.msra.mxu0 0
        %2447 = vmatprep.subr.bf16.mxu0 0
        %2448 = vmatpush1.bf16.msra.mxu0 0
        %2449 = vmatprep.subr.bf16.mxu0 0
        %2450 = vmatpush1.bf16.msra.mxu0 0
        %2451 = vmatprep.subr.bf16.mxu0 0
        %2452 = vmatpush1.bf16.msra.mxu0 0
        %2453 = vmatprep.subr.bf16.mxu0 0
        %2454 = vmatpush1.bf16.msra.mxu0 0
        %2455 = vmatprep.subr.bf16.mxu0 0
        %2456 = vmatpush1.bf16.msra.mxu0 0
        %2457 = vmatprep.subr.bf16.mxu0 0
        %2458 = vmatpush1.bf16.msra.mxu0 0
        %2459 = vmatprep.subr.bf16.mxu0 0
        %2460 = vmatpush1.bf16.msra.mxu0 0
        %2461 = vmatprep.subr.bf16.mxu0 0
        %2462 = vmatpush1.bf16.msra.mxu0 0
        %2463 = vmatprep.subr.bf16.mxu0 0
        %2464 = vmatpush1.bf16.msra.mxu0 0
        %2465 = vmatprep.subr.bf16.mxu0 0
        %2466 = vmatpush1.bf16.msra.mxu0 0
        %2467 = vmatprep.subr.bf16.mxu0 0
        %2468 = vmatpush1.bf16.msra.mxu0 0
        %2469 = vmatprep.subr.bf16.mxu0 0
        %2470 = vmatpush1.bf16.msra.mxu0 0
        %2471 = vmatprep.subr.bf16.mxu0 0
        %2472 = vmatpush1.bf16.msra.mxu0 0
        %2473 = vmatprep.mubr.bf16.mxu0 0
        %2474 = vmatmul.mubr.bf16.gmra.mrb[0].mxu0 %v2430
        %v2475 = vpop.f32.mrb[0].mxu0
        %v2476 = vadd.f32 %v2387, %v2475
        %v2477 = vpop.f32.mrb[0].mxu0
        %v2478 = vpop.f32.mrb[0].mxu0
        %v2479 = vadd.f32 %v2390, %v2478
        %v2480 = vpop.f32.mrb[0].mxu0
        %2481 = vmatprep.mubr.bf16.mxu0 0
        %2482 = vmatmul.mubr.bf16.gmra.mrb[0].mxu0 %v2433
        %v2483 = vpop.f32.mrb[0].mxu0
        %v2484 = vadd.f32 %v2395, %v2483
        %v2485 = vpop.f32.mrb[0].mxu0
        %v2486 = vpop.f32.mrb[0].mxu0
        %v2487 = vadd.f32 %v2398, %v2486
        %v2488 = vpop.f32.mrb[0].mxu0
        %2489 = vmatprep.mubr.bf16.mxu0 0
        %2490 = vmatmul.mubr.bf16.gmra.mrb[0].mxu0 %v2436
        %v2491 = vpop.f32.mrb[0].mxu0
        %v2492 = vadd.f32 %v2403, %v2491
        %v2493 = vpop.f32.mrb[0].mxu0
        %v2494 = vpop.f32.mrb[0].mxu0
        %v2495 = vadd.f32 %v2406, %v2494
        %v2496 = vpop.f32.mrb[0].mxu0
        %2497 = vmatprep.mubr.bf16.mxu0 0
        %2498 = vmatmul.mubr.bf16.gmra.mrb[0].mxu0 %v2439
        %v2499 = vpop.f32.mrb[0].mxu0
        %v2500 = vadd.f32 %v2411, %v2499
        %v2501 = vpop.f32.mrb[0].mxu0
        %v2502 = vpop.f32.mrb[0].mxu0
        %v2503 = vadd.f32 %v2414, %v2502
        %v2504 = vpop.f32.mrb[0].mxu0
        %2505 = vdwg.mxu0
        %v2506 = vld [vmem:[#allocation2 + $0x2] sm:$0xff]
        %v2507 = vld [vmem:[#allocation2 + $0x12] sm:$0xff]
        %v2508 = vld [vmem:[#allocation2 + $0x22] sm:$0xff]
        %v2509 = vld [vmem:[#allocation2 + $0x32] sm:$0xff]
        %v2510 = vld [vmem:[#allocation2 + $0x42] sm:$0xff]
        %v2511 = vld [vmem:[#allocation2 + $0x52] sm:$0xff]
        %v2512 = vld [vmem:[#allocation2 + $0x62] sm:$0xff]
        %v2513 = vld [vmem:[#allocation2 + $0x72] sm:$0xff]
        %v2514 = vpack.c.bf16 %v2507, %v2506
        %v2515 = vpack.c.bf16 %v2509, %v2508
        %v2516 = vpack.c.bf16 %v2511, %v2510
        %v2517 = vpack.c.bf16 %v2513, %v2512
        %s2518 = scalar_lea.vmem %s13, 32
        %v2519 = vld [vmem:[%s2518] sm:$0xf]
        %v2520 = vld [vmem:[%s2518 + $0x4] sm:$0xf]
        %v2521 = vld [vmem:[%s2518 + $0x8] sm:$0xf]
        %v2522 = vld [vmem:[%s2518 + $0xc] sm:$0xf]
        %v2527 = vunpack.c.l.b16 %v2519
        %v2528 = vunpack.c.l.b16 %v2520
        %v2529 = vunpack.c.l.b16 %v2521
        %v2530 = vunpack.c.l.b16 %v2522
        %v2531 = vpack.c.b16 %v2528, %v2527
        %v2532 = vpack.c.b16 %v2530, %v2529
        %v2536 = vsel %vm756, %v2514, 0
        %v2539 = vsel %vm756, %v2515, 0
        %v2542 = vsel %vm756, %v2516, 0
        %v2545 = vsel %vm756, %v2517, 0
        %2547 = vmatprep.subr.bf16.mxu0 0
        %2548 = vmatpush1.bf16.msra.mxu0 %v2531
        %2549 = vmatprep.subr.bf16.mxu0 0
        %2550 = vmatpush1.bf16.msra.mxu0 %v2532
        %2551 = vmatprep.subr.bf16.mxu0 0
        %2552 = vmatpush1.bf16.msra.mxu0 0
        %2553 = vmatprep.subr.bf16.mxu0 0
        %2554 = vmatpush1.bf16.msra.mxu0 0
        %2555 = vmatprep.subr.bf16.mxu0 0
        %2556 = vmatpush1.bf16.msra.mxu0 0
        %2557 = vmatprep.subr.bf16.mxu0 0
        %2558 = vmatpush1.bf16.msra.mxu0 0
        %2559 = vmatprep.subr.bf16.mxu0 0
        %2560 = vmatpush1.bf16.msra.mxu0 0
        %2561 = vmatprep.subr.bf16.mxu0 0
        %2562 = vmatpush1.bf16.msra.mxu0 0
        %2563 = vmatprep.subr.bf16.mxu0 0
        %2564 = vmatpush1.bf16.msra.mxu0 0
        %2565 = vmatprep.subr.bf16.mxu0 0
        %2566 = vmatpush1.bf16.msra.mxu0 0
        %2567 = vmatprep.subr.bf16.mxu0 0
        %2568 = vmatpush1.bf16.msra.mxu0 0
        %2569 = vmatprep.subr.bf16.mxu0 0
        %2570 = vmatpush1.bf16.msra.mxu0 0
        %2571 = vmatprep.subr.bf16.mxu0 0
        %2572 = vmatpush1.bf16.msra.mxu0 0
        %2573 = vmatprep.subr.bf16.mxu0 0
        %2574 = vmatpush1.bf16.msra.mxu0 0
        %2575 = vmatprep.subr.bf16.mxu0 0
        %2576 = vmatpush1.bf16.msra.mxu0 0
        %2577 = vmatprep.subr.bf16.mxu0 0
        %2578 = vmatpush1.bf16.msra.mxu0 0
        %2579 = vmatprep.mubr.bf16.mxu0 0
        %2580 = vmatmul.mubr.bf16.gmra.mrb[0].mxu0 %v2536
        %v2581 = vpop.f32.mrb[0].mxu0
        %v2582 = vadd.f32 0.0, %v2581
        %v2583 = vpop.f32.mrb[0].mxu0
        %v2584 = vpop.f32.mrb[0].mxu0
        %v2585 = vadd.f32 0.0, %v2584
        %v2586 = vpop.f32.mrb[0].mxu0
        %2587 = vmatprep.mubr.bf16.mxu0 0
        %2588 = vmatmul.mubr.bf16.gmra.mrb[0].mxu0 %v2539
        %v2589 = vpop.f32.mrb[0].mxu0
        %v2590 = vadd.f32 0.0, %v2589
        %v2591 = vpop.f32.mrb[0].mxu0
        %v2592 = vpop.f32.mrb[0].mxu0
        %v2593 = vadd.f32 0.0, %v2592
        %v2594 = vpop.f32.mrb[0].mxu0
        %2595 = vmatprep.mubr.bf16.mxu0 0
        %2596 = vmatmul.mubr.bf16.gmra.mrb[0].mxu0 %v2542
        %v2597 = vpop.f32.mrb[0].mxu0
        %v2598 = vadd.f32 0.0, %v2597
        %v2599 = vpop.f32.mrb[0].mxu0
        %v2600 = vpop.f32.mrb[0].mxu0
        %v2601 = vadd.f32 0.0, %v2600
        %v2602 = vpop.f32.mrb[0].mxu0
        %2603 = vmatprep.mubr.bf16.mxu0 0
        %2604 = vmatmul.mubr.bf16.gmra.mrb[0].mxu0 %v2545
        %v2605 = vpop.f32.mrb[0].mxu0
        %v2606 = vadd.f32 0.0, %v2605
        %v2607 = vpop.f32.mrb[0].mxu0
        %v2608 = vpop.f32.mrb[0].mxu0
        %v2609 = vadd.f32 0.0, %v2608
        %v2610 = vpop.f32.mrb[0].mxu0
        %2611 = vdwg.mxu0
        %v2612 = vadd.f32 %v2476, %v2582
        %v2613 = vadd.f32 %v2479, %v2585
        %v2614 = vadd.f32 %v2484, %v2590
        %v2615 = vadd.f32 %v2487, %v2593
        %v2616 = vadd.f32 %v2492, %v2598
        %v2617 = vadd.f32 %v2495, %v2601
        %v2618 = vadd.f32 %v2500, %v2606
        %v2619 = vadd.f32 %v2503, %v2609
        %v2620 = vld [vmem:[%s2286] sm:$0xff]
        %v2621 = vld [vmem:[%s2286 + $0x10] sm:$0xff]
        %v2622 = vld [vmem:[%s2286 + $0x20] sm:$0xff]
        %v2623 = vld [vmem:[%s2286 + $0x30] sm:$0xff]
        %v2624 = vld [vmem:[%s2286 + $0x40] sm:$0xff]
        %v2625 = vld [vmem:[%s2286 + $0x50] sm:$0xff]
        %v2626 = vld [vmem:[%s2286 + $0x60] sm:$0xff]
        %v2627 = vld [vmem:[%s2286 + $0x70] sm:$0xff]
        %v2628 = vpack.c.bf16 %v2621, %v2620
        %v2629 = vpack.c.bf16 %v2623, %v2622
        %v2630 = vpack.c.bf16 %v2625, %v2624
        %v2631 = vpack.c.bf16 %v2627, %v2626
        %s2632 = scalar_lea.vmem %s13, 48
        %v2633 = vld [vmem:[%s2632] sm:$0xf]
        %v2634 = vld [vmem:[%s2632 + $0x4] sm:$0xf]
        %v2635 = vld [vmem:[%s2632 + $0x8] sm:$0xf]
        %v2636 = vld [vmem:[%s2632 + $0xc] sm:$0xf]
        %v2641 = vunpack.c.l.b16 %v2633
        %v2642 = vunpack.c.l.b16 %v2634
        %v2643 = vunpack.c.l.b16 %v2635
        %v2644 = vunpack.c.l.b16 %v2636
        %v2645 = vpack.c.b16 %v2642, %v2641
        %v2646 = vpack.c.b16 %v2644, %v2643
        %v2650 = vsel %vm756, %v2628, 0
        %v2653 = vsel %vm756, %v2629, 0
        %v2656 = vsel %vm756, %v2630, 0
        %v2659 = vsel %vm756, %v2631, 0
        %2661 = vmatprep.subr.bf16.mxu0 0
        %2662 = vmatpush1.bf16.msra.mxu0 %v2645
        %2663 = vmatprep.subr.bf16.mxu0 0
        %2664 = vmatpush1.bf16.msra.mxu0 %v2646
        %2665 = vmatprep.subr.bf16.mxu0 0
        %2666 = vmatpush1.bf16.msra.mxu0 0
        %2667 = vmatprep.subr.bf16.mxu0 0
        %2668 = vmatpush1.bf16.msra.mxu0 0
        %2669 = vmatprep.subr.bf16.mxu0 0
        %2670 = vmatpush1.bf16.msra.mxu0 0
        %2671 = vmatprep.subr.bf16.mxu0 0
        %2672 = vmatpush1.bf16.msra.mxu0 0
        %2673 = vmatprep.subr.bf16.mxu0 0
        %2674 = vmatpush1.bf16.msra.mxu0 0
        %2675 = vmatprep.subr.bf16.mxu0 0
        %2676 = vmatpush1.bf16.msra.mxu0 0
        %2677 = vmatprep.subr.bf16.mxu0 0
        %2678 = vmatpush1.bf16.msra.mxu0 0
        %2679 = vmatprep.subr.bf16.mxu0 0
        %2680 = vmatpush1.bf16.msra.mxu0 0
        %2681 = vmatprep.subr.bf16.mxu0 0
        %2682 = vmatpush1.bf16.msra.mxu0 0
        %2683 = vmatprep.subr.bf16.mxu0 0
        %2684 = vmatpush1.bf16.msra.mxu0 0
        %2685 = vmatprep.subr.bf16.mxu0 0
        %2686 = vmatpush1.bf16.msra.mxu0 0
        %2687 = vmatprep.subr.bf16.mxu0 0
        %2688 = vmatpush1.bf16.msra.mxu0 0
        %2689 = vmatprep.subr.bf16.mxu0 0
        %2690 = vmatpush1.bf16.msra.mxu0 0
        %2691 = vmatprep.subr.bf16.mxu0 0
        %2692 = vmatpush1.bf16.msra.mxu0 0
        %2693 = vmatprep.mubr.bf16.mxu0 0
        %2694 = vmatmul.mubr.bf16.gmra.mrb[0].mxu0 %v2650
        %v2695 = vpop.f32.mrb[0].mxu0
        %v2696 = vadd.f32 0.0, %v2695
        %v2697 = vpop.f32.mrb[0].mxu0
        %v2698 = vpop.f32.mrb[0].mxu0
        %v2699 = vadd.f32 0.0, %v2698
        %v2700 = vpop.f32.mrb[0].mxu0
        %2701 = vmatprep.mubr.bf16.mxu0 0
        %2702 = vmatmul.mubr.bf16.gmra.mrb[0].mxu0 %v2653
        %v2703 = vpop.f32.mrb[0].mxu0
        %v2704 = vadd.f32 0.0, %v2703
        %v2705 = vpop.f32.mrb[0].mxu0
        %v2706 = vpop.f32.mrb[0].mxu0
        %v2707 = vadd.f32 0.0, %v2706
        %v2708 = vpop.f32.mrb[0].mxu0
        %2709 = vmatprep.mubr.bf16.mxu0 0
        %2710 = vmatmul.mubr.bf16.gmra.mrb[0].mxu0 %v2656
        %v2711 = vpop.f32.mrb[0].mxu0
        %v2712 = vadd.f32 0.0, %v2711
        %v2713 = vpop.f32.mrb[0].mxu0
        %v2714 = vpop.f32.mrb[0].mxu0
        %v2715 = vadd.f32 0.0, %v2714
        %v2716 = vpop.f32.mrb[0].mxu0
        %2717 = vmatprep.mubr.bf16.mxu0 0
        %2718 = vmatmul.mubr.bf16.gmra.mrb[0].mxu0 %v2659
        %v2719 = vpop.f32.mrb[0].mxu0
        %v2720 = vadd.f32 0.0, %v2719
        %v2721 = vpop.f32.mrb[0].mxu0
        %v2722 = vpop.f32.mrb[0].mxu0
        %v2723 = vadd.f32 0.0, %v2722
        %v2724 = vpop.f32.mrb[0].mxu0
        %2725 = vdwg.mxu0
        %v2726 = vadd.f32 %v2612, %v2696
        %v2727 = vadd.f32 %v2613, %v2699
        %v2728 = vadd.f32 %v2614, %v2704
        %v2729 = vadd.f32 %v2615, %v2707
        %v2730 = vadd.f32 %v2616, %v2712
        %v2731 = vadd.f32 %v2617, %v2715
        %v2732 = vadd.f32 %v2618, %v2720
        %v2733 = vadd.f32 %v2619, %v2723
        %v2734 = vld [vmem:[%s2286 + $0x1] sm:$0xff]
        %v2735 = vld [vmem:[%s2286 + $0x11] sm:$0xff]
        %v2736 = vld [vmem:[%s2286 + $0x21] sm:$0xff]
        %v2737 = vld [vmem:[%s2286 + $0x31] sm:$0xff]
        %v2738 = vld [vmem:[%s2286 + $0x41] sm:$0xff]
        %v2739 = vld [vmem:[%s2286 + $0x51] sm:$0xff]
        %v2740 = vld [vmem:[%s2286 + $0x61] sm:$0xff]
        %v2741 = vld [vmem:[%s2286 + $0x71] sm:$0xff]
        %v2742 = vpack.c.bf16 %v2735, %v2734
        %v2743 = vpack.c.bf16 %v2737, %v2736
        %v2744 = vpack.c.bf16 %v2739, %v2738
        %v2745 = vpack.c.bf16 %v2741, %v2740
        %s2746 = scalar_lea.vmem %s13, 64
        %v2747 = vld [vmem:[%s2746] sm:$0xf]
        %v2748 = vld [vmem:[%s2746 + $0x4] sm:$0xf]
        %v2749 = vld [vmem:[%s2746 + $0x8] sm:$0xf]
        %v2750 = vld [vmem:[%s2746 + $0xc] sm:$0xf]
        %v2755 = vunpack.c.l.b16 %v2747
        %v2756 = vunpack.c.l.b16 %v2748
        %v2757 = vunpack.c.l.b16 %v2749
        %v2758 = vunpack.c.l.b16 %v2750
        %v2759 = vpack.c.b16 %v2756, %v2755
        %v2760 = vpack.c.b16 %v2758, %v2757
        %v2764 = vsel %vm756, %v2742, 0
        %v2767 = vsel %vm756, %v2743, 0
        %v2770 = vsel %vm756, %v2744, 0
        %v2773 = vsel %vm756, %v2745, 0
        %2775 = vmatprep.subr.bf16.mxu0 0
        %2776 = vmatpush1.bf16.msra.mxu0 %v2759
        %2777 = vmatprep.subr.bf16.mxu0 0
        %2778 = vmatpush1.bf16.msra.mxu0 %v2760
        %2779 = vmatprep.subr.bf16.mxu0 0
        %2780 = vmatpush1.bf16.msra.mxu0 0
        %2781 = vmatprep.subr.bf16.mxu0 0
        %2782 = vmatpush1.bf16.msra.mxu0 0
        %2783 = vmatprep.subr.bf16.mxu0 0
        %2784 = vmatpush1.bf16.msra.mxu0 0
        %2785 = vmatprep.subr.bf16.mxu0 0
        %2786 = vmatpush1.bf16.msra.mxu0 0
        %2787 = vmatprep.subr.bf16.mxu0 0
        %2788 = vmatpush1.bf16.msra.mxu0 0
        %2789 = vmatprep.subr.bf16.mxu0 0
        %2790 = vmatpush1.bf16.msra.mxu0 0
        %2791 = vmatprep.subr.bf16.mxu0 0
        %2792 = vmatpush1.bf16.msra.mxu0 0
        %2793 = vmatprep.subr.bf16.mxu0 0
        %2794 = vmatpush1.bf16.msra.mxu0 0
        %2795 = vmatprep.subr.bf16.mxu0 0
        %2796 = vmatpush1.bf16.msra.mxu0 0
        %2797 = vmatprep.subr.bf16.mxu0 0
        %2798 = vmatpush1.bf16.msra.mxu0 0
        %2799 = vmatprep.subr.bf16.mxu0 0
        %2800 = vmatpush1.bf16.msra.mxu0 0
        %2801 = vmatprep.subr.bf16.mxu0 0
        %2802 = vmatpush1.bf16.msra.mxu0 0
        %2803 = vmatprep.subr.bf16.mxu0 0
        %2804 = vmatpush1.bf16.msra.mxu0 0
        %2805 = vmatprep.subr.bf16.mxu0 0
        %2806 = vmatpush1.bf16.msra.mxu0 0
        %2807 = vmatprep.mubr.bf16.mxu0 0
        %2808 = vmatmul.mubr.bf16.gmra.mrb[0].mxu0 %v2764
        %v2809 = vpop.f32.mrb[0].mxu0
        %v2810 = vadd.f32 0.0, %v2809
        %v2811 = vpop.f32.mrb[0].mxu0
        %v2812 = vpop.f32.mrb[0].mxu0
        %v2813 = vadd.f32 0.0, %v2812
        %v2814 = vpop.f32.mrb[0].mxu0
        %2815 = vmatprep.mubr.bf16.mxu0 0
        %2816 = vmatmul.mubr.bf16.gmra.mrb[0].mxu0 %v2767
        %v2817 = vpop.f32.mrb[0].mxu0
        %v2818 = vadd.f32 0.0, %v2817
        %v2819 = vpop.f32.mrb[0].mxu0
        %v2820 = vpop.f32.mrb[0].mxu0
        %v2821 = vadd.f32 0.0, %v2820
        %v2822 = vpop.f32.mrb[0].mxu0
        %2823 = vmatprep.mubr.bf16.mxu0 0
        %2824 = vmatmul.mubr.bf16.gmra.mrb[0].mxu0 %v2770
        %v2825 = vpop.f32.mrb[0].mxu0
        %v2826 = vadd.f32 0.0, %v2825
        %v2827 = vpop.f32.mrb[0].mxu0
        %v2828 = vpop.f32.mrb[0].mxu0
        %v2829 = vadd.f32 0.0, %v2828
        %v2830 = vpop.f32.mrb[0].mxu0
        %2831 = vmatprep.mubr.bf16.mxu0 0
        %2832 = vmatmul.mubr.bf16.gmra.mrb[0].mxu0 %v2773
        %v2833 = vpop.f32.mrb[0].mxu0
        %v2834 = vadd.f32 0.0, %v2833
        %v2835 = vpop.f32.mrb[0].mxu0
        %v2836 = vpop.f32.mrb[0].mxu0
        %v2837 = vadd.f32 0.0, %v2836
        %v2838 = vpop.f32.mrb[0].mxu0
        %2839 = vdwg.mxu0
        %v2840 = vadd.f32 %v2726, %v2810
        %v2841 = vadd.f32 %v2727, %v2813
        %v2842 = vadd.f32 %v2728, %v2818
        %v2843 = vadd.f32 %v2729, %v2821
        %v2844 = vadd.f32 %v2730, %v2826
        %v2845 = vadd.f32 %v2731, %v2829
        %v2846 = vadd.f32 %v2732, %v2834
        %v2847 = vadd.f32 %v2733, %v2837
        %v2848 = vld [vmem:[%s2286 + $0x2] sm:$0xff]
        %v2849 = vld [vmem:[%s2286 + $0x12] sm:$0xff]
        %v2850 = vld [vmem:[%s2286 + $0x22] sm:$0xff]
        %v2851 = vld [vmem:[%s2286 + $0x32] sm:$0xff]
        %v2852 = vld [vmem:[%s2286 + $0x42] sm:$0xff]
        %v2853 = vld [vmem:[%s2286 + $0x52] sm:$0xff]
        %v2854 = vld [vmem:[%s2286 + $0x62] sm:$0xff]
        %v2855 = vld [vmem:[%s2286 + $0x72] sm:$0xff]
        %v2856 = vpack.c.bf16 %v2849, %v2848
        %v2857 = vpack.c.bf16 %v2851, %v2850
        %v2858 = vpack.c.bf16 %v2853, %v2852
        %v2859 = vpack.c.bf16 %v2855, %v2854
        %s2860 = scalar_lea.vmem %s13, 80
        %v2861 = vld [vmem:[%s2860] sm:$0xf]
        %v2862 = vld [vmem:[%s2860 + $0x4] sm:$0xf]
        %v2863 = vld [vmem:[%s2860 + $0x8] sm:$0xf]
        %v2864 = vld [vmem:[%s2860 + $0xc] sm:$0xf]
        %v2869 = vunpack.c.l.b16 %v2861
        %v2870 = vunpack.c.l.b16 %v2862
        %v2871 = vunpack.c.l.b16 %v2863
        %v2872 = vunpack.c.l.b16 %v2864
        %v2873 = vpack.c.b16 %v2870, %v2869
        %v2874 = vpack.c.b16 %v2872, %v2871
        %v2878 = vsel %vm756, %v2856, 0
        %v2881 = vsel %vm756, %v2857, 0
        %v2884 = vsel %vm756, %v2858, 0
        %v2887 = vsel %vm756, %v2859, 0
        %2889 = vmatprep.subr.bf16.mxu0 0
        %2890 = vmatpush1.bf16.msra.mxu0 %v2873
        %2891 = vmatprep.subr.bf16.mxu0 0
        %2892 = vmatpush1.bf16.msra.mxu0 %v2874
        %2893 = vmatprep.subr.bf16.mxu0 0
        %2894 = vmatpush1.bf16.msra.mxu0 0
        %2895 = vmatprep.subr.bf16.mxu0 0
        %2896 = vmatpush1.bf16.msra.mxu0 0
        %2897 = vmatprep.subr.bf16.mxu0 0
        %2898 = vmatpush1.bf16.msra.mxu0 0
        %2899 = vmatprep.subr.bf16.mxu0 0
        %2900 = vmatpush1.bf16.msra.mxu0 0
        %2901 = vmatprep.subr.bf16.mxu0 0
        %2902 = vmatpush1.bf16.msra.mxu0 0
        %2903 = vmatprep.subr.bf16.mxu0 0
        %2904 = vmatpush1.bf16.msra.mxu0 0
        %2905 = vmatprep.subr.bf16.mxu0 0
        %2906 = vmatpush1.bf16.msra.mxu0 0
        %2907 = vmatprep.subr.bf16.mxu0 0
        %2908 = vmatpush1.bf16.msra.mxu0 0
        %2909 = vmatprep.subr.bf16.mxu0 0
        %2910 = vmatpush1.bf16.msra.mxu0 0
        %2911 = vmatprep.subr.bf16.mxu0 0
        %2912 = vmatpush1.bf16.msra.mxu0 0
        %2913 = vmatprep.subr.bf16.mxu0 0
        %2914 = vmatpush1.bf16.msra.mxu0 0
        %2915 = vmatprep.subr.bf16.mxu0 0
        %2916 = vmatpush1.bf16.msra.mxu0 0
        %2917 = vmatprep.subr.bf16.mxu0 0
        %2918 = vmatpush1.bf16.msra.mxu0 0
        %2919 = vmatprep.subr.bf16.mxu0 0
        %2920 = vmatpush1.bf16.msra.mxu0 0
        %2921 = vmatprep.mubr.bf16.mxu0 0
        %2922 = vmatmul.mubr.bf16.gmra.mrb[0].mxu0 %v2878
        %v2923 = vpop.f32.mrb[0].mxu0
        %v2924 = vadd.f32 0.0, %v2923
        %v2925 = vpop.f32.mrb[0].mxu0
        %v2926 = vpop.f32.mrb[0].mxu0
        %v2927 = vadd.f32 0.0, %v2926
        %v2928 = vpop.f32.mrb[0].mxu0
        %2929 = vmatprep.mubr.bf16.mxu0 0
        %2930 = vmatmul.mubr.bf16.gmra.mrb[0].mxu0 %v2881
        %v2931 = vpop.f32.mrb[0].mxu0
        %v2932 = vadd.f32 0.0, %v2931
        %v2933 = vpop.f32.mrb[0].mxu0
        %v2934 = vpop.f32.mrb[0].mxu0
        %v2935 = vadd.f32 0.0, %v2934
        %v2936 = vpop.f32.mrb[0].mxu0
        %2937 = vmatprep.mubr.bf16.mxu0 0
        %2938 = vmatmul.mubr.bf16.gmra.mrb[0].mxu0 %v2884
        %v2939 = vpop.f32.mrb[0].mxu0
        %v2940 = vadd.f32 0.0, %v2939
        %v2941 = vpop.f32.mrb[0].mxu0
        %v2942 = vpop.f32.mrb[0].mxu0
        %v2943 = vadd.f32 0.0, %v2942
        %v2944 = vpop.f32.mrb[0].mxu0
        %2945 = vmatprep.mubr.bf16.mxu0 0
        %2946 = vmatmul.mubr.bf16.gmra.mrb[0].mxu0 %v2887
        %v2947 = vpop.f32.mrb[0].mxu0
        %v2948 = vadd.f32 0.0, %v2947
        %v2949 = vpop.f32.mrb[0].mxu0
        %v2950 = vpop.f32.mrb[0].mxu0
        %v2951 = vadd.f32 0.0, %v2950
        %v2952 = vpop.f32.mrb[0].mxu0
        %2953 = vdwg.mxu0
        %v2954 = vadd.f32 %v2840, %v2924
        %v2955 = vadd.f32 %v2841, %v2927
        %v2956 = vadd.f32 %v2842, %v2932
        %v2957 = vadd.f32 %v2843, %v2935
        %v2958 = vadd.f32 %v2844, %v2940
        %v2959 = vadd.f32 %v2845, %v2943
        %v2960 = vadd.f32 %v2846, %v2948
        %v2961 = vadd.f32 %v2847, %v2951
        %s2962 = scalar_lea.vmem [#allocation2], 32
        %v2963 = vld [vmem:[%s2962] sm:$0xff]
        %v2964 = vld [vmem:[%s2962 + $0x10] sm:$0xff]
        %v2965 = vld [vmem:[%s2962 + $0x20] sm:$0xff]
        %v2966 = vld [vmem:[%s2962 + $0x30] sm:$0xff]
        %v2967 = vld [vmem:[%s2962 + $0x40] sm:$0xff]
        %v2968 = vld [vmem:[%s2962 + $0x50] sm:$0xff]
        %v2969 = vld [vmem:[%s2962 + $0x60] sm:$0xff]
        %v2970 = vld [vmem:[%s2962 + $0x70] sm:$0xff]
        %v2971 = vpack.c.bf16 %v2964, %v2963
        %v2972 = vpack.c.bf16 %v2966, %v2965
        %v2973 = vpack.c.bf16 %v2968, %v2967
        %v2974 = vpack.c.bf16 %v2970, %v2969
        %s2975 = scalar_lea.vmem %s13, 96
        %v2976 = vld [vmem:[%s2975] sm:$0xf]
        %v2977 = vld [vmem:[%s2975 + $0x4] sm:$0xf]
        %v2978 = vld [vmem:[%s2975 + $0x8] sm:$0xf]
        %v2979 = vld [vmem:[%s2975 + $0xc] sm:$0xf]
        %v2984 = vunpack.c.l.b16 %v2976
        %v2985 = vunpack.c.l.b16 %v2977
        %v2986 = vunpack.c.l.b16 %v2978
        %v2987 = vunpack.c.l.b16 %v2979
        %v2988 = vpack.c.b16 %v2985, %v2984
        %v2989 = vpack.c.b16 %v2987, %v2986
        %v2993 = vsel %vm756, %v2971, 0
        %v2996 = vsel %vm756, %v2972, 0
        %v2999 = vsel %vm756, %v2973, 0
        %v3002 = vsel %vm756, %v2974, 0
        %3004 = vmatprep.subr.bf16.mxu0 0
        %3005 = vmatpush1.bf16.msra.mxu0 %v2988
        %3006 = vmatprep.subr.bf16.mxu0 0
        %3007 = vmatpush1.bf16.msra.mxu0 %v2989
        %3008 = vmatprep.subr.bf16.mxu0 0
        %3009 = vmatpush1.bf16.msra.mxu0 0
        %3010 = vmatprep.subr.bf16.mxu0 0
        %3011 = vmatpush1.bf16.msra.mxu0 0
        %3012 = vmatprep.subr.bf16.mxu0 0
        %3013 = vmatpush1.bf16.msra.mxu0 0
        %3014 = vmatprep.subr.bf16.mxu0 0
        %3015 = vmatpush1.bf16.msra.mxu0 0
        %3016 = vmatprep.subr.bf16.mxu0 0
        %3017 = vmatpush1.bf16.msra.mxu0 0
        %3018 = vmatprep.subr.bf16.mxu0 0
        %3019 = vmatpush1.bf16.msra.mxu0 0
        %3020 = vmatprep.subr.bf16.mxu0 0
        %3021 = vmatpush1.bf16.msra.mxu0 0
        %3022 = vmatprep.subr.bf16.mxu0 0
        %3023 = vmatpush1.bf16.msra.mxu0 0
        %3024 = vmatprep.subr.bf16.mxu0 0
        %3025 = vmatpush1.bf16.msra.mxu0 0
        %3026 = vmatprep.subr.bf16.mxu0 0
        %3027 = vmatpush1.bf16.msra.mxu0 0
        %3028 = vmatprep.subr.bf16.mxu0 0
        %3029 = vmatpush1.bf16.msra.mxu0 0
        %3030 = vmatprep.subr.bf16.mxu0 0
        %3031 = vmatpush1.bf16.msra.mxu0 0
        %3032 = vmatprep.subr.bf16.mxu0 0
        %3033 = vmatpush1.bf16.msra.mxu0 0
        %3034 = vmatprep.subr.bf16.mxu0 0
        %3035 = vmatpush1.bf16.msra.mxu0 0
        %3036 = vmatprep.mubr.bf16.mxu0 0
        %3037 = vmatmul.mubr.bf16.gmra.mrb[0].mxu0 %v2993
        %v3038 = vpop.f32.mrb[0].mxu0
        %v3039 = vadd.f32 0.0, %v3038
        %v3040 = vpop.f32.mrb[0].mxu0
        %v3041 = vpop.f32.mrb[0].mxu0
        %v3042 = vadd.f32 0.0, %v3041
        %v3043 = vpop.f32.mrb[0].mxu0
        %3044 = vmatprep.mubr.bf16.mxu0 0
        %3045 = vmatmul.mubr.bf16.gmra.mrb[0].mxu0 %v2996
        %v3046 = vpop.f32.mrb[0].mxu0
        %v3047 = vadd.f32 0.0, %v3046
        %v3048 = vpop.f32.mrb[0].mxu0
        %v3049 = vpop.f32.mrb[0].mxu0
        %v3050 = vadd.f32 0.0, %v3049
        %v3051 = vpop.f32.mrb[0].mxu0
        %3052 = vmatprep.mubr.bf16.mxu0 0
        %3053 = vmatmul.mubr.bf16.gmra.mrb[0].mxu0 %v2999
        %v3054 = vpop.f32.mrb[0].mxu0
        %v3055 = vadd.f32 0.0, %v3054
        %v3056 = vpop.f32.mrb[0].mxu0
        %v3057 = vpop.f32.mrb[0].mxu0
        %v3058 = vadd.f32 0.0, %v3057
        %v3059 = vpop.f32.mrb[0].mxu0
        %3060 = vmatprep.mubr.bf16.mxu0 0
        %3061 = vmatmul.mubr.bf16.gmra.mrb[0].mxu0 %v3002
        %v3062 = vpop.f32.mrb[0].mxu0
        %v3063 = vadd.f32 0.0, %v3062
        %v3064 = vpop.f32.mrb[0].mxu0
        %v3065 = vpop.f32.mrb[0].mxu0
        %v3066 = vadd.f32 0.0, %v3065
        %v3067 = vpop.f32.mrb[0].mxu0
        %3068 = vdwg.mxu0
        %v3069 = vadd.f32 %v2954, %v3039
        %v3070 = vadd.f32 %v2955, %v3042
        %v3071 = vadd.f32 %v2956, %v3047
        %v3072 = vadd.f32 %v2957, %v3050
        %v3073 = vadd.f32 %v2958, %v3055
        %v3074 = vadd.f32 %v2959, %v3058
        %v3075 = vadd.f32 %v2960, %v3063
        %v3076 = vadd.f32 %v2961, %v3066
        %v3077 = vld [vmem:[%s2962 + $0x1] sm:$0xff]
        %v3078 = vld [vmem:[%s2962 + $0x11] sm:$0xff]
        %v3079 = vld [vmem:[%s2962 + $0x21] sm:$0xff]
        %v3080 = vld [vmem:[%s2962 + $0x31] sm:$0xff]
        %v3081 = vld [vmem:[%s2962 + $0x41] sm:$0xff]
        %v3082 = vld [vmem:[%s2962 + $0x51] sm:$0xff]
        %v3083 = vld [vmem:[%s2962 + $0x61] sm:$0xff]
        %v3084 = vld [vmem:[%s2962 + $0x71] sm:$0xff]
        %v3085 = vpack.c.bf16 %v3078, %v3077
        %v3086 = vpack.c.bf16 %v3080, %v3079
        %v3087 = vpack.c.bf16 %v3082, %v3081
        %v3088 = vpack.c.bf16 %v3084, %v3083
        %s3089 = scalar_lea.vmem %s13, 112
        %v3090 = vld [vmem:[%s3089] sm:$0xf]
        %v3091 = vld [vmem:[%s3089 + $0x4] sm:$0xf]
        %v3092 = vld [vmem:[%s3089 + $0x8] sm:$0xf]
        %v3093 = vld [vmem:[%s3089 + $0xc] sm:$0xf]
        %v3098 = vunpack.c.l.b16 %v3090
        %v3099 = vunpack.c.l.b16 %v3091
        %v3100 = vunpack.c.l.b16 %v3092
        %v3101 = vunpack.c.l.b16 %v3093
        %v3102 = vpack.c.b16 %v3099, %v3098
        %v3103 = vpack.c.b16 %v3101, %v3100
        %v3107 = vsel %vm756, %v3085, 0
        %v3110 = vsel %vm756, %v3086, 0
        %v3113 = vsel %vm756, %v3087, 0
        %v3116 = vsel %vm756, %v3088, 0
        %3118 = vmatprep.subr.bf16.mxu0 0
        %3119 = vmatpush1.bf16.msra.mxu0 %v3102
        %3120 = vmatprep.subr.bf16.mxu0 0
        %3121 = vmatpush1.bf16.msra.mxu0 %v3103
        %3122 = vmatprep.subr.bf16.mxu0 0
        %3123 = vmatpush1.bf16.msra.mxu0 0
        %3124 = vmatprep.subr.bf16.mxu0 0
        %3125 = vmatpush1.bf16.msra.mxu0 0
        %3126 = vmatprep.subr.bf16.mxu0 0
        %3127 = vmatpush1.bf16.msra.mxu0 0
        %3128 = vmatprep.subr.bf16.mxu0 0
        %3129 = vmatpush1.bf16.msra.mxu0 0
        %3130 = vmatprep.subr.bf16.mxu0 0
        %3131 = vmatpush1.bf16.msra.mxu0 0
        %3132 = vmatprep.subr.bf16.mxu0 0
        %3133 = vmatpush1.bf16.msra.mxu0 0
        %3134 = vmatprep.subr.bf16.mxu0 0
        %3135 = vmatpush1.bf16.msra.mxu0 0
        %3136 = vmatprep.subr.bf16.mxu0 0
        %3137 = vmatpush1.bf16.msra.mxu0 0
        %3138 = vmatprep.subr.bf16.mxu0 0
        %3139 = vmatpush1.bf16.msra.mxu0 0
        %3140 = vmatprep.subr.bf16.mxu0 0
        %3141 = vmatpush1.bf16.msra.mxu0 0
        %3142 = vmatprep.subr.bf16.mxu0 0
        %3143 = vmatpush1.bf16.msra.mxu0 0
        %3144 = vmatprep.subr.bf16.mxu0 0
        %3145 = vmatpush1.bf16.msra.mxu0 0
        %3146 = vmatprep.subr.bf16.mxu0 0
        %3147 = vmatpush1.bf16.msra.mxu0 0
        %3148 = vmatprep.subr.bf16.mxu0 0
        %3149 = vmatpush1.bf16.msra.mxu0 0
        %3150 = vmatprep.mubr.bf16.mxu0 0
        %3151 = vmatmul.mubr.bf16.gmra.mrb[0].mxu0 %v3107
        %v3152 = vpop.f32.mrb[0].mxu0
        %v3153 = vadd.f32 0.0, %v3152
        %v3154 = vpop.f32.mrb[0].mxu0
        %v3155 = vpop.f32.mrb[0].mxu0
        %v3156 = vadd.f32 0.0, %v3155
        %v3157 = vpop.f32.mrb[0].mxu0
        %3158 = vmatprep.mubr.bf16.mxu0 0
        %3159 = vmatmul.mubr.bf16.gmra.mrb[0].mxu0 %v3110
        %v3160 = vpop.f32.mrb[0].mxu0
        %v3161 = vadd.f32 0.0, %v3160
        %v3162 = vpop.f32.mrb[0].mxu0
        %v3163 = vpop.f32.mrb[0].mxu0
        %v3164 = vadd.f32 0.0, %v3163
        %v3165 = vpop.f32.mrb[0].mxu0
        %3166 = vmatprep.mubr.bf16.mxu0 0
        %3167 = vmatmul.mubr.bf16.gmra.mrb[0].mxu0 %v3113
        %v3168 = vpop.f32.mrb[0].mxu0
        %v3169 = vadd.f32 0.0, %v3168
        %v3170 = vpop.f32.mrb[0].mxu0
        %v3171 = vpop.f32.mrb[0].mxu0
        %v3172 = vadd.f32 0.0, %v3171
        %v3173 = vpop.f32.mrb[0].mxu0
        %3174 = vmatprep.mubr.bf16.mxu0 0
        %3175 = vmatmul.mubr.bf16.gmra.mrb[0].mxu0 %v3116
        %v3176 = vpop.f32.mrb[0].mxu0
        %v3177 = vadd.f32 0.0, %v3176
        %v3178 = vpop.f32.mrb[0].mxu0
        %v3179 = vpop.f32.mrb[0].mxu0
        %v3180 = vadd.f32 0.0, %v3179
        %v3181 = vpop.f32.mrb[0].mxu0
        %3182 = vdwg.mxu0
        %v3183 = vadd.f32 %v3069, %v3153
        %v3184 = vadd.f32 %v3070, %v3156
        %v3185 = vadd.f32 %v3071, %v3161
        %v3186 = vadd.f32 %v3072, %v3164
        %v3187 = vadd.f32 %v3073, %v3169
        %v3188 = vadd.f32 %v3074, %v3172
        %v3189 = vadd.f32 %v3075, %v3177
        %v3190 = vadd.f32 %v3076, %v3180
        %v3191 = vld [vmem:[%s2962 + $0x2] sm:$0xff]
        %v3192 = vld [vmem:[%s2962 + $0x12] sm:$0xff]
        %v3193 = vld [vmem:[%s2962 + $0x22] sm:$0xff]
        %v3194 = vld [vmem:[%s2962 + $0x32] sm:$0xff]
        %v3195 = vld [vmem:[%s2962 + $0x42] sm:$0xff]
        %v3196 = vld [vmem:[%s2962 + $0x52] sm:$0xff]
        %v3197 = vld [vmem:[%s2962 + $0x62] sm:$0xff]
        %v3198 = vld [vmem:[%s2962 + $0x72] sm:$0xff]
        %v3199 = vpack.c.bf16 %v3192, %v3191
        %v3200 = vpack.c.bf16 %v3194, %v3193
        %v3201 = vpack.c.bf16 %v3196, %v3195
        %v3202 = vpack.c.bf16 %v3198, %v3197
        %s3203 = scalar_lea.vmem %s13, 128
        %v3204 = vld [vmem:[%s3203] sm:$0xf]
        %v3205 = vld [vmem:[%s3203 + $0x4] sm:$0xf]
        %v3206 = vld [vmem:[%s3203 + $0x8] sm:$0xf]
        %v3207 = vld [vmem:[%s3203 + $0xc] sm:$0xf]
        %v3212 = vunpack.c.l.b16 %v3204
        %v3213 = vunpack.c.l.b16 %v3205
        %v3214 = vunpack.c.l.b16 %v3206
        %v3215 = vunpack.c.l.b16 %v3207
        %v3216 = vpack.c.b16 %v3213, %v3212
        %v3217 = vpack.c.b16 %v3215, %v3214
        %v3221 = vsel %vm756, %v3199, 0
        %v3224 = vsel %vm756, %v3200, 0
        %v3227 = vsel %vm756, %v3201, 0
        %v3230 = vsel %vm756, %v3202, 0
        %3232 = vmatprep.subr.bf16.mxu0 0
        %3233 = vmatpush1.bf16.msra.mxu0 %v3216
        %3234 = vmatprep.subr.bf16.mxu0 0
        %3235 = vmatpush1.bf16.msra.mxu0 %v3217
        %3236 = vmatprep.subr.bf16.mxu0 0
        %3237 = vmatpush1.bf16.msra.mxu0 0
        %3238 = vmatprep.subr.bf16.mxu0 0
        %3239 = vmatpush1.bf16.msra.mxu0 0
        %3240 = vmatprep.subr.bf16.mxu0 0
        %3241 = vmatpush1.bf16.msra.mxu0 0
        %3242 = vmatprep.subr.bf16.mxu0 0
        %3243 = vmatpush1.bf16.msra.mxu0 0
        %3244 = vmatprep.subr.bf16.mxu0 0
        %3245 = vmatpush1.bf16.msra.mxu0 0
        %3246 = vmatprep.subr.bf16.mxu0 0
        %3247 = vmatpush1.bf16.msra.mxu0 0
        %3248 = vmatprep.subr.bf16.mxu0 0
        %3249 = vmatpush1.bf16.msra.mxu0 0
        %3250 = vmatprep.subr.bf16.mxu0 0
        %3251 = vmatpush1.bf16.msra.mxu0 0
        %3252 = vmatprep.subr.bf16.mxu0 0
        %3253 = vmatpush1.bf16.msra.mxu0 0
        %3254 = vmatprep.subr.bf16.mxu0 0
        %3255 = vmatpush1.bf16.msra.mxu0 0
        %3256 = vmatprep.subr.bf16.mxu0 0
        %3257 = vmatpush1.bf16.msra.mxu0 0
        %3258 = vmatprep.subr.bf16.mxu0 0
        %3259 = vmatpush1.bf16.msra.mxu0 0
        %3260 = vmatprep.subr.bf16.mxu0 0
        %3261 = vmatpush1.bf16.msra.mxu0 0
        %3262 = vmatprep.subr.bf16.mxu0 0
        %3263 = vmatpush1.bf16.msra.mxu0 0
        %3264 = vmatprep.mubr.bf16.mxu0 0
        %3265 = vmatmul.mubr.bf16.gmra.mrb[0].mxu0 %v3221
        %v3266 = vpop.f32.mrb[0].mxu0
        %v3267 = vadd.f32 0.0, %v3266
        %v3268 = vpop.f32.mrb[0].mxu0
        %v3269 = vpop.f32.mrb[0].mxu0
        %v3270 = vadd.f32 0.0, %v3269
        %v3271 = vpop.f32.mrb[0].mxu0
        %3272 = vmatprep.mubr.bf16.mxu0 0
        %3273 = vmatmul.mubr.bf16.gmra.mrb[0].mxu0 %v3224
        %v3274 = vpop.f32.mrb[0].mxu0
        %v3275 = vadd.f32 0.0, %v3274
        %v3276 = vpop.f32.mrb[0].mxu0
        %v3277 = vpop.f32.mrb[0].mxu0
        %v3278 = vadd.f32 0.0, %v3277
        %v3279 = vpop.f32.mrb[0].mxu0
        %3280 = vmatprep.mubr.bf16.mxu0 0
        %3281 = vmatmul.mubr.bf16.gmra.mrb[0].mxu0 %v3227
        %v3282 = vpop.f32.mrb[0].mxu0
        %v3283 = vadd.f32 0.0, %v3282
        %v3284 = vpop.f32.mrb[0].mxu0
        %v3285 = vpop.f32.mrb[0].mxu0
        %v3286 = vadd.f32 0.0, %v3285
        %v3287 = vpop.f32.mrb[0].mxu0
        %3288 = vmatprep.mubr.bf16.mxu0 0
        %3289 = vmatmul.mubr.bf16.gmra.mrb[0].mxu0 %v3230
        %v3290 = vpop.f32.mrb[0].mxu0
        %v3291 = vadd.f32 0.0, %v3290
        %v3292 = vpop.f32.mrb[0].mxu0
        %v3293 = vpop.f32.mrb[0].mxu0
        %v3294 = vadd.f32 0.0, %v3293
        %v3295 = vpop.f32.mrb[0].mxu0
        %3296 = vdwg.mxu0
        %v3297 = vadd.f32 %v3183, %v3267
        %v3298 = vadd.f32 %v3184, %v3270
        %v3299 = vadd.f32 %v3185, %v3275
        %v3300 = vadd.f32 %v3186, %v3278
        %v3301 = vadd.f32 %v3187, %v3283
        %v3302 = vadd.f32 %v3188, %v3286
        %v3303 = vadd.f32 %v3189, %v3291
        %v3304 = vadd.f32 %v3190, %v3294
        %v3305 = vld [vmem:[%s14] sm:$0x1]
        %v3307 = vlaneseq
        %v3308 = vshrl.u32 %v3307, 7
        %v3309 = vsub.s32 0, %v3308
        %v3310 = vrot.slane %v3305, %v3309
        %v3312 = vmul.f32 %v3297, %v3310
        %v3313 = vmul.f32 %v3298, %v3310
        %v3314 = vmul.f32 %v3299, %v3310
        %v3315 = vmul.f32 %v3300, %v3310
        %v3316 = vmul.f32 %v3301, %v3310
        %v3317 = vmul.f32 %v3302, %v3310
        %v3318 = vmul.f32 %v3303, %v3310
        %v3319 = vmul.f32 %v3304, %v3310
        %v3320 = vld [vmem:[%s15] sm:$0x1]
        %v3322 = vlaneseq
        %v3323 = vshrl.u32 %v3322, 7
        %v3324 = vsub.s32 0, %v3323
        %v3325 = vrot.slane %v3320, %v3324
        %v3327 = vadd.f32 %v3312, %v3325
        %v3328 = vadd.f32 %v3313, %v3325
        %v3329 = vadd.f32 %v3314, %v3325
        %v3330 = vadd.f32 %v3315, %v3325
        %v3331 = vadd.f32 %v3316, %v3325
        %v3332 = vadd.f32 %v3317, %v3325
        %v3333 = vadd.f32 %v3318, %v3325
        %v3334 = vadd.f32 %v3319, %v3325
        %vm3335 = vcmp.gt.f32.partialorder %v3327, 0.0
        %vm3336 = vcmp.gt.f32.partialorder %v3328, 0.0
        %vm3337 = vcmp.gt.f32.partialorder %v3329, 0.0
        %vm3338 = vcmp.gt.f32.partialorder %v3330, 0.0
        %vm3339 = vcmp.gt.f32.partialorder %v3331, 0.0
        %vm3340 = vcmp.gt.f32.partialorder %v3332, 0.0
        %vm3341 = vcmp.gt.f32.partialorder %v3333, 0.0
        %vm3342 = vcmp.gt.f32.partialorder %v3334, 0.0
        %v3343 = vmul.f32 %v3327, 0.1
        %v3344 = vmul.f32 %v3328, 0.1
        %v3345 = vmul.f32 %v3329, 0.1
        %v3346 = vmul.f32 %v3330, 0.1
        %v3347 = vmul.f32 %v3331, 0.1
        %v3348 = vmul.f32 %v3332, 0.1
        %v3349 = vmul.f32 %v3333, 0.1
        %v3350 = vmul.f32 %v3334, 0.1
        %v3351 = vsel %vm3335, %v3327, %v3343
        %v3352 = vsel %vm3336, %v3328, %v3344
        %v3353 = vsel %vm3337, %v3329, %v3345
        %v3354 = vsel %vm3338, %v3330, %v3346
        %v3355 = vsel %vm3339, %v3331, %v3347
        %v3356 = vsel %vm3340, %v3332, %v3348
        %v3357 = vsel %vm3341, %v3333, %v3349
        %v3358 = vsel %vm3342, %v3334, %v3350
        %v3359 = vadd.f32 %v3351, %v2090
        %v3360 = vadd.f32 %v3352, %v2091
        %v3361 = vadd.f32 %v3353, %v2092
        %v3362 = vadd.f32 %v3354, %v2093
        %v3363 = vadd.f32 %v3355, %v2094
        %v3364 = vadd.f32 %v3356, %v2095
        %v3365 = vadd.f32 %v3357, %v2096
        %v3366 = vadd.f32 %v3358, %v2097
        %v3367 = vpack.c.bf16 %v3360, %v3359
        %v3368 = vpack.c.bf16 %v3362, %v3361
        %v3369 = vpack.c.bf16 %v3364, %v3363
        %v3370 = vpack.c.bf16 %v3366, %v3365
        %v3371 = vld [vmem:[%s16] sm:$0xf]
        %v3372 = vld [vmem:[%s16 + $0x4] sm:$0xf]
        %v3373 = vld [vmem:[%s16 + $0x8] sm:$0xf]
        %v3374 = vld [vmem:[%s16 + $0xc] sm:$0xf]
        %v3375 = vld [vmem:[%s16 + $0x10] sm:$0xf]
        %v3376 = vld [vmem:[%s16 + $0x14] sm:$0xf]
        %v3377 = vld [vmem:[%s16 + $0x18] sm:$0xf]
        %v3378 = vld [vmem:[%s16 + $0x1c] sm:$0xf]
        %v3387 = vunpack.c.l.b16 %v3371
        %v3388 = vunpack.c.l.b16 %v3372
        %v3389 = vunpack.c.l.b16 %v3373
        %v3390 = vunpack.c.l.b16 %v3374
        %v3391 = vunpack.c.l.b16 %v3375
        %v3392 = vunpack.c.l.b16 %v3376
        %v3393 = vunpack.c.l.b16 %v3377
        %v3394 = vunpack.c.l.b16 %v3378
        %v3395 = vpack.c.b16 %v3388, %v3387
        %v3396 = vpack.c.b16 %v3390, %v3389
        %v3397 = vpack.c.b16 %v3392, %v3391
        %v3398 = vpack.c.b16 %v3394, %v3393
        %v3404 = vsel %vm1815, %v3367, 0
        %v3407 = vsel %vm1815, %v3368, 0
        %v3410 = vsel %vm1815, %v3369, 0
        %v3413 = vsel %vm1815, %v3370, 0
        %3415 = vmatprep.subr.bf16.mxu0 0
        %3416 = vmatpush1.bf16.msra.mxu0 %v3395
        %3417 = vmatprep.subr.bf16.mxu0 0
        %3418 = vmatpush1.bf16.msra.mxu0 %v3396
        %3419 = vmatprep.subr.bf16.mxu0 0
        %3420 = vmatpush1.bf16.msra.mxu0 %v3397
        %3421 = vmatprep.subr.bf16.mxu0 0
        %3422 = vmatpush1.bf16.msra.mxu0 %v3398
        %3423 = vmatprep.subr.bf16.mxu0 0
        %3424 = vmatpush1.bf16.msra.mxu0 0
        %3425 = vmatprep.subr.bf16.mxu0 0
        %3426 = vmatpush1.bf16.msra.mxu0 0
        %3427 = vmatprep.subr.bf16.mxu0 0
        %3428 = vmatpush1.bf16.msra.mxu0 0
        %3429 = vmatprep.subr.bf16.mxu0 0
        %3430 = vmatpush1.bf16.msra.mxu0 0
        %3431 = vmatprep.subr.bf16.mxu0 0
        %3432 = vmatpush1.bf16.msra.mxu0 0
        %3433 = vmatprep.subr.bf16.mxu0 0
        %3434 = vmatpush1.bf16.msra.mxu0 0
        %3435 = vmatprep.subr.bf16.mxu0 0
        %3436 = vmatpush1.bf16.msra.mxu0 0
        %3437 = vmatprep.subr.bf16.mxu0 0
        %3438 = vmatpush1.bf16.msra.mxu0 0
        %3439 = vmatprep.subr.bf16.mxu0 0
        %3440 = vmatpush1.bf16.msra.mxu0 0
        %3441 = vmatprep.subr.bf16.mxu0 0
        %3442 = vmatpush1.bf16.msra.mxu0 0
        %3443 = vmatprep.subr.bf16.mxu0 0
        %3444 = vmatpush1.bf16.msra.mxu0 0
        %3445 = vmatprep.subr.bf16.mxu0 0
        %3446 = vmatpush1.bf16.msra.mxu0 0
        %3447 = vmatprep.mubr.bf16.mxu0 0
        %3448 = vmatmul.mubr.bf16.gmra.mrb[0].mxu0 %v3404
        %v3449 = vpop.f32.mrb[0].mxu0
        %v3450 = vadd.f32 0.0, %v3449
        %v3451 = vpop.f32.mrb[0].mxu0
        %v3452 = vpop.f32.mrb[0].mxu0
        %v3453 = vadd.f32 0.0, %v3452
        %v3454 = vpop.f32.mrb[0].mxu0
        %3455 = vmatprep.mubr.bf16.mxu0 0
        %3456 = vmatmul.mubr.bf16.gmra.mrb[0].mxu0 %v3407
        %v3457 = vpop.f32.mrb[0].mxu0
        %v3458 = vadd.f32 0.0, %v3457
        %v3459 = vpop.f32.mrb[0].mxu0
        %v3460 = vpop.f32.mrb[0].mxu0
        %v3461 = vadd.f32 0.0, %v3460
        %v3462 = vpop.f32.mrb[0].mxu0
        %3463 = vmatprep.mubr.bf16.mxu0 0
        %3464 = vmatmul.mubr.bf16.gmra.mrb[0].mxu0 %v3410
        %v3465 = vpop.f32.mrb[0].mxu0
        %v3466 = vadd.f32 0.0, %v3465
        %v3467 = vpop.f32.mrb[0].mxu0
        %v3468 = vpop.f32.mrb[0].mxu0
        %v3469 = vadd.f32 0.0, %v3468
        %v3470 = vpop.f32.mrb[0].mxu0
        %3471 = vmatprep.mubr.bf16.mxu0 0
        %3472 = vmatmul.mubr.bf16.gmra.mrb[0].mxu0 %v3413
        %v3473 = vpop.f32.mrb[0].mxu0
        %v3474 = vadd.f32 0.0, %v3473
        %v3475 = vpop.f32.mrb[0].mxu0
        %v3476 = vpop.f32.mrb[0].mxu0
        %v3477 = vadd.f32 0.0, %v3476
        %v3478 = vpop.f32.mrb[0].mxu0
        %3479 = vdwg.mxu0
        %v3480 = vld [vmem:[%s17] sm:$0x1]
        %v3482 = vlaneseq
        %v3483 = vshrl.u32 %v3482, 7
        %v3484 = vsub.s32 0, %v3483
        %v3485 = vrot.slane %v3480, %v3484
        %v3487 = vmul.f32 %v3450, %v3485
        %v3488 = vmul.f32 %v3453, %v3485
        %v3489 = vmul.f32 %v3458, %v3485
        %v3490 = vmul.f32 %v3461, %v3485
        %v3491 = vmul.f32 %v3466, %v3485
        %v3492 = vmul.f32 %v3469, %v3485
        %v3493 = vmul.f32 %v3474, %v3485
        %v3494 = vmul.f32 %v3477, %v3485
        %v3495 = vld [vmem:[%s18] sm:$0x1]
        %v3497 = vlaneseq
        %v3498 = vshrl.u32 %v3497, 7
        %v3499 = vsub.s32 0, %v3498
        %v3500 = vrot.slane %v3495, %v3499
        %v3502 = vadd.f32 %v3487, %v3500
        %v3503 = vadd.f32 %v3488, %v3500
        %v3504 = vadd.f32 %v3489, %v3500
        %v3505 = vadd.f32 %v3490, %v3500
        %v3506 = vadd.f32 %v3491, %v3500
        %v3507 = vadd.f32 %v3492, %v3500
        %v3508 = vadd.f32 %v3493, %v3500
        %v3509 = vadd.f32 %v3494, %v3500
        %vm3510 = vcmp.gt.f32.partialorder %v3502, 0.0
        %vm3511 = vcmp.gt.f32.partialorder %v3503, 0.0
        %vm3512 = vcmp.gt.f32.partialorder %v3504, 0.0
        %vm3513 = vcmp.gt.f32.partialorder %v3505, 0.0
        %vm3514 = vcmp.gt.f32.partialorder %v3506, 0.0
        %vm3515 = vcmp.gt.f32.partialorder %v3507, 0.0
        %vm3516 = vcmp.gt.f32.partialorder %v3508, 0.0
        %vm3517 = vcmp.gt.f32.partialorder %v3509, 0.0
        %v3518 = vmul.f32 %v3502, 0.1
        %v3519 = vmul.f32 %v3503, 0.1
        %v3520 = vmul.f32 %v3504, 0.1
        %v3521 = vmul.f32 %v3505, 0.1
        %v3522 = vmul.f32 %v3506, 0.1
        %v3523 = vmul.f32 %v3507, 0.1
        %v3524 = vmul.f32 %v3508, 0.1
        %v3525 = vmul.f32 %v3509, 0.1
        %v3526 = vsel %vm3510, %v3502, %v3518
        %v3527 = vsel %vm3511, %v3503, %v3519
        %v3528 = vsel %vm3512, %v3504, %v3520
        %v3529 = vsel %vm3513, %v3505, %v3521
        %v3530 = vsel %vm3514, %v3506, %v3522
        %v3531 = vsel %vm3515, %v3507, %v3523
        %v3532 = vsel %vm3516, %v3508, %v3524
        %v3533 = vsel %vm3517, %v3509, %v3525
        %v3534 = vpack.c.bf16 %v3527, %v3526
        %v3535 = vpack.c.bf16 %v3529, %v3528
        %v3536 = vpack.c.bf16 %v3531, %v3530
        %v3537 = vpack.c.bf16 %v3533, %v3532
        %v3538 = vld [vmem:[%s19] sm:$0xf]
        %v3539 = vld [vmem:[%s19 + $0x4] sm:$0xf]
        %v3540 = vld [vmem:[%s19 + $0x8] sm:$0xf]
        %v3541 = vld [vmem:[%s19 + $0xc] sm:$0xf]
        %v3542 = vld [vmem:[%s19 + $0x10] sm:$0xf]
        %v3543 = vld [vmem:[%s19 + $0x14] sm:$0xf]
        %v3544 = vld [vmem:[%s19 + $0x18] sm:$0xf]
        %v3545 = vld [vmem:[%s19 + $0x1c] sm:$0xf]
        %v3546 = vpack.c.bf16 %v1940, %v1939
        %v3547 = vpack.c.bf16 %v1942, %v1941
        %v3548 = vpack.c.bf16 %v1944, %v1943
        %v3549 = vpack.c.bf16 %v1946, %v1945
        %v3550 = vld [vmem:[%s20] sm:$0xf]
        %v3551 = vld [vmem:[%s20 + $0x4] sm:$0xf]
        %v3552 = vld [vmem:[%s20 + $0x8] sm:$0xf]
        %v3553 = vld [vmem:[%s20 + $0xc] sm:$0xf]
        %v3554 = vld [vmem:[%s20 + $0x10] sm:$0xf]
        %v3555 = vld [vmem:[%s20 + $0x14] sm:$0xf]
        %v3556 = vld [vmem:[%s20 + $0x18] sm:$0xf]
        %v3557 = vld [vmem:[%s20 + $0x1c] sm:$0xf]
        %v3566 = vunpack.c.l.b16 %v3550
        %v3567 = vunpack.c.l.b16 %v3551
        %v3568 = vunpack.c.l.b16 %v3552
        %v3569 = vunpack.c.l.b16 %v3553
        %v3570 = vunpack.c.l.b16 %v3554
        %v3571 = vunpack.c.l.b16 %v3555
        %v3572 = vunpack.c.l.b16 %v3556
        %v3573 = vunpack.c.l.b16 %v3557
        %v3574 = vpack.c.b16 %v3567, %v3566
        %v3575 = vpack.c.b16 %v3569, %v3568
        %v3576 = vpack.c.b16 %v3571, %v3570
        %v3577 = vpack.c.b16 %v3573, %v3572
        %v3583 = vsel %vm1815, %v3546, 0
        %v3586 = vsel %vm1815, %v3547, 0
        %v3589 = vsel %vm1815, %v3548, 0
        %v3592 = vsel %vm1815, %v3549, 0
        %3594 = vmatprep.subr.bf16.mxu0 0
        %3595 = vmatpush1.bf16.msra.mxu0 %v3574
        %3596 = vmatprep.subr.bf16.mxu0 0
        %3597 = vmatpush1.bf16.msra.mxu0 %v3575
        %3598 = vmatprep.subr.bf16.mxu0 0
        %3599 = vmatpush1.bf16.msra.mxu0 %v3576
        %3600 = vmatprep.subr.bf16.mxu0 0
        %3601 = vmatpush1.bf16.msra.mxu0 %v3577
        %3602 = vmatprep.subr.bf16.mxu0 0
        %3603 = vmatpush1.bf16.msra.mxu0 0
        %3604 = vmatprep.subr.bf16.mxu0 0
        %3605 = vmatpush1.bf16.msra.mxu0 0
        %3606 = vmatprep.subr.bf16.mxu0 0
        %3607 = vmatpush1.bf16.msra.mxu0 0
        %3608 = vmatprep.subr.bf16.mxu0 0
        %3609 = vmatpush1.bf16.msra.mxu0 0
        %3610 = vmatprep.subr.bf16.mxu0 0
        %3611 = vmatpush1.bf16.msra.mxu0 0
        %3612 = vmatprep.subr.bf16.mxu0 0
        %3613 = vmatpush1.bf16.msra.mxu0 0
        %3614 = vmatprep.subr.bf16.mxu0 0
        %3615 = vmatpush1.bf16.msra.mxu0 0
        %3616 = vmatprep.subr.bf16.mxu0 0
        %3617 = vmatpush1.bf16.msra.mxu0 0
        %3618 = vmatprep.subr.bf16.mxu0 0
        %3619 = vmatpush1.bf16.msra.mxu0 0
        %3620 = vmatprep.subr.bf16.mxu0 0
        %3621 = vmatpush1.bf16.msra.mxu0 0
        %3622 = vmatprep.subr.bf16.mxu0 0
        %3623 = vmatpush1.bf16.msra.mxu0 0
        %3624 = vmatprep.subr.bf16.mxu0 0
        %3625 = vmatpush1.bf16.msra.mxu0 0
        %3626 = vmatprep.mubr.bf16.mxu0 0
        %3627 = vmatmul.mubr.bf16.gmra.mrb[0].mxu0 %v3583
        %v3628 = vpop.f32.mrb[0].mxu0
        %v3629 = vadd.f32 0.0, %v3628
        %v3630 = vpop.f32.mrb[0].mxu0
        %v3631 = vpop.f32.mrb[0].mxu0
        %v3632 = vadd.f32 0.0, %v3631
        %v3633 = vpop.f32.mrb[0].mxu0
        %3634 = vmatprep.mubr.bf16.mxu0 0
        %3635 = vmatmul.mubr.bf16.gmra.mrb[0].mxu0 %v3586
        %v3636 = vpop.f32.mrb[0].mxu0
        %v3637 = vadd.f32 0.0, %v3636
        %v3638 = vpop.f32.mrb[0].mxu0
        %v3639 = vpop.f32.mrb[0].mxu0
        %v3640 = vadd.f32 0.0, %v3639
        %v3641 = vpop.f32.mrb[0].mxu0
        %3642 = vmatprep.mubr.bf16.mxu0 0
        %3643 = vmatmul.mubr.bf16.gmra.mrb[0].mxu0 %v3589
        %v3644 = vpop.f32.mrb[0].mxu0
        %v3645 = vadd.f32 0.0, %v3644
        %v3646 = vpop.f32.mrb[0].mxu0
        %v3647 = vpop.f32.mrb[0].mxu0
        %v3648 = vadd.f32 0.0, %v3647
        %v3649 = vpop.f32.mrb[0].mxu0
        %3650 = vmatprep.mubr.bf16.mxu0 0
        %3651 = vmatmul.mubr.bf16.gmra.mrb[0].mxu0 %v3592
        %v3652 = vpop.f32.mrb[0].mxu0
        %v3653 = vadd.f32 0.0, %v3652
        %v3654 = vpop.f32.mrb[0].mxu0
        %v3655 = vpop.f32.mrb[0].mxu0
        %v3656 = vadd.f32 0.0, %v3655
        %v3657 = vpop.f32.mrb[0].mxu0
        %3658 = vdwg.mxu0
        %v3667 = vunpack.c.l.b16 %v3538
        %v3668 = vunpack.c.l.b16 %v3539
        %v3669 = vunpack.c.l.b16 %v3540
        %v3670 = vunpack.c.l.b16 %v3541
        %v3671 = vunpack.c.l.b16 %v3542
        %v3672 = vunpack.c.l.b16 %v3543
        %v3673 = vunpack.c.l.b16 %v3544
        %v3674 = vunpack.c.l.b16 %v3545
        %v3675 = vpack.c.b16 %v3668, %v3667
        %v3676 = vpack.c.b16 %v3670, %v3669
        %v3677 = vpack.c.b16 %v3672, %v3671
        %v3678 = vpack.c.b16 %v3674, %v3673
        %v3684 = vsel %vm1815, %v3534, 0
        %v3687 = vsel %vm1815, %v3535, 0
        %v3690 = vsel %vm1815, %v3536, 0
        %v3693 = vsel %vm1815, %v3537, 0
        %3695 = vmatprep.subr.bf16.mxu0 0
        %3696 = vmatpush1.bf16.msra.mxu0 %v3675
        %3697 = vmatprep.subr.bf16.mxu0 0
        %3698 = vmatpush1.bf16.msra.mxu0 %v3676
        %3699 = vmatprep.subr.bf16.mxu0 0
        %3700 = vmatpush1.bf16.msra.mxu0 %v3677
        %3701 = vmatprep.subr.bf16.mxu0 0
        %3702 = vmatpush1.bf16.msra.mxu0 %v3678
        %3703 = vmatprep.subr.bf16.mxu0 0
        %3704 = vmatpush1.bf16.msra.mxu0 0
        %3705 = vmatprep.subr.bf16.mxu0 0
        %3706 = vmatpush1.bf16.msra.mxu0 0
        %3707 = vmatprep.subr.bf16.mxu0 0
        %3708 = vmatpush1.bf16.msra.mxu0 0
        %3709 = vmatprep.subr.bf16.mxu0 0
        %3710 = vmatpush1.bf16.msra.mxu0 0
        %3711 = vmatprep.subr.bf16.mxu0 0
        %3712 = vmatpush1.bf16.msra.mxu0 0
        %3713 = vmatprep.subr.bf16.mxu0 0
        %3714 = vmatpush1.bf16.msra.mxu0 0
        %3715 = vmatprep.subr.bf16.mxu0 0
        %3716 = vmatpush1.bf16.msra.mxu0 0
        %3717 = vmatprep.subr.bf16.mxu0 0
        %3718 = vmatpush1.bf16.msra.mxu0 0
        %3719 = vmatprep.subr.bf16.mxu0 0
        %3720 = vmatpush1.bf16.msra.mxu0 0
        %3721 = vmatprep.subr.bf16.mxu0 0
        %3722 = vmatpush1.bf16.msra.mxu0 0
        %3723 = vmatprep.subr.bf16.mxu0 0
        %3724 = vmatpush1.bf16.msra.mxu0 0
        %3725 = vmatprep.subr.bf16.mxu0 0
        %3726 = vmatpush1.bf16.msra.mxu0 0
        %3727 = vmatprep.mubr.bf16.mxu0 0
        %3728 = vmatmul.mubr.bf16.gmra.mrb[0].mxu0 %v3684
        %v3729 = vpop.f32.mrb[0].mxu0
        %v3730 = vadd.f32 %v3629, %v3729
        %v3731 = vpop.f32.mrb[0].mxu0
        %v3732 = vpop.f32.mrb[0].mxu0
        %v3733 = vadd.f32 %v3632, %v3732
        %v3734 = vpop.f32.mrb[0].mxu0
        %3735 = vmatprep.mubr.bf16.mxu0 0
        %3736 = vmatmul.mubr.bf16.gmra.mrb[0].mxu0 %v3687
        %v3737 = vpop.f32.mrb[0].mxu0
        %v3738 = vadd.f32 %v3637, %v3737
        %v3739 = vpop.f32.mrb[0].mxu0
        %v3740 = vpop.f32.mrb[0].mxu0
        %v3741 = vadd.f32 %v3640, %v3740
        %v3742 = vpop.f32.mrb[0].mxu0
        %3743 = vmatprep.mubr.bf16.mxu0 0
        %3744 = vmatmul.mubr.bf16.gmra.mrb[0].mxu0 %v3690
        %v3745 = vpop.f32.mrb[0].mxu0
        %v3746 = vadd.f32 %v3645, %v3745
        %v3747 = vpop.f32.mrb[0].mxu0
        %v3748 = vpop.f32.mrb[0].mxu0
        %v3749 = vadd.f32 %v3648, %v3748
        %v3750 = vpop.f32.mrb[0].mxu0
        %3751 = vmatprep.mubr.bf16.mxu0 0
        %3752 = vmatmul.mubr.bf16.gmra.mrb[0].mxu0 %v3693
        %v3753 = vpop.f32.mrb[0].mxu0
        %v3754 = vadd.f32 %v3653, %v3753
        %v3755 = vpop.f32.mrb[0].mxu0
        %v3756 = vpop.f32.mrb[0].mxu0
        %v3757 = vadd.f32 %v3656, %v3756
        %v3758 = vpop.f32.mrb[0].mxu0
        %3759 = vdwg.mxu0
        %v3760 = vld [vmem:[%s21] sm:$0x1]
        %v3762 = vlaneseq
        %v3763 = vshrl.u32 %v3762, 7
        %v3764 = vsub.s32 0, %v3763
        %v3765 = vrot.slane %v3760, %v3764
        %v3767 = vmul.f32 %v3730, %v3765
        %v3768 = vmul.f32 %v3733, %v3765
        %v3769 = vmul.f32 %v3738, %v3765
        %v3770 = vmul.f32 %v3741, %v3765
        %v3771 = vmul.f32 %v3746, %v3765
        %v3772 = vmul.f32 %v3749, %v3765
        %v3773 = vmul.f32 %v3754, %v3765
        %v3774 = vmul.f32 %v3757, %v3765
        %v3775 = vld [vmem:[%s22] sm:$0x1]
        %v3777 = vlaneseq
        %v3778 = vshrl.u32 %v3777, 7
        %v3779 = vsub.s32 0, %v3778
        %v3780 = vrot.slane %v3775, %v3779
        %v3782 = vadd.f32 %v3767, %v3780
        %v3783 = vadd.f32 %v3768, %v3780
        %v3784 = vadd.f32 %v3769, %v3780
        %v3785 = vadd.f32 %v3770, %v3780
        %v3786 = vadd.f32 %v3771, %v3780
        %v3787 = vadd.f32 %v3772, %v3780
        %v3788 = vadd.f32 %v3773, %v3780
        %v3789 = vadd.f32 %v3774, %v3780
        %vm3790 = vcmp.gt.f32.partialorder %v3782, 0.0
        %vm3791 = vcmp.gt.f32.partialorder %v3783, 0.0
        %vm3792 = vcmp.gt.f32.partialorder %v3784, 0.0
        %vm3793 = vcmp.gt.f32.partialorder %v3785, 0.0
        %vm3794 = vcmp.gt.f32.partialorder %v3786, 0.0
        %vm3795 = vcmp.gt.f32.partialorder %v3787, 0.0
        %vm3796 = vcmp.gt.f32.partialorder %v3788, 0.0
        %vm3797 = vcmp.gt.f32.partialorder %v3789, 0.0
        %v3798 = vmul.f32 %v3782, 0.1
        %v3799 = vmul.f32 %v3783, 0.1
        %v3800 = vmul.f32 %v3784, 0.1
        %v3801 = vmul.f32 %v3785, 0.1
        %v3802 = vmul.f32 %v3786, 0.1
        %v3803 = vmul.f32 %v3787, 0.1
        %v3804 = vmul.f32 %v3788, 0.1
        %v3805 = vmul.f32 %v3789, 0.1
        %v3806 = vsel %vm3790, %v3782, %v3798
        %v3807 = vsel %vm3791, %v3783, %v3799
        %v3808 = vsel %vm3792, %v3784, %v3800
        %v3809 = vsel %vm3793, %v3785, %v3801
        %v3810 = vsel %vm3794, %v3786, %v3802
        %v3811 = vsel %vm3795, %v3787, %v3803
        %v3812 = vsel %vm3796, %v3788, %v3804
        %v3813 = vsel %vm3797, %v3789, %v3805
        %3814 = vst.msk [vmem:[%s703] sm:$0xff] %vm1815, %v3806
        %3815 = vst.msk [vmem:[%s703 + $0x8] sm:$0xff] %vm1815, %v3807
        %3816 = vst.msk [vmem:[%s703 + $0x10] sm:$0xff] %vm1815, %v3808
        %3817 = vst.msk [vmem:[%s703 + $0x18] sm:$0xff] %vm1815, %v3809
        %3818 = vst.msk [vmem:[%s703 + $0x20] sm:$0xff] %vm1815, %v3810
        %3819 = vst.msk [vmem:[%s703 + $0x28] sm:$0xff] %vm1815, %v3811
        %3820 = vst.msk [vmem:[%s703 + $0x30] sm:$0xff] %vm1815, %v3812
        %3821 = vst.msk [vmem:[%s703 + $0x38] sm:$0xff] %vm1815, %v3813
        %s3822 = sand.u32 %s533, 1
        %s3823 = scalar_lea.sflag [#allocation4], %s3822
        %s3824 = sand.u32 %s533, 1
        %s3825 = smul.addr %s3824, 64
        %s3826 = scalar_lea.vmem [#allocation3], %s3825
        // Predicated region
        $region113: #{layer_block_forward.1} parent=111 // pred_check
          %p3827 = pneg %p543
        $region114: #{layer_block_forward.1} parent=111 // pred_check_branch
          %3829 = sbr.rel (%p3827) target = $region116
        $region115: #{layer_block_forward.1} parent=111 // pred_region
          %s3831 = ssub.s32 1024, 1024
          %3832 = vsyncadd %s3823, %s3831
          %s3833 = smul.addr %s37, 8
          %s3834 = smul.addr %s3833, 128
          %s3835 = scalar_lea.hbm %s23, %s3834
          %s3836 = sshll.u32 %s3826, 4
          %s3837 = int_to_ptr.vmem [resolvable:$true] %s3836
          %3842 = dma.vmem_to_hbm [thread:$0]  %s3837, 1024, %s3835, %s3823, 128, 128, 8
        $region116: #{layer_block_forward.1} parent=111 // pred_fallthru
          _
      $region112: #{layer_block_forward.1} parent=5 // pred_fallthru
        _
      %p3843 = scmp.le.s32.totalorder 2, %s32
      // Predicated region
      $region117: #{layer_block_forward.1} parent=5 // pred_check
        %p3844 = pneg %p3843
      $region118: #{layer_block_forward.1} parent=5 // pred_check_branch
        %3846 = sbr.rel (%p3844) target = $region120
      $region119: #{layer_block_forward.1} parent=5 // pred_region
        %s3847 = ssub.s32 %s32, 2
        // Predicated region
        $region121: #{layer_block_forward.1} parent=119 // pred_check
          %p3848 = pneg %p549
        $region122: #{layer_block_forward.1} parent=119 // pred_check_branch
          %3850 = sbr.rel (%p3848) target = $region124
        $region123: #{layer_block_forward.1} parent=119 // pred_region
          %s3851 = sand.u32 %s534, 1
          %s3852 = scalar_lea.sflag [#allocation4], %s3851
          %s3853 = sand.u32 %s534, 1
          %s3854 = smul.addr %s3853, 64
          %s3855 = scalar_lea.vmem [#allocation3], %s3854
          %3856 = dma.done %s3852, 1024
        $region124: #{layer_block_forward.1} parent=119 // pred_fallthru
          _
      $region120: #{layer_block_forward.1} parent=5 // pred_fallthru
        _
    $region6: #{layer_block_forward.1} parent=1 // loop_footer
      %s36 = sadd.s32 1, %s32
    $region7: #{layer_block_forward.1} parent=1 // loop_footer_branch
      %31 = sbr.rel target = $region3
    $region8: #{layer_block_forward.1} parent=1 // loop_exit
      _
    %3857 = vsyncpa [#allocation4], 1
    %s3858 = scalar_lea.sflag [#allocation4], 1
    %3859 = vsyncpa %s3858, 1

</llo_original>
